<compile_context>
chip_gen: v7x
topology: tpu7x:2x2x1
jax: 0.10.0
libtpu: 0.0.40
codegen_flags: <defaults>
</compile_context>

<pallas_src>
import functools

import jax
import jax.numpy as jnp
from jax.experimental import pallas as pl
from jax.experimental.pallas import tpu as pltpu


def _round_up(x, m):
    return (x + m - 1) // m * m


def _parser_kernel(tok_ref, emb_ref, w1_ref, b1_ref, w2_ref, b2_ref, o_ref, *,
                   n_features, embed_size):
    tile_b = tok_ref.shape[0]
    v_pad = emb_ref.shape[0]
    h_pad = w1_ref.shape[1]

    tok = tok_ref[...]                                    # (tile_b, F) int32
    emb = emb_ref[...]                                    # (V_pad, E) f32, VMEM resident
    vocab_ids = jax.lax.broadcasted_iota(jnp.int32, (tile_b, v_pad), 1)

    # Fused embedding gather + first linear layer:
    #   h[b, :] = sum_f emb[tok[b, f], :] @ w1[f*E:(f+1)*E, :]
    # The row gather is a one-hot @ table matmul on the MXU (exact selection).
    h = jnp.zeros((tile_b, h_pad), jnp.float32)
    for f in range(n_features):
        onehot = (tok[:, f:f + 1] == vocab_ids).astype(jnp.float32)      # (tile_b, V_pad)
        x_f = jnp.dot(onehot, emb, preferred_element_type=jnp.float32)   # (tile_b, E)
        w1_f = w1_ref[f * embed_size:(f + 1) * embed_size, :]            # (E, H_pad)
        h = h + jnp.dot(x_f.astype(jnp.bfloat16),
                        w1_f.astype(jnp.bfloat16),
                        preferred_element_type=jnp.float32)

    h = jnp.maximum(h + b1_ref[...], 0.0)                 # bias + ReLU in f32 (VPU)
    # nn.Dropout is identity in eval mode.
    logits = jnp.dot(h.astype(jnp.bfloat16),
                     w2_ref[...].astype(jnp.bfloat16),
                     preferred_element_type=jnp.float32)
    o_ref[...] = logits + b2_ref[...]


def parser_model_forward(tokens, embeddings, w1, b1, w2, b2):
    """Forward pass of ParserModel.

    tokens:     (batch, n_features) int32
    embeddings: (num_words, embed_size) float32
    w1:         (n_features*embed_size, hidden) float32   (transposed vs torch)
    b1:         (hidden,) float32
    w2:         (hidden, n_classes) float32               (transposed vs torch)
    b2:         (n_classes,) float32
    returns:    (batch, n_classes) float32 logits
    """
    batch, n_features = tokens.shape
    num_words, embed_size = embeddings.shape
    in_dim, hidden = w1.shape
    n_classes = w2.shape[1]
    assert in_dim == n_features * embed_size

    # ---- pad everything to lane/sublane friendly shapes (zeros are inert) ----
    v_pad = _round_up(num_words, 128)          # contraction dim of the gather matmul
    h_pad = _round_up(hidden, 128)             # lane-dense hidden
    c_pad = _round_up(n_classes, 128)          # lane-dense output stores

    emb_p = jnp.zeros((v_pad, embed_size), jnp.float32).at[:num_words].set(embeddings)
    w1_p = jnp.zeros((in_dim, h_pad), jnp.float32).at[:, :hidden].set(w1)
    b1_p = jnp.zeros((1, h_pad), jnp.float32).at[0, :hidden].set(b1)
    w2_p = jnp.zeros((h_pad, c_pad), jnp.float32).at[:hidden, :n_classes].set(w2)
    b2_p = jnp.zeros((1, c_pad), jnp.float32).at[0, :n_classes].set(b2)

    # ---- batch tiling (grid over batch, double-buffered by BlockSpec) ----
    tile_b = min(128, _round_up(batch, 8))
    batch_pad = _round_up(batch, tile_b)
    tok_p = jnp.zeros((batch_pad, n_features), jnp.int32).at[:batch].set(tokens)

    kernel = functools.partial(_parser_kernel,
                               n_features=n_features, embed_size=embed_size)

    out = pl.pallas_call(
        kernel,
        out_shape=jax.ShapeDtypeStruct((batch_pad, c_pad), jnp.float32),
        grid_spec=pltpu.PrefetchScalarGridSpec(
            num_scalar_prefetch=0,
            grid=(batch_pad // tile_b,),
            in_specs=[
                pl.BlockSpec((tile_b, n_features), lambda i: (i, 0)),   # tokens (tiled)
                pl.BlockSpec((v_pad, embed_size), lambda i: (0, 0)),    # embeddings (resident)
                pl.BlockSpec((in_dim, h_pad), lambda i: (0, 0)),        # w1 (resident)
                pl.BlockSpec((1, h_pad), lambda i: (0, 0)),             # b1
                pl.BlockSpec((h_pad, c_pad), lambda i: (0, 0)),         # w2 (resident)
                pl.BlockSpec((1, c_pad), lambda i: (0, 0)),             # b2
            ],
            out_specs=pl.BlockSpec((tile_b, c_pad), lambda i: (i, 0)),  # lane-dense out
        ),
        compiler_params=pltpu.CompilerParams(
            dimension_semantics=("parallel",)),
    )(tok_p, emb_p, w1_p, b1_p, w2_p, b2_p)

    return out[:batch, :n_classes]


# ------------------------------- test harness -------------------------------

def _xavier_uniform(key, fan_out, fan_in, shape):
    bound = jnp.sqrt(6.0 / (fan_in + fan_out))
    return jax.random.uniform(key, shape, jnp.float32, -bound, bound)


def _linear_bias(key, fan_in, shape):
    bound = 1.0 / jnp.sqrt(fan_in)
    return jax.random.uniform(key, shape, jnp.float32, -bound, bound)


def _reference(tokens, embeddings, w1, b1, w2, b2):
    # Pure f32 JAX reference matching the PyTorch forward (eval-mode dropout).
    x = jnp.take(embeddings, tokens, axis=0).reshape(tokens.shape[0], -1)
    z = jnp.maximum(x @ w1 + b1, 0.0)
    return z @ w2 + b2


if __name__ == "__main__":
    # Small but module-consistent shapes.
    num_words = 100
    embed_size = 8
    n_features = 36
    hidden_size = 32
    n_classes = 3
    batch = 8

    key = jax.random.PRNGKey(0)
    k_emb, k_w1, k_b1, k_w2, k_b2, k_tok = jax.random.split(key, 6)

    embeddings = jax.random.normal(k_emb, (num_words, embed_size), jnp.float32)

    in_dim = n_features * embed_size
    # Xavier-uniform weights (stored transposed relative to torch's (out, in)).
    w1 = _xavier_uniform(k_w1, hidden_size, in_dim, (in_dim, hidden_size))
    b1 = _linear_bias(k_b1, in_dim, (hidden_size,))
    w2 = _xavier_uniform(k_w2, n_classes, hidden_size, (hidden_size, n_classes))
    b2 = _linear_bias(k_b2, hidden_size, (n_classes,))

    tokens = jax.random.randint(k_tok, (batch, n_features), 0, num_words,
                                dtype=jnp.int32)

    logits = parser_model_forward(tokens, embeddings, w1, b1, w2, b2)
    jax.block_until_ready(logits)

    ref = _reference(tokens, embeddings, w1, b1, w2, b2)
    assert logits.shape == (batch, n_classes)
    # bf16 MXU inputs with f32 accumulation -> loosened tolerance vs f32 ref.
    assert jnp.allclose(logits, ref, atol=2e-2, rtol=2e-2)

    print("KERNEL_OK")
</pallas_src>

<mosaic_0001>
module attributes {stable_mosaic.version = 11 : i64} {
  func.func @_parser_kernel(%arg0: i32, %arg1: memref<8x36xi32, #tpu.memory_space<vmem>>, %arg2: memref<128x8xf32, #tpu.memory_space<vmem>>, %arg3: memref<288x128xf32, #tpu.memory_space<vmem>>, %arg4: memref<1x128xf32, #tpu.memory_space<vmem>>, %arg5: memref<128x128xf32, #tpu.memory_space<vmem>>, %arg6: memref<1x128xf32, #tpu.memory_space<vmem>>, %arg7: memref<8x128xf32, #tpu.memory_space<vmem>>) attributes {dimension_semantics = [#tpu.dimension_semantics<parallel>], iteration_bounds = array<i64: 1>, scalar_prefetch = 0 : i64, scratch_operands = 0 : i64, tpu.core_type = #tpu.core_type<tc>, window_params = [{transform_indices = @transform_0, window_bounds = array<i64: 8, 36>}, {pipeline_mode = #tpu.pipeline_mode<synchronous>, transform_indices = @transform_1, window_bounds = array<i64: 128, 8>}, {pipeline_mode = #tpu.pipeline_mode<synchronous>, transform_indices = @transform_2, window_bounds = array<i64: 288, 128>}, {pipeline_mode = #tpu.pipeline_mode<synchronous>, transform_indices = @transform_3, window_bounds = array<i64: 1, 128>}, {pipeline_mode = #tpu.pipeline_mode<synchronous>, transform_indices = @transform_4, window_bounds = array<i64: 128, 128>}, {pipeline_mode = #tpu.pipeline_mode<synchronous>, transform_indices = @transform_5, window_bounds = array<i64: 1, 128>}, {transform_indices = @transform_6, window_bounds = array<i64: 8, 128>}]} {
    %c0 = arith.constant 0 : index
    %c0_0 = arith.constant 0 : index
    %0 = vector.load %arg1[%c0, %c0_0] : memref<8x36xi32, #tpu.memory_space<vmem>>, vector<8x36xi32>
    %c0_1 = arith.constant 0 : index
    %c0_2 = arith.constant 0 : index
    %1 = vector.load %arg2[%c0_1, %c0_2] : memref<128x8xf32, #tpu.memory_space<vmem>>, vector<128x8xf32>
    %2 = tpu.iota {dimensions = array<i32: 1>} : vector<8x128xi32>
    %cst = arith.constant 0.000000e+00 : f32
    %3 = vector.broadcast %cst : f32 to vector<8x128xf32>
    %4 = vector.extract_strided_slice %0 {offsets = [0, 0], sizes = [8, 1], strides = [1, 1]} : vector<8x36xi32> to vector<8x1xi32>
    %5 = vector.broadcast %4 : vector<8x1xi32> to vector<8x128xi32>
    %6 = arith.cmpi eq, %5, %2 : vector<8x128xi32>
    %7 = arith.extui %6 : vector<8x128xi1> to vector<8x128xi32>
    %8 = arith.sitofp %7 : vector<8x128xi32> to vector<8x128xf32>
    %cst_3 = arith.constant dense<0.000000e+00> : vector<8x8xf32>
    %9 = tpu.matmul %8, %1, %cst_3 {dimension_numbers = #tpu.dot_dimension_numbers<[1], [0], [0], [1], [0, 0, 1, 1], [], []>} : vector<8x128xf32>, vector<128x8xf32>, vector<8x8xf32> -> vector<8x8xf32>
    %c0_4 = arith.constant 0 : index
    %c0_5 = arith.constant 0 : index
    %10 = vector.load %arg3[%c0_4, %c0_5] : memref<288x128xf32, #tpu.memory_space<vmem>>, vector<8x128xf32>
    %11 = arith.truncf %9 : vector<8x8xf32> to vector<8x8xbf16>
    %12 = arith.truncf %10 : vector<8x128xf32> to vector<8x128xbf16>
    %cst_6 = arith.constant dense<0.000000e+00> : vector<8x128xf32>
    %13 = tpu.matmul %11, %12, %cst_6 {dimension_numbers = #tpu.dot_dimension_numbers<[1], [0], [0], [1], [0, 0, 1, 1], [], []>} : vector<8x8xbf16>, vector<8x128xbf16>, vector<8x128xf32> -> vector<8x128xf32>
    %14 = arith.addf %3, %13 : vector<8x128xf32>
    %15 = vector.extract_strided_slice %0 {offsets = [0, 1], sizes = [8, 1], strides = [1, 1]} : vector<8x36xi32> to vector<8x1xi32>
    %16 = vector.broadcast %15 : vector<8x1xi32> to vector<8x128xi32>
    %17 = arith.cmpi eq, %16, %2 : vector<8x128xi32>
    %18 = arith.extui %17 : vector<8x128xi1> to vector<8x128xi32>
    %19 = arith.sitofp %18 : vector<8x128xi32> to vector<8x128xf32>
    %cst_7 = arith.constant dense<0.000000e+00> : vector<8x8xf32>
    %20 = tpu.matmul %19, %1, %cst_7 {dimension_numbers = #tpu.dot_dimension_numbers<[1], [0], [0], [1], [0, 0, 1, 1], [], []>} : vector<8x128xf32>, vector<128x8xf32>, vector<8x8xf32> -> vector<8x8xf32>
    %c8 = arith.constant 8 : index
    %c0_8 = arith.constant 0 : index
    %21 = vector.load %arg3[%c8, %c0_8] : memref<288x128xf32, #tpu.memory_space<vmem>>, vector<8x128xf32>
    %22 = arith.truncf %20 : vector<8x8xf32> to vector<8x8xbf16>
    %23 = arith.truncf %21 : vector<8x128xf32> to vector<8x128xbf16>
    %cst_9 = arith.constant dense<0.000000e+00> : vector<8x128xf32>
    %24 = tpu.matmul %22, %23, %cst_9 {dimension_numbers = #tpu.dot_dimension_numbers<[1], [0], [0], [1], [0, 0, 1, 1], [], []>} : vector<8x8xbf16>, vector<8x128xbf16>, vector<8x128xf32> -> vector<8x128xf32>
    %25 = arith.addf %14, %24 : vector<8x128xf32>
    %26 = vector.extract_strided_slice %0 {offsets = [0, 2], sizes = [8, 1], strides = [1, 1]} : vector<8x36xi32> to vector<8x1xi32>
    %27 = vector.broadcast %26 : vector<8x1xi32> to vector<8x128xi32>
    %28 = arith.cmpi eq, %27, %2 : vector<8x128xi32>
    %29 = arith.extui %28 : vector<8x128xi1> to vector<8x128xi32>
    %30 = arith.sitofp %29 : vector<8x128xi32> to vector<8x128xf32>
    %cst_10 = arith.constant dense<0.000000e+00> : vector<8x8xf32>
    %31 = tpu.matmul %30, %1, %cst_10 {dimension_numbers = #tpu.dot_dimension_numbers<[1], [0], [0], [1], [0, 0, 1, 1], [], []>} : vector<8x128xf32>, vector<128x8xf32>, vector<8x8xf32> -> vector<8x8xf32>
    %c16 = arith.constant 16 : index
    %c0_11 = arith.constant 0 : index
    %32 = vector.load %arg3[%c16, %c0_11] : memref<288x128xf32, #tpu.memory_space<vmem>>, vector<8x128xf32>
    %33 = arith.truncf %31 : vector<8x8xf32> to vector<8x8xbf16>
    %34 = arith.truncf %32 : vector<8x128xf32> to vector<8x128xbf16>
    %cst_12 = arith.constant dense<0.000000e+00> : vector<8x128xf32>
    %35 = tpu.matmul %33, %34, %cst_12 {dimension_numbers = #tpu.dot_dimension_numbers<[1], [0], [0], [1], [0, 0, 1, 1], [], []>} : vector<8x8xbf16>, vector<8x128xbf16>, vector<8x128xf32> -> vector<8x128xf32>
    %36 = arith.addf %25, %35 : vector<8x128xf32>
    %37 = vector.extract_strided_slice %0 {offsets = [0, 3], sizes = [8, 1], strides = [1, 1]} : vector<8x36xi32> to vector<8x1xi32>
    %38 = vector.broadcast %37 : vector<8x1xi32> to vector<8x128xi32>
    %39 = arith.cmpi eq, %38, %2 : vector<8x128xi32>
    %40 = arith.extui %39 : vector<8x128xi1> to vector<8x128xi32>
    %41 = arith.sitofp %40 : vector<8x128xi32> to vector<8x128xf32>
    %cst_13 = arith.constant dense<0.000000e+00> : vector<8x8xf32>
    %42 = tpu.matmul %41, %1, %cst_13 {dimension_numbers = #tpu.dot_dimension_numbers<[1], [0], [0], [1], [0, 0, 1, 1], [], []>} : vector<8x128xf32>, vector<128x8xf32>, vector<8x8xf32> -> vector<8x8xf32>
    %c24 = arith.constant 24 : index
    %c0_14 = arith.constant 0 : index
    %43 = vector.load %arg3[%c24, %c0_14] : memref<288x128xf32, #tpu.memory_space<vmem>>, vector<8x128xf32>
    %44 = arith.truncf %42 : vector<8x8xf32> to vector<8x8xbf16>
    %45 = arith.truncf %43 : vector<8x128xf32> to vector<8x128xbf16>
    %cst_15 = arith.constant dense<0.000000e+00> : vector<8x128xf32>
    %46 = tpu.matmul %44, %45, %cst_15 {dimension_numbers = #tpu.dot_dimension_numbers<[1], [0], [0], [1], [0, 0, 1, 1], [], []>} : vector<8x8xbf16>, vector<8x128xbf16>, vector<8x128xf32> -> vector<8x128xf32>
    %47 = arith.addf %36, %46 : vector<8x128xf32>
    %48 = vector.extract_strided_slice %0 {offsets = [0, 4], sizes = [8, 1], strides = [1, 1]} : vector<8x36xi32> to vector<8x1xi32>
    %49 = vector.broadcast %48 : vector<8x1xi32> to vector<8x128xi32>
    %50 = arith.cmpi eq, %49, %2 : vector<8x128xi32>
    %51 = arith.extui %50 : vector<8x128xi1> to vector<8x128xi32>
    %52 = arith.sitofp %51 : vector<8x128xi32> to vector<8x128xf32>
    %cst_16 = arith.constant dense<0.000000e+00> : vector<8x8xf32>
    %53 = tpu.matmul %52, %1, %cst_16 {dimension_numbers = #tpu.dot_dimension_numbers<[1], [0], [0], [1], [0, 0, 1, 1], [], []>} : vector<8x128xf32>, vector<128x8xf32>, vector<8x8xf32> -> vector<8x8xf32>
    %c32 = arith.constant 32 : index
    %c0_17 = arith.constant 0 : index
    %54 = vector.load %arg3[%c32, %c0_17] : memref<288x128xf32, #tpu.memory_space<vmem>>, vector<8x128xf32>
    %55 = arith.truncf %53 : vector<8x8xf32> to vector<8x8xbf16>
    %56 = arith.truncf %54 : vector<8x128xf32> to vector<8x128xbf16>
    %cst_18 = arith.constant dense<0.000000e+00> : vector<8x128xf32>
    %57 = tpu.matmul %55, %56, %cst_18 {dimension_numbers = #tpu.dot_dimension_numbers<[1], [0], [0], [1], [0, 0, 1, 1], [], []>} : vector<8x8xbf16>, vector<8x128xbf16>, vector<8x128xf32> -> vector<8x128xf32>
    %58 = arith.addf %47, %57 : vector<8x128xf32>
    %59 = vector.extract_strided_slice %0 {offsets = [0, 5], sizes = [8, 1], strides = [1, 1]} : vector<8x36xi32> to vector<8x1xi32>
    %60 = vector.broadcast %59 : vector<8x1xi32> to vector<8x128xi32>
    %61 = arith.cmpi eq, %60, %2 : vector<8x128xi32>
    %62 = arith.extui %61 : vector<8x128xi1> to vector<8x128xi32>
    %63 = arith.sitofp %62 : vector<8x128xi32> to vector<8x128xf32>
    %cst_19 = arith.constant dense<0.000000e+00> : vector<8x8xf32>
    %64 = tpu.matmul %63, %1, %cst_19 {dimension_numbers = #tpu.dot_dimension_numbers<[1], [0], [0], [1], [0, 0, 1, 1], [], []>} : vector<8x128xf32>, vector<128x8xf32>, vector<8x8xf32> -> vector<8x8xf32>
    %c40 = arith.constant 40 : index
    %c0_20 = arith.constant 0 : index
    %65 = vector.load %arg3[%c40, %c0_20] : memref<288x128xf32, #tpu.memory_space<vmem>>, vector<8x128xf32>
    %66 = arith.truncf %64 : vector<8x8xf32> to vector<8x8xbf16>
    %67 = arith.truncf %65 : vector<8x128xf32> to vector<8x128xbf16>
    %cst_21 = arith.constant dense<0.000000e+00> : vector<8x128xf32>
    %68 = tpu.matmul %66, %67, %cst_21 {dimension_numbers = #tpu.dot_dimension_numbers<[1], [0], [0], [1], [0, 0, 1, 1], [], []>} : vector<8x8xbf16>, vector<8x128xbf16>, vector<8x128xf32> -> vector<8x128xf32>
    %69 = arith.addf %58, %68 : vector<8x128xf32>
    %70 = vector.extract_strided_slice %0 {offsets = [0, 6], sizes = [8, 1], strides = [1, 1]} : vector<8x36xi32> to vector<8x1xi32>
    %71 = vector.broadcast %70 : vector<8x1xi32> to vector<8x128xi32>
    %72 = arith.cmpi eq, %71, %2 : vector<8x128xi32>
    %73 = arith.extui %72 : vector<8x128xi1> to vector<8x128xi32>
    %74 = arith.sitofp %73 : vector<8x128xi32> to vector<8x128xf32>
    %cst_22 = arith.constant dense<0.000000e+00> : vector<8x8xf32>
    %75 = tpu.matmul %74, %1, %cst_22 {dimension_numbers = #tpu.dot_dimension_numbers<[1], [0], [0], [1], [0, 0, 1, 1], [], []>} : vector<8x128xf32>, vector<128x8xf32>, vector<8x8xf32> -> vector<8x8xf32>
    %c48 = arith.constant 48 : index
    %c0_23 = arith.constant 0 : index
    %76 = vector.load %arg3[%c48, %c0_23] : memref<288x128xf32, #tpu.memory_space<vmem>>, vector<8x128xf32>
    %77 = arith.truncf %75 : vector<8x8xf32> to vector<8x8xbf16>
    %78 = arith.truncf %76 : vector<8x128xf32> to vector<8x128xbf16>
    %cst_24 = arith.constant dense<0.000000e+00> : vector<8x128xf32>
    %79 = tpu.matmul %77, %78, %cst_24 {dimension_numbers = #tpu.dot_dimension_numbers<[1], [0], [0], [1], [0, 0, 1, 1], [], []>} : vector<8x8xbf16>, vector<8x128xbf16>, vector<8x128xf32> -> vector<8x128xf32>
    %80 = arith.addf %69, %79 : vector<8x128xf32>
    %81 = vector.extract_strided_slice %0 {offsets = [0, 7], sizes = [8, 1], strides = [1, 1]} : vector<8x36xi32> to vector<8x1xi32>
    %82 = vector.broadcast %81 : vector<8x1xi32> to vector<8x128xi32>
    %83 = arith.cmpi eq, %82, %2 : vector<8x128xi32>
    %84 = arith.extui %83 : vector<8x128xi1> to vector<8x128xi32>
    %85 = arith.sitofp %84 : vector<8x128xi32> to vector<8x128xf32>
    %cst_25 = arith.constant dense<0.000000e+00> : vector<8x8xf32>
    %86 = tpu.matmul %85, %1, %cst_25 {dimension_numbers = #tpu.dot_dimension_numbers<[1], [0], [0], [1], [0, 0, 1, 1], [], []>} : vector<8x128xf32>, vector<128x8xf32>, vector<8x8xf32> -> vector<8x8xf32>
    %c56 = arith.constant 56 : index
    %c0_26 = arith.constant 0 : index
    %87 = vector.load %arg3[%c56, %c0_26] : memref<288x128xf32, #tpu.memory_space<vmem>>, vector<8x128xf32>
    %88 = arith.truncf %86 : vector<8x8xf32> to vector<8x8xbf16>
    %89 = arith.truncf %87 : vector<8x128xf32> to vector<8x128xbf16>
    %cst_27 = arith.constant dense<0.000000e+00> : vector<8x128xf32>
    %90 = tpu.matmul %88, %89, %cst_27 {dimension_numbers = #tpu.dot_dimension_numbers<[1], [0], [0], [1], [0, 0, 1, 1], [], []>} : vector<8x8xbf16>, vector<8x128xbf16>, vector<8x128xf32> -> vector<8x128xf32>
    %91 = arith.addf %80, %90 : vector<8x128xf32>
    %92 = vector.extract_strided_slice %0 {offsets = [0, 8], sizes = [8, 1], strides = [1, 1]} : vector<8x36xi32> to vector<8x1xi32>
    %93 = vector.broadcast %92 : vector<8x1xi32> to vector<8x128xi32>
    %94 = arith.cmpi eq, %93, %2 : vector<8x128xi32>
    %95 = arith.extui %94 : vector<8x128xi1> to vector<8x128xi32>
    %96 = arith.sitofp %95 : vector<8x128xi32> to vector<8x128xf32>
    %cst_28 = arith.constant dense<0.000000e+00> : vector<8x8xf32>
    %97 = tpu.matmul %96, %1, %cst_28 {dimension_numbers = #tpu.dot_dimension_numbers<[1], [0], [0], [1], [0, 0, 1, 1], [], []>} : vector<8x128xf32>, vector<128x8xf32>, vector<8x8xf32> -> vector<8x8xf32>
    %c64 = arith.constant 64 : index
    %c0_29 = arith.constant 0 : index
    %98 = vector.load %arg3[%c64, %c0_29] : memref<288x128xf32, #tpu.memory_space<vmem>>, vector<8x128xf32>
    %99 = arith.truncf %97 : vector<8x8xf32> to vector<8x8xbf16>
    %100 = arith.truncf %98 : vector<8x128xf32> to vector<8x128xbf16>
    %cst_30 = arith.constant dense<0.000000e+00> : vector<8x128xf32>
    %101 = tpu.matmul %99, %100, %cst_30 {dimension_numbers = #tpu.dot_dimension_numbers<[1], [0], [0], [1], [0, 0, 1, 1], [], []>} : vector<8x8xbf16>, vector<8x128xbf16>, vector<8x128xf32> -> vector<8x128xf32>
    %102 = arith.addf %91, %101 : vector<8x128xf32>
    %103 = vector.extract_strided_slice %0 {offsets = [0, 9], sizes = [8, 1], strides = [1, 1]} : vector<8x36xi32> to vector<8x1xi32>
    %104 = vector.broadcast %103 : vector<8x1xi32> to vector<8x128xi32>
    %105 = arith.cmpi eq, %104, %2 : vector<8x128xi32>
    %106 = arith.extui %105 : vector<8x128xi1> to vector<8x128xi32>
    %107 = arith.sitofp %106 : vector<8x128xi32> to vector<8x128xf32>
    %cst_31 = arith.constant dense<0.000000e+00> : vector<8x8xf32>
    %108 = tpu.matmul %107, %1, %cst_31 {dimension_numbers = #tpu.dot_dimension_numbers<[1], [0], [0], [1], [0, 0, 1, 1], [], []>} : vector<8x128xf32>, vector<128x8xf32>, vector<8x8xf32> -> vector<8x8xf32>
    %c72 = arith.constant 72 : index
    %c0_32 = arith.constant 0 : index
    %109 = vector.load %arg3[%c72, %c0_32] : memref<288x128xf32, #tpu.memory_space<vmem>>, vector<8x128xf32>
    %110 = arith.truncf %108 : vector<8x8xf32> to vector<8x8xbf16>
    %111 = arith.truncf %109 : vector<8x128xf32> to vector<8x128xbf16>
    %cst_33 = arith.constant dense<0.000000e+00> : vector<8x128xf32>
    %112 = tpu.matmul %110, %111, %cst_33 {dimension_numbers = #tpu.dot_dimension_numbers<[1], [0], [0], [1], [0, 0, 1, 1], [], []>} : vector<8x8xbf16>, vector<8x128xbf16>, vector<8x128xf32> -> vector<8x128xf32>
    %113 = arith.addf %102, %112 : vector<8x128xf32>
    %114 = vector.extract_strided_slice %0 {offsets = [0, 10], sizes = [8, 1], strides = [1, 1]} : vector<8x36xi32> to vector<8x1xi32>
    %115 = vector.broadcast %114 : vector<8x1xi32> to vector<8x128xi32>
    %116 = arith.cmpi eq, %115, %2 : vector<8x128xi32>
    %117 = arith.extui %116 : vector<8x128xi1> to vector<8x128xi32>
    %118 = arith.sitofp %117 : vector<8x128xi32> to vector<8x128xf32>
    %cst_34 = arith.constant dense<0.000000e+00> : vector<8x8xf32>
    %119 = tpu.matmul %118, %1, %cst_34 {dimension_numbers = #tpu.dot_dimension_numbers<[1], [0], [0], [1], [0, 0, 1, 1], [], []>} : vector<8x128xf32>, vector<128x8xf32>, vector<8x8xf32> -> vector<8x8xf32>
    %c80 = arith.constant 80 : index
    %c0_35 = arith.constant 0 : index
    %120 = vector.load %arg3[%c80, %c0_35] : memref<288x128xf32, #tpu.memory_space<vmem>>, vector<8x128xf32>
    %121 = arith.truncf %119 : vector<8x8xf32> to vector<8x8xbf16>
    %122 = arith.truncf %120 : vector<8x128xf32> to vector<8x128xbf16>
    %cst_36 = arith.constant dense<0.000000e+00> : vector<8x128xf32>
    %123 = tpu.matmul %121, %122, %cst_36 {dimension_numbers = #tpu.dot_dimension_numbers<[1], [0], [0], [1], [0, 0, 1, 1], [], []>} : vector<8x8xbf16>, vector<8x128xbf16>, vector<8x128xf32> -> vector<8x128xf32>
    %124 = arith.addf %113, %123 : vector<8x128xf32>
    %125 = vector.extract_strided_slice %0 {offsets = [0, 11], sizes = [8, 1], strides = [1, 1]} : vector<8x36xi32> to vector<8x1xi32>
    %126 = vector.broadcast %125 : vector<8x1xi32> to vector<8x128xi32>
    %127 = arith.cmpi eq, %126, %2 : vector<8x128xi32>
    %128 = arith.extui %127 : vector<8x128xi1> to vector<8x128xi32>
    %129 = arith.sitofp %128 : vector<8x128xi32> to vector<8x128xf32>
    %cst_37 = arith.constant dense<0.000000e+00> : vector<8x8xf32>
    %130 = tpu.matmul %129, %1, %cst_37 {dimension_numbers = #tpu.dot_dimension_numbers<[1], [0], [0], [1], [0, 0, 1, 1], [], []>} : vector<8x128xf32>, vector<128x8xf32>, vector<8x8xf32> -> vector<8x8xf32>
    %c88 = arith.constant 88 : index
    %c0_38 = arith.constant 0 : index
    %131 = vector.load %arg3[%c88, %c0_38] : memref<288x128xf32, #tpu.memory_space<vmem>>, vector<8x128xf32>
    %132 = arith.truncf %130 : vector<8x8xf32> to vector<8x8xbf16>
    %133 = arith.truncf %131 : vector<8x128xf32> to vector<8x128xbf16>
    %cst_39 = arith.constant dense<0.000000e+00> : vector<8x128xf32>
    %134 = tpu.matmul %132, %133, %cst_39 {dimension_numbers = #tpu.dot_dimension_numbers<[1], [0], [0], [1], [0, 0, 1, 1], [], []>} : vector<8x8xbf16>, vector<8x128xbf16>, vector<8x128xf32> -> vector<8x128xf32>
    %135 = arith.addf %124, %134 : vector<8x128xf32>
    %136 = vector.extract_strided_slice %0 {offsets = [0, 12], sizes = [8, 1], strides = [1, 1]} : vector<8x36xi32> to vector<8x1xi32>
    %137 = vector.broadcast %136 : vector<8x1xi32> to vector<8x128xi32>
    %138 = arith.cmpi eq, %137, %2 : vector<8x128xi32>
    %139 = arith.extui %138 : vector<8x128xi1> to vector<8x128xi32>
    %140 = arith.sitofp %139 : vector<8x128xi32> to vector<8x128xf32>
    %cst_40 = arith.constant dense<0.000000e+00> : vector<8x8xf32>
    %141 = tpu.matmul %140, %1, %cst_40 {dimension_numbers = #tpu.dot_dimension_numbers<[1], [0], [0], [1], [0, 0, 1, 1], [], []>} : vector<8x128xf32>, vector<128x8xf32>, vector<8x8xf32> -> vector<8x8xf32>
    %c96 = arith.constant 96 : index
    %c0_41 = arith.constant 0 : index
    %142 = vector.load %arg3[%c96, %c0_41] : memref<288x128xf32, #tpu.memory_space<vmem>>, vector<8x128xf32>
    %143 = arith.truncf %141 : vector<8x8xf32> to vector<8x8xbf16>
    %144 = arith.truncf %142 : vector<8x128xf32> to vector<8x128xbf16>
    %cst_42 = arith.constant dense<0.000000e+00> : vector<8x128xf32>
    %145 = tpu.matmul %143, %144, %cst_42 {dimension_numbers = #tpu.dot_dimension_numbers<[1], [0], [0], [1], [0, 0, 1, 1], [], []>} : vector<8x8xbf16>, vector<8x128xbf16>, vector<8x128xf32> -> vector<8x128xf32>
    %146 = arith.addf %135, %145 : vector<8x128xf32>
    %147 = vector.extract_strided_slice %0 {offsets = [0, 13], sizes = [8, 1], strides = [1, 1]} : vector<8x36xi32> to vector<8x1xi32>
    %148 = vector.broadcast %147 : vector<8x1xi32> to vector<8x128xi32>
    %149 = arith.cmpi eq, %148, %2 : vector<8x128xi32>
    %150 = arith.extui %149 : vector<8x128xi1> to vector<8x128xi32>
    %151 = arith.sitofp %150 : vector<8x128xi32> to vector<8x128xf32>
    %cst_43 = arith.constant dense<0.000000e+00> : vector<8x8xf32>
    %152 = tpu.matmul %151, %1, %cst_43 {dimension_numbers = #tpu.dot_dimension_numbers<[1], [0], [0], [1], [0, 0, 1, 1], [], []>} : vector<8x128xf32>, vector<128x8xf32>, vector<8x8xf32> -> vector<8x8xf32>
    %c104 = arith.constant 104 : index
    %c0_44 = arith.constant 0 : index
    %153 = vector.load %arg3[%c104, %c0_44] : memref<288x128xf32, #tpu.memory_space<vmem>>, vector<8x128xf32>
    %154 = arith.truncf %152 : vector<8x8xf32> to vector<8x8xbf16>
    %155 = arith.truncf %153 : vector<8x128xf32> to vector<8x128xbf16>
    %cst_45 = arith.constant dense<0.000000e+00> : vector<8x128xf32>
    %156 = tpu.matmul %154, %155, %cst_45 {dimension_numbers = #tpu.dot_dimension_numbers<[1], [0], [0], [1], [0, 0, 1, 1], [], []>} : vector<8x8xbf16>, vector<8x128xbf16>, vector<8x128xf32> -> vector<8x128xf32>
    %157 = arith.addf %146, %156 : vector<8x128xf32>
    %158 = vector.extract_strided_slice %0 {offsets = [0, 14], sizes = [8, 1], strides = [1, 1]} : vector<8x36xi32> to vector<8x1xi32>
    %159 = vector.broadcast %158 : vector<8x1xi32> to vector<8x128xi32>
    %160 = arith.cmpi eq, %159, %2 : vector<8x128xi32>
    %161 = arith.extui %160 : vector<8x128xi1> to vector<8x128xi32>
    %162 = arith.sitofp %161 : vector<8x128xi32> to vector<8x128xf32>
    %cst_46 = arith.constant dense<0.000000e+00> : vector<8x8xf32>
    %163 = tpu.matmul %162, %1, %cst_46 {dimension_numbers = #tpu.dot_dimension_numbers<[1], [0], [0], [1], [0, 0, 1, 1], [], []>} : vector<8x128xf32>, vector<128x8xf32>, vector<8x8xf32> -> vector<8x8xf32>
    %c112 = arith.constant 112 : index
    %c0_47 = arith.constant 0 : index
    %164 = vector.load %arg3[%c112, %c0_47] : memref<288x128xf32, #tpu.memory_space<vmem>>, vector<8x128xf32>
    %165 = arith.truncf %163 : vector<8x8xf32> to vector<8x8xbf16>
    %166 = arith.truncf %164 : vector<8x128xf32> to vector<8x128xbf16>
    %cst_48 = arith.constant dense<0.000000e+00> : vector<8x128xf32>
    %167 = tpu.matmul %165, %166, %cst_48 {dimension_numbers = #tpu.dot_dimension_numbers<[1], [0], [0], [1], [0, 0, 1, 1], [], []>} : vector<8x8xbf16>, vector<8x128xbf16>, vector<8x128xf32> -> vector<8x128xf32>
    %168 = arith.addf %157, %167 : vector<8x128xf32>
    %169 = vector.extract_strided_slice %0 {offsets = [0, 15], sizes = [8, 1], strides = [1, 1]} : vector<8x36xi32> to vector<8x1xi32>
    %170 = vector.broadcast %169 : vector<8x1xi32> to vector<8x128xi32>
    %171 = arith.cmpi eq, %170, %2 : vector<8x128xi32>
    %172 = arith.extui %171 : vector<8x128xi1> to vector<8x128xi32>
    %173 = arith.sitofp %172 : vector<8x128xi32> to vector<8x128xf32>
    %cst_49 = arith.constant dense<0.000000e+00> : vector<8x8xf32>
    %174 = tpu.matmul %173, %1, %cst_49 {dimension_numbers = #tpu.dot_dimension_numbers<[1], [0], [0], [1], [0, 0, 1, 1], [], []>} : vector<8x128xf32>, vector<128x8xf32>, vector<8x8xf32> -> vector<8x8xf32>
    %c120 = arith.constant 120 : index
    %c0_50 = arith.constant 0 : index
    %175 = vector.load %arg3[%c120, %c0_50] : memref<288x128xf32, #tpu.memory_space<vmem>>, vector<8x128xf32>
    %176 = arith.truncf %174 : vector<8x8xf32> to vector<8x8xbf16>
    %177 = arith.truncf %175 : vector<8x128xf32> to vector<8x128xbf16>
    %cst_51 = arith.constant dense<0.000000e+00> : vector<8x128xf32>
    %178 = tpu.matmul %176, %177, %cst_51 {dimension_numbers = #tpu.dot_dimension_numbers<[1], [0], [0], [1], [0, 0, 1, 1], [], []>} : vector<8x8xbf16>, vector<8x128xbf16>, vector<8x128xf32> -> vector<8x128xf32>
    %179 = arith.addf %168, %178 : vector<8x128xf32>
    %180 = vector.extract_strided_slice %0 {offsets = [0, 16], sizes = [8, 1], strides = [1, 1]} : vector<8x36xi32> to vector<8x1xi32>
    %181 = vector.broadcast %180 : vector<8x1xi32> to vector<8x128xi32>
    %182 = arith.cmpi eq, %181, %2 : vector<8x128xi32>
    %183 = arith.extui %182 : vector<8x128xi1> to vector<8x128xi32>
    %184 = arith.sitofp %183 : vector<8x128xi32> to vector<8x128xf32>
    %cst_52 = arith.constant dense<0.000000e+00> : vector<8x8xf32>
    %185 = tpu.matmul %184, %1, %cst_52 {dimension_numbers = #tpu.dot_dimension_numbers<[1], [0], [0], [1], [0, 0, 1, 1], [], []>} : vector<8x128xf32>, vector<128x8xf32>, vector<8x8xf32> -> vector<8x8xf32>
    %c128 = arith.constant 128 : index
    %c0_53 = arith.constant 0 : index
    %186 = vector.load %arg3[%c128, %c0_53] : memref<288x128xf32, #tpu.memory_space<vmem>>, vector<8x128xf32>
    %187 = arith.truncf %185 : vector<8x8xf32> to vector<8x8xbf16>
    %188 = arith.truncf %186 : vector<8x128xf32> to vector<8x128xbf16>
    %cst_54 = arith.constant dense<0.000000e+00> : vector<8x128xf32>
    %189 = tpu.matmul %187, %188, %cst_54 {dimension_numbers = #tpu.dot_dimension_numbers<[1], [0], [0], [1], [0, 0, 1, 1], [], []>} : vector<8x8xbf16>, vector<8x128xbf16>, vector<8x128xf32> -> vector<8x128xf32>
    %190 = arith.addf %179, %189 : vector<8x128xf32>
    %191 = vector.extract_strided_slice %0 {offsets = [0, 17], sizes = [8, 1], strides = [1, 1]} : vector<8x36xi32> to vector<8x1xi32>
    %192 = vector.broadcast %191 : vector<8x1xi32> to vector<8x128xi32>
    %193 = arith.cmpi eq, %192, %2 : vector<8x128xi32>
    %194 = arith.extui %193 : vector<8x128xi1> to vector<8x128xi32>
    %195 = arith.sitofp %194 : vector<8x128xi32> to vector<8x128xf32>
    %cst_55 = arith.constant dense<0.000000e+00> : vector<8x8xf32>
    %196 = tpu.matmul %195, %1, %cst_55 {dimension_numbers = #tpu.dot_dimension_numbers<[1], [0], [0], [1], [0, 0, 1, 1], [], []>} : vector<8x128xf32>, vector<128x8xf32>, vector<8x8xf32> -> vector<8x8xf32>
    %c136 = arith.constant 136 : index
    %c0_56 = arith.constant 0 : index
    %197 = vector.load %arg3[%c136, %c0_56] : memref<288x128xf32, #tpu.memory_space<vmem>>, vector<8x128xf32>
    %198 = arith.truncf %196 : vector<8x8xf32> to vector<8x8xbf16>
    %199 = arith.truncf %197 : vector<8x128xf32> to vector<8x128xbf16>
    %cst_57 = arith.constant dense<0.000000e+00> : vector<8x128xf32>
    %200 = tpu.matmul %198, %199, %cst_57 {dimension_numbers = #tpu.dot_dimension_numbers<[1], [0], [0], [1], [0, 0, 1, 1], [], []>} : vector<8x8xbf16>, vector<8x128xbf16>, vector<8x128xf32> -> vector<8x128xf32>
    %201 = arith.addf %190, %200 : vector<8x128xf32>
    %202 = vector.extract_strided_slice %0 {offsets = [0, 18], sizes = [8, 1], strides = [1, 1]} : vector<8x36xi32> to vector<8x1xi32>
    %203 = vector.broadcast %202 : vector<8x1xi32> to vector<8x128xi32>
    %204 = arith.cmpi eq, %203, %2 : vector<8x128xi32>
    %205 = arith.extui %204 : vector<8x128xi1> to vector<8x128xi32>
    %206 = arith.sitofp %205 : vector<8x128xi32> to vector<8x128xf32>
    %cst_58 = arith.constant dense<0.000000e+00> : vector<8x8xf32>
    %207 = tpu.matmul %206, %1, %cst_58 {dimension_numbers = #tpu.dot_dimension_numbers<[1], [0], [0], [1], [0, 0, 1, 1], [], []>} : vector<8x128xf32>, vector<128x8xf32>, vector<8x8xf32> -> vector<8x8xf32>
    %c144 = arith.constant 144 : index
    %c0_59 = arith.constant 0 : index
    %208 = vector.load %arg3[%c144, %c0_59] : memref<288x128xf32, #tpu.memory_space<vmem>>, vector<8x128xf32>
    %209 = arith.truncf %207 : vector<8x8xf32> to vector<8x8xbf16>
    %210 = arith.truncf %208 : vector<8x128xf32> to vector<8x128xbf16>
    %cst_60 = arith.constant dense<0.000000e+00> : vector<8x128xf32>
    %211 = tpu.matmul %209, %210, %cst_60 {dimension_numbers = #tpu.dot_dimension_numbers<[1], [0], [0], [1], [0, 0, 1, 1], [], []>} : vector<8x8xbf16>, vector<8x128xbf16>, vector<8x128xf32> -> vector<8x128xf32>
    %212 = arith.addf %201, %211 : vector<8x128xf32>
    %213 = vector.extract_strided_slice %0 {offsets = [0, 19], sizes = [8, 1], strides = [1, 1]} : vector<8x36xi32> to vector<8x1xi32>
    %214 = vector.broadcast %213 : vector<8x1xi32> to vector<8x128xi32>
    %215 = arith.cmpi eq, %214, %2 : vector<8x128xi32>
    %216 = arith.extui %215 : vector<8x128xi1> to vector<8x128xi32>
    %217 = arith.sitofp %216 : vector<8x128xi32> to vector<8x128xf32>
    %cst_61 = arith.constant dense<0.000000e+00> : vector<8x8xf32>
    %218 = tpu.matmul %217, %1, %cst_61 {dimension_numbers = #tpu.dot_dimension_numbers<[1], [0], [0], [1], [0, 0, 1, 1], [], []>} : vector<8x128xf32>, vector<128x8xf32>, vector<8x8xf32> -> vector<8x8xf32>
    %c152 = arith.constant 152 : index
    %c0_62 = arith.constant 0 : index
    %219 = vector.load %arg3[%c152, %c0_62] : memref<288x128xf32, #tpu.memory_space<vmem>>, vector<8x128xf32>
    %220 = arith.truncf %218 : vector<8x8xf32> to vector<8x8xbf16>
    %221 = arith.truncf %219 : vector<8x128xf32> to vector<8x128xbf16>
    %cst_63 = arith.constant dense<0.000000e+00> : vector<8x128xf32>
    %222 = tpu.matmul %220, %221, %cst_63 {dimension_numbers = #tpu.dot_dimension_numbers<[1], [0], [0], [1], [0, 0, 1, 1], [], []>} : vector<8x8xbf16>, vector<8x128xbf16>, vector<8x128xf32> -> vector<8x128xf32>
    %223 = arith.addf %212, %222 : vector<8x128xf32>
    %224 = vector.extract_strided_slice %0 {offsets = [0, 20], sizes = [8, 1], strides = [1, 1]} : vector<8x36xi32> to vector<8x1xi32>
    %225 = vector.broadcast %224 : vector<8x1xi32> to vector<8x128xi32>
    %226 = arith.cmpi eq, %225, %2 : vector<8x128xi32>
    %227 = arith.extui %226 : vector<8x128xi1> to vector<8x128xi32>
    %228 = arith.sitofp %227 : vector<8x128xi32> to vector<8x128xf32>
    %cst_64 = arith.constant dense<0.000000e+00> : vector<8x8xf32>
    %229 = tpu.matmul %228, %1, %cst_64 {dimension_numbers = #tpu.dot_dimension_numbers<[1], [0], [0], [1], [0, 0, 1, 1], [], []>} : vector<8x128xf32>, vector<128x8xf32>, vector<8x8xf32> -> vector<8x8xf32>
    %c160 = arith.constant 160 : index
    %c0_65 = arith.constant 0 : index
    %230 = vector.load %arg3[%c160, %c0_65] : memref<288x128xf32, #tpu.memory_space<vmem>>, vector<8x128xf32>
    %231 = arith.truncf %229 : vector<8x8xf32> to vector<8x8xbf16>
    %232 = arith.truncf %230 : vector<8x128xf32> to vector<8x128xbf16>
    %cst_66 = arith.constant dense<0.000000e+00> : vector<8x128xf32>
    %233 = tpu.matmul %231, %232, %cst_66 {dimension_numbers = #tpu.dot_dimension_numbers<[1], [0], [0], [1], [0, 0, 1, 1], [], []>} : vector<8x8xbf16>, vector<8x128xbf16>, vector<8x128xf32> -> vector<8x128xf32>
    %234 = arith.addf %223, %233 : vector<8x128xf32>
    %235 = vector.extract_strided_slice %0 {offsets = [0, 21], sizes = [8, 1], strides = [1, 1]} : vector<8x36xi32> to vector<8x1xi32>
    %236 = vector.broadcast %235 : vector<8x1xi32> to vector<8x128xi32>
    %237 = arith.cmpi eq, %236, %2 : vector<8x128xi32>
    %238 = arith.extui %237 : vector<8x128xi1> to vector<8x128xi32>
    %239 = arith.sitofp %238 : vector<8x128xi32> to vector<8x128xf32>
    %cst_67 = arith.constant dense<0.000000e+00> : vector<8x8xf32>
    %240 = tpu.matmul %239, %1, %cst_67 {dimension_numbers = #tpu.dot_dimension_numbers<[1], [0], [0], [1], [0, 0, 1, 1], [], []>} : vector<8x128xf32>, vector<128x8xf32>, vector<8x8xf32> -> vector<8x8xf32>
    %c168 = arith.constant 168 : index
    %c0_68 = arith.constant 0 : index
    %241 = vector.load %arg3[%c168, %c0_68] : memref<288x128xf32, #tpu.memory_space<vmem>>, vector<8x128xf32>
    %242 = arith.truncf %240 : vector<8x8xf32> to vector<8x8xbf16>
    %243 = arith.truncf %241 : vector<8x128xf32> to vector<8x128xbf16>
    %cst_69 = arith.constant dense<0.000000e+00> : vector<8x128xf32>
    %244 = tpu.matmul %242, %243, %cst_69 {dimension_numbers = #tpu.dot_dimension_numbers<[1], [0], [0], [1], [0, 0, 1, 1], [], []>} : vector<8x8xbf16>, vector<8x128xbf16>, vector<8x128xf32> -> vector<8x128xf32>
    %245 = arith.addf %234, %244 : vector<8x128xf32>
    %246 = vector.extract_strided_slice %0 {offsets = [0, 22], sizes = [8, 1], strides = [1, 1]} : vector<8x36xi32> to vector<8x1xi32>
    %247 = vector.broadcast %246 : vector<8x1xi32> to vector<8x128xi32>
    %248 = arith.cmpi eq, %247, %2 : vector<8x128xi32>
    %249 = arith.extui %248 : vector<8x128xi1> to vector<8x128xi32>
    %250 = arith.sitofp %249 : vector<8x128xi32> to vector<8x128xf32>
    %cst_70 = arith.constant dense<0.000000e+00> : vector<8x8xf32>
    %251 = tpu.matmul %250, %1, %cst_70 {dimension_numbers = #tpu.dot_dimension_numbers<[1], [0], [0], [1], [0, 0, 1, 1], [], []>} : vector<8x128xf32>, vector<128x8xf32>, vector<8x8xf32> -> vector<8x8xf32>
    %c176 = arith.constant 176 : index
    %c0_71 = arith.constant 0 : index
    %252 = vector.load %arg3[%c176, %c0_71] : memref<288x128xf32, #tpu.memory_space<vmem>>, vector<8x128xf32>
    %253 = arith.truncf %251 : vector<8x8xf32> to vector<8x8xbf16>
    %254 = arith.truncf %252 : vector<8x128xf32> to vector<8x128xbf16>
    %cst_72 = arith.constant dense<0.000000e+00> : vector<8x128xf32>
    %255 = tpu.matmul %253, %254, %cst_72 {dimension_numbers = #tpu.dot_dimension_numbers<[1], [0], [0], [1], [0, 0, 1, 1], [], []>} : vector<8x8xbf16>, vector<8x128xbf16>, vector<8x128xf32> -> vector<8x128xf32>
    %256 = arith.addf %245, %255 : vector<8x128xf32>
    %257 = vector.extract_strided_slice %0 {offsets = [0, 23], sizes = [8, 1], strides = [1, 1]} : vector<8x36xi32> to vector<8x1xi32>
    %258 = vector.broadcast %257 : vector<8x1xi32> to vector<8x128xi32>
    %259 = arith.cmpi eq, %258, %2 : vector<8x128xi32>
    %260 = arith.extui %259 : vector<8x128xi1> to vector<8x128xi32>
    %261 = arith.sitofp %260 : vector<8x128xi32> to vector<8x128xf32>
    %cst_73 = arith.constant dense<0.000000e+00> : vector<8x8xf32>
    %262 = tpu.matmul %261, %1, %cst_73 {dimension_numbers = #tpu.dot_dimension_numbers<[1], [0], [0], [1], [0, 0, 1, 1], [], []>} : vector<8x128xf32>, vector<128x8xf32>, vector<8x8xf32> -> vector<8x8xf32>
    %c184 = arith.constant 184 : index
    %c0_74 = arith.constant 0 : index
    %263 = vector.load %arg3[%c184, %c0_74] : memref<288x128xf32, #tpu.memory_space<vmem>>, vector<8x128xf32>
    %264 = arith.truncf %262 : vector<8x8xf32> to vector<8x8xbf16>
    %265 = arith.truncf %263 : vector<8x128xf32> to vector<8x128xbf16>
    %cst_75 = arith.constant dense<0.000000e+00> : vector<8x128xf32>
    %266 = tpu.matmul %264, %265, %cst_75 {dimension_numbers = #tpu.dot_dimension_numbers<[1], [0], [0], [1], [0, 0, 1, 1], [], []>} : vector<8x8xbf16>, vector<8x128xbf16>, vector<8x128xf32> -> vector<8x128xf32>
    %267 = arith.addf %256, %266 : vector<8x128xf32>
    %268 = vector.extract_strided_slice %0 {offsets = [0, 24], sizes = [8, 1], strides = [1, 1]} : vector<8x36xi32> to vector<8x1xi32>
    %269 = vector.broadcast %268 : vector<8x1xi32> to vector<8x128xi32>
    %270 = arith.cmpi eq, %269, %2 : vector<8x128xi32>
    %271 = arith.extui %270 : vector<8x128xi1> to vector<8x128xi32>
    %272 = arith.sitofp %271 : vector<8x128xi32> to vector<8x128xf32>
    %cst_76 = arith.constant dense<0.000000e+00> : vector<8x8xf32>
    %273 = tpu.matmul %272, %1, %cst_76 {dimension_numbers = #tpu.dot_dimension_numbers<[1], [0], [0], [1], [0, 0, 1, 1], [], []>} : vector<8x128xf32>, vector<128x8xf32>, vector<8x8xf32> -> vector<8x8xf32>
    %c192 = arith.constant 192 : index
    %c0_77 = arith.constant 0 : index
    %274 = vector.load %arg3[%c192, %c0_77] : memref<288x128xf32, #tpu.memory_space<vmem>>, vector<8x128xf32>
    %275 = arith.truncf %273 : vector<8x8xf32> to vector<8x8xbf16>
    %276 = arith.truncf %274 : vector<8x128xf32> to vector<8x128xbf16>
    %cst_78 = arith.constant dense<0.000000e+00> : vector<8x128xf32>
    %277 = tpu.matmul %275, %276, %cst_78 {dimension_numbers = #tpu.dot_dimension_numbers<[1], [0], [0], [1], [0, 0, 1, 1], [], []>} : vector<8x8xbf16>, vector<8x128xbf16>, vector<8x128xf32> -> vector<8x128xf32>
    %278 = arith.addf %267, %277 : vector<8x128xf32>
    %279 = vector.extract_strided_slice %0 {offsets = [0, 25], sizes = [8, 1], strides = [1, 1]} : vector<8x36xi32> to vector<8x1xi32>
    %280 = vector.broadcast %279 : vector<8x1xi32> to vector<8x128xi32>
    %281 = arith.cmpi eq, %280, %2 : vector<8x128xi32>
    %282 = arith.extui %281 : vector<8x128xi1> to vector<8x128xi32>
    %283 = arith.sitofp %282 : vector<8x128xi32> to vector<8x128xf32>
    %cst_79 = arith.constant dense<0.000000e+00> : vector<8x8xf32>
    %284 = tpu.matmul %283, %1, %cst_79 {dimension_numbers = #tpu.dot_dimension_numbers<[1], [0], [0], [1], [0, 0, 1, 1], [], []>} : vector<8x128xf32>, vector<128x8xf32>, vector<8x8xf32> -> vector<8x8xf32>
    %c200 = arith.constant 200 : index
    %c0_80 = arith.constant 0 : index
    %285 = vector.load %arg3[%c200, %c0_80] : memref<288x128xf32, #tpu.memory_space<vmem>>, vector<8x128xf32>
    %286 = arith.truncf %284 : vector<8x8xf32> to vector<8x8xbf16>
    %287 = arith.truncf %285 : vector<8x128xf32> to vector<8x128xbf16>
    %cst_81 = arith.constant dense<0.000000e+00> : vector<8x128xf32>
    %288 = tpu.matmul %286, %287, %cst_81 {dimension_numbers = #tpu.dot_dimension_numbers<[1], [0], [0], [1], [0, 0, 1, 1], [], []>} : vector<8x8xbf16>, vector<8x128xbf16>, vector<8x128xf32> -> vector<8x128xf32>
    %289 = arith.addf %278, %288 : vector<8x128xf32>
    %290 = vector.extract_strided_slice %0 {offsets = [0, 26], sizes = [8, 1], strides = [1, 1]} : vector<8x36xi32> to vector<8x1xi32>
    %291 = vector.broadcast %290 : vector<8x1xi32> to vector<8x128xi32>
    %292 = arith.cmpi eq, %291, %2 : vector<8x128xi32>
    %293 = arith.extui %292 : vector<8x128xi1> to vector<8x128xi32>
    %294 = arith.sitofp %293 : vector<8x128xi32> to vector<8x128xf32>
    %cst_82 = arith.constant dense<0.000000e+00> : vector<8x8xf32>
    %295 = tpu.matmul %294, %1, %cst_82 {dimension_numbers = #tpu.dot_dimension_numbers<[1], [0], [0], [1], [0, 0, 1, 1], [], []>} : vector<8x128xf32>, vector<128x8xf32>, vector<8x8xf32> -> vector<8x8xf32>
    %c208 = arith.constant 208 : index
    %c0_83 = arith.constant 0 : index
    %296 = vector.load %arg3[%c208, %c0_83] : memref<288x128xf32, #tpu.memory_space<vmem>>, vector<8x128xf32>
    %297 = arith.truncf %295 : vector<8x8xf32> to vector<8x8xbf16>
    %298 = arith.truncf %296 : vector<8x128xf32> to vector<8x128xbf16>
    %cst_84 = arith.constant dense<0.000000e+00> : vector<8x128xf32>
    %299 = tpu.matmul %297, %298, %cst_84 {dimension_numbers = #tpu.dot_dimension_numbers<[1], [0], [0], [1], [0, 0, 1, 1], [], []>} : vector<8x8xbf16>, vector<8x128xbf16>, vector<8x128xf32> -> vector<8x128xf32>
    %300 = arith.addf %289, %299 : vector<8x128xf32>
    %301 = vector.extract_strided_slice %0 {offsets = [0, 27], sizes = [8, 1], strides = [1, 1]} : vector<8x36xi32> to vector<8x1xi32>
    %302 = vector.broadcast %301 : vector<8x1xi32> to vector<8x128xi32>
    %303 = arith.cmpi eq, %302, %2 : vector<8x128xi32>
    %304 = arith.extui %303 : vector<8x128xi1> to vector<8x128xi32>
    %305 = arith.sitofp %304 : vector<8x128xi32> to vector<8x128xf32>
    %cst_85 = arith.constant dense<0.000000e+00> : vector<8x8xf32>
    %306 = tpu.matmul %305, %1, %cst_85 {dimension_numbers = #tpu.dot_dimension_numbers<[1], [0], [0], [1], [0, 0, 1, 1], [], []>} : vector<8x128xf32>, vector<128x8xf32>, vector<8x8xf32> -> vector<8x8xf32>
    %c216 = arith.constant 216 : index
    %c0_86 = arith.constant 0 : index
    %307 = vector.load %arg3[%c216, %c0_86] : memref<288x128xf32, #tpu.memory_space<vmem>>, vector<8x128xf32>
    %308 = arith.truncf %306 : vector<8x8xf32> to vector<8x8xbf16>
    %309 = arith.truncf %307 : vector<8x128xf32> to vector<8x128xbf16>
    %cst_87 = arith.constant dense<0.000000e+00> : vector<8x128xf32>
    %310 = tpu.matmul %308, %309, %cst_87 {dimension_numbers = #tpu.dot_dimension_numbers<[1], [0], [0], [1], [0, 0, 1, 1], [], []>} : vector<8x8xbf16>, vector<8x128xbf16>, vector<8x128xf32> -> vector<8x128xf32>
    %311 = arith.addf %300, %310 : vector<8x128xf32>
    %312 = vector.extract_strided_slice %0 {offsets = [0, 28], sizes = [8, 1], strides = [1, 1]} : vector<8x36xi32> to vector<8x1xi32>
    %313 = vector.broadcast %312 : vector<8x1xi32> to vector<8x128xi32>
    %314 = arith.cmpi eq, %313, %2 : vector<8x128xi32>
    %315 = arith.extui %314 : vector<8x128xi1> to vector<8x128xi32>
    %316 = arith.sitofp %315 : vector<8x128xi32> to vector<8x128xf32>
    %cst_88 = arith.constant dense<0.000000e+00> : vector<8x8xf32>
    %317 = tpu.matmul %316, %1, %cst_88 {dimension_numbers = #tpu.dot_dimension_numbers<[1], [0], [0], [1], [0, 0, 1, 1], [], []>} : vector<8x128xf32>, vector<128x8xf32>, vector<8x8xf32> -> vector<8x8xf32>
    %c224 = arith.constant 224 : index
    %c0_89 = arith.constant 0 : index
    %318 = vector.load %arg3[%c224, %c0_89] : memref<288x128xf32, #tpu.memory_space<vmem>>, vector<8x128xf32>
    %319 = arith.truncf %317 : vector<8x8xf32> to vector<8x8xbf16>
    %320 = arith.truncf %318 : vector<8x128xf32> to vector<8x128xbf16>
    %cst_90 = arith.constant dense<0.000000e+00> : vector<8x128xf32>
    %321 = tpu.matmul %319, %320, %cst_90 {dimension_numbers = #tpu.dot_dimension_numbers<[1], [0], [0], [1], [0, 0, 1, 1], [], []>} : vector<8x8xbf16>, vector<8x128xbf16>, vector<8x128xf32> -> vector<8x128xf32>
    %322 = arith.addf %311, %321 : vector<8x128xf32>
    %323 = vector.extract_strided_slice %0 {offsets = [0, 29], sizes = [8, 1], strides = [1, 1]} : vector<8x36xi32> to vector<8x1xi32>
    %324 = vector.broadcast %323 : vector<8x1xi32> to vector<8x128xi32>
    %325 = arith.cmpi eq, %324, %2 : vector<8x128xi32>
    %326 = arith.extui %325 : vector<8x128xi1> to vector<8x128xi32>
    %327 = arith.sitofp %326 : vector<8x128xi32> to vector<8x128xf32>
    %cst_91 = arith.constant dense<0.000000e+00> : vector<8x8xf32>
    %328 = tpu.matmul %327, %1, %cst_91 {dimension_numbers = #tpu.dot_dimension_numbers<[1], [0], [0], [1], [0, 0, 1, 1], [], []>} : vector<8x128xf32>, vector<128x8xf32>, vector<8x8xf32> -> vector<8x8xf32>
    %c232 = arith.constant 232 : index
    %c0_92 = arith.constant 0 : index
    %329 = vector.load %arg3[%c232, %c0_92] : memref<288x128xf32, #tpu.memory_space<vmem>>, vector<8x128xf32>
    %330 = arith.truncf %328 : vector<8x8xf32> to vector<8x8xbf16>
    %331 = arith.truncf %329 : vector<8x128xf32> to vector<8x128xbf16>
    %cst_93 = arith.constant dense<0.000000e+00> : vector<8x128xf32>
    %332 = tpu.matmul %330, %331, %cst_93 {dimension_numbers = #tpu.dot_dimension_numbers<[1], [0], [0], [1], [0, 0, 1, 1], [], []>} : vector<8x8xbf16>, vector<8x128xbf16>, vector<8x128xf32> -> vector<8x128xf32>
    %333 = arith.addf %322, %332 : vector<8x128xf32>
    %334 = vector.extract_strided_slice %0 {offsets = [0, 30], sizes = [8, 1], strides = [1, 1]} : vector<8x36xi32> to vector<8x1xi32>
    %335 = vector.broadcast %334 : vector<8x1xi32> to vector<8x128xi32>
    %336 = arith.cmpi eq, %335, %2 : vector<8x128xi32>
    %337 = arith.extui %336 : vector<8x128xi1> to vector<8x128xi32>
    %338 = arith.sitofp %337 : vector<8x128xi32> to vector<8x128xf32>
    %cst_94 = arith.constant dense<0.000000e+00> : vector<8x8xf32>
    %339 = tpu.matmul %338, %1, %cst_94 {dimension_numbers = #tpu.dot_dimension_numbers<[1], [0], [0], [1], [0, 0, 1, 1], [], []>} : vector<8x128xf32>, vector<128x8xf32>, vector<8x8xf32> -> vector<8x8xf32>
    %c240 = arith.constant 240 : index
    %c0_95 = arith.constant 0 : index
    %340 = vector.load %arg3[%c240, %c0_95] : memref<288x128xf32, #tpu.memory_space<vmem>>, vector<8x128xf32>
    %341 = arith.truncf %339 : vector<8x8xf32> to vector<8x8xbf16>
    %342 = arith.truncf %340 : vector<8x128xf32> to vector<8x128xbf16>
    %cst_96 = arith.constant dense<0.000000e+00> : vector<8x128xf32>
    %343 = tpu.matmul %341, %342, %cst_96 {dimension_numbers = #tpu.dot_dimension_numbers<[1], [0], [0], [1], [0, 0, 1, 1], [], []>} : vector<8x8xbf16>, vector<8x128xbf16>, vector<8x128xf32> -> vector<8x128xf32>
    %344 = arith.addf %333, %343 : vector<8x128xf32>
    %345 = vector.extract_strided_slice %0 {offsets = [0, 31], sizes = [8, 1], strides = [1, 1]} : vector<8x36xi32> to vector<8x1xi32>
    %346 = vector.broadcast %345 : vector<8x1xi32> to vector<8x128xi32>
    %347 = arith.cmpi eq, %346, %2 : vector<8x128xi32>
    %348 = arith.extui %347 : vector<8x128xi1> to vector<8x128xi32>
    %349 = arith.sitofp %348 : vector<8x128xi32> to vector<8x128xf32>
    %cst_97 = arith.constant dense<0.000000e+00> : vector<8x8xf32>
    %350 = tpu.matmul %349, %1, %cst_97 {dimension_numbers = #tpu.dot_dimension_numbers<[1], [0], [0], [1], [0, 0, 1, 1], [], []>} : vector<8x128xf32>, vector<128x8xf32>, vector<8x8xf32> -> vector<8x8xf32>
    %c248 = arith.constant 248 : index
    %c0_98 = arith.constant 0 : index
    %351 = vector.load %arg3[%c248, %c0_98] : memref<288x128xf32, #tpu.memory_space<vmem>>, vector<8x128xf32>
    %352 = arith.truncf %350 : vector<8x8xf32> to vector<8x8xbf16>
    %353 = arith.truncf %351 : vector<8x128xf32> to vector<8x128xbf16>
    %cst_99 = arith.constant dense<0.000000e+00> : vector<8x128xf32>
    %354 = tpu.matmul %352, %353, %cst_99 {dimension_numbers = #tpu.dot_dimension_numbers<[1], [0], [0], [1], [0, 0, 1, 1], [], []>} : vector<8x8xbf16>, vector<8x128xbf16>, vector<8x128xf32> -> vector<8x128xf32>
    %355 = arith.addf %344, %354 : vector<8x128xf32>
    %356 = vector.extract_strided_slice %0 {offsets = [0, 32], sizes = [8, 1], strides = [1, 1]} : vector<8x36xi32> to vector<8x1xi32>
    %357 = vector.broadcast %356 : vector<8x1xi32> to vector<8x128xi32>
    %358 = arith.cmpi eq, %357, %2 : vector<8x128xi32>
    %359 = arith.extui %358 : vector<8x128xi1> to vector<8x128xi32>
    %360 = arith.sitofp %359 : vector<8x128xi32> to vector<8x128xf32>
    %cst_100 = arith.constant dense<0.000000e+00> : vector<8x8xf32>
    %361 = tpu.matmul %360, %1, %cst_100 {dimension_numbers = #tpu.dot_dimension_numbers<[1], [0], [0], [1], [0, 0, 1, 1], [], []>} : vector<8x128xf32>, vector<128x8xf32>, vector<8x8xf32> -> vector<8x8xf32>
    %c256 = arith.constant 256 : index
    %c0_101 = arith.constant 0 : index
    %362 = vector.load %arg3[%c256, %c0_101] : memref<288x128xf32, #tpu.memory_space<vmem>>, vector<8x128xf32>
    %363 = arith.truncf %361 : vector<8x8xf32> to vector<8x8xbf16>
    %364 = arith.truncf %362 : vector<8x128xf32> to vector<8x128xbf16>
    %cst_102 = arith.constant dense<0.000000e+00> : vector<8x128xf32>
    %365 = tpu.matmul %363, %364, %cst_102 {dimension_numbers = #tpu.dot_dimension_numbers<[1], [0], [0], [1], [0, 0, 1, 1], [], []>} : vector<8x8xbf16>, vector<8x128xbf16>, vector<8x128xf32> -> vector<8x128xf32>
    %366 = arith.addf %355, %365 : vector<8x128xf32>
    %367 = vector.extract_strided_slice %0 {offsets = [0, 33], sizes = [8, 1], strides = [1, 1]} : vector<8x36xi32> to vector<8x1xi32>
    %368 = vector.broadcast %367 : vector<8x1xi32> to vector<8x128xi32>
    %369 = arith.cmpi eq, %368, %2 : vector<8x128xi32>
    %370 = arith.extui %369 : vector<8x128xi1> to vector<8x128xi32>
    %371 = arith.sitofp %370 : vector<8x128xi32> to vector<8x128xf32>
    %cst_103 = arith.constant dense<0.000000e+00> : vector<8x8xf32>
    %372 = tpu.matmul %371, %1, %cst_103 {dimension_numbers = #tpu.dot_dimension_numbers<[1], [0], [0], [1], [0, 0, 1, 1], [], []>} : vector<8x128xf32>, vector<128x8xf32>, vector<8x8xf32> -> vector<8x8xf32>
    %c264 = arith.constant 264 : index
    %c0_104 = arith.constant 0 : index
    %373 = vector.load %arg3[%c264, %c0_104] : memref<288x128xf32, #tpu.memory_space<vmem>>, vector<8x128xf32>
    %374 = arith.truncf %372 : vector<8x8xf32> to vector<8x8xbf16>
    %375 = arith.truncf %373 : vector<8x128xf32> to vector<8x128xbf16>
    %cst_105 = arith.constant dense<0.000000e+00> : vector<8x128xf32>
    %376 = tpu.matmul %374, %375, %cst_105 {dimension_numbers = #tpu.dot_dimension_numbers<[1], [0], [0], [1], [0, 0, 1, 1], [], []>} : vector<8x8xbf16>, vector<8x128xbf16>, vector<8x128xf32> -> vector<8x128xf32>
    %377 = arith.addf %366, %376 : vector<8x128xf32>
    %378 = vector.extract_strided_slice %0 {offsets = [0, 34], sizes = [8, 1], strides = [1, 1]} : vector<8x36xi32> to vector<8x1xi32>
    %379 = vector.broadcast %378 : vector<8x1xi32> to vector<8x128xi32>
    %380 = arith.cmpi eq, %379, %2 : vector<8x128xi32>
    %381 = arith.extui %380 : vector<8x128xi1> to vector<8x128xi32>
    %382 = arith.sitofp %381 : vector<8x128xi32> to vector<8x128xf32>
    %cst_106 = arith.constant dense<0.000000e+00> : vector<8x8xf32>
    %383 = tpu.matmul %382, %1, %cst_106 {dimension_numbers = #tpu.dot_dimension_numbers<[1], [0], [0], [1], [0, 0, 1, 1], [], []>} : vector<8x128xf32>, vector<128x8xf32>, vector<8x8xf32> -> vector<8x8xf32>
    %c272 = arith.constant 272 : index
    %c0_107 = arith.constant 0 : index
    %384 = vector.load %arg3[%c272, %c0_107] : memref<288x128xf32, #tpu.memory_space<vmem>>, vector<8x128xf32>
    %385 = arith.truncf %383 : vector<8x8xf32> to vector<8x8xbf16>
    %386 = arith.truncf %384 : vector<8x128xf32> to vector<8x128xbf16>
    %cst_108 = arith.constant dense<0.000000e+00> : vector<8x128xf32>
    %387 = tpu.matmul %385, %386, %cst_108 {dimension_numbers = #tpu.dot_dimension_numbers<[1], [0], [0], [1], [0, 0, 1, 1], [], []>} : vector<8x8xbf16>, vector<8x128xbf16>, vector<8x128xf32> -> vector<8x128xf32>
    %388 = arith.addf %377, %387 : vector<8x128xf32>
    %389 = vector.extract_strided_slice %0 {offsets = [0, 35], sizes = [8, 1], strides = [1, 1]} : vector<8x36xi32> to vector<8x1xi32>
    %390 = vector.broadcast %389 : vector<8x1xi32> to vector<8x128xi32>
    %391 = arith.cmpi eq, %390, %2 : vector<8x128xi32>
    %392 = arith.extui %391 : vector<8x128xi1> to vector<8x128xi32>
    %393 = arith.sitofp %392 : vector<8x128xi32> to vector<8x128xf32>
    %cst_109 = arith.constant dense<0.000000e+00> : vector<8x8xf32>
    %394 = tpu.matmul %393, %1, %cst_109 {dimension_numbers = #tpu.dot_dimension_numbers<[1], [0], [0], [1], [0, 0, 1, 1], [], []>} : vector<8x128xf32>, vector<128x8xf32>, vector<8x8xf32> -> vector<8x8xf32>
    %c280 = arith.constant 280 : index
    %c0_110 = arith.constant 0 : index
    %395 = vector.load %arg3[%c280, %c0_110] : memref<288x128xf32, #tpu.memory_space<vmem>>, vector<8x128xf32>
    %396 = arith.truncf %394 : vector<8x8xf32> to vector<8x8xbf16>
    %397 = arith.truncf %395 : vector<8x128xf32> to vector<8x128xbf16>
    %cst_111 = arith.constant dense<0.000000e+00> : vector<8x128xf32>
    %398 = tpu.matmul %396, %397, %cst_111 {dimension_numbers = #tpu.dot_dimension_numbers<[1], [0], [0], [1], [0, 0, 1, 1], [], []>} : vector<8x8xbf16>, vector<8x128xbf16>, vector<8x128xf32> -> vector<8x128xf32>
    %399 = arith.addf %388, %398 : vector<8x128xf32>
    %c0_112 = arith.constant 0 : index
    %c0_113 = arith.constant 0 : index
    %400 = vector.load %arg4[%c0_112, %c0_113] : memref<1x128xf32, #tpu.memory_space<vmem>>, vector<1x128xf32>
    %401 = vector.broadcast %400 : vector<1x128xf32> to vector<8x128xf32>
    %402 = arith.addf %399, %401 : vector<8x128xf32>
    %cst_114 = arith.constant 0.000000e+00 : f32
    %403 = vector.broadcast %cst_114 : f32 to vector<8x128xf32>
    %404 = arith.maximumf %402, %403 : vector<8x128xf32>
    %405 = arith.truncf %404 : vector<8x128xf32> to vector<8x128xbf16>
    %c0_115 = arith.constant 0 : index
    %c0_116 = arith.constant 0 : index
    %406 = vector.load %arg5[%c0_115, %c0_116] : memref<128x128xf32, #tpu.memory_space<vmem>>, vector<128x128xf32>
    %407 = arith.truncf %406 : vector<128x128xf32> to vector<128x128xbf16>
    %cst_117 = arith.constant dense<0.000000e+00> : vector<8x128xf32>
    %408 = tpu.matmul %405, %407, %cst_117 {dimension_numbers = #tpu.dot_dimension_numbers<[1], [0], [0], [1], [0, 0, 1, 1], [], []>} : vector<8x128xbf16>, vector<128x128xbf16>, vector<8x128xf32> -> vector<8x128xf32>
    %c0_118 = arith.constant 0 : index
    %c0_119 = arith.constant 0 : index
    %409 = vector.load %arg6[%c0_118, %c0_119] : memref<1x128xf32, #tpu.memory_space<vmem>>, vector<1x128xf32>
    %410 = vector.broadcast %409 : vector<1x128xf32> to vector<8x128xf32>
    %411 = arith.addf %408, %410 : vector<8x128xf32>
    %c0_120 = arith.constant 0 : index
    %c0_121 = arith.constant 0 : index
    %412 = vector.load %arg7[%c0_120, %c0_121] : memref<8x128xf32, #tpu.memory_space<vmem>>, vector<8x128xf32>
    tpu.vector_store %arg7[%c0_120, %c0_121], %411 {strides = array<i32>} : memref<8x128xf32, #tpu.memory_space<vmem>>, vector<8x128xf32>,
    return
  }
  func.func @transform_0(%arg0: i32) -> (i32, i32) {
    %c0_i32 = arith.constant 0 : i32
    %c0_i32_0 = arith.constant 0 : i32
    return %arg0, %c0_i32 : i32, i32
  }
  func.func @transform_1(%arg0: i32) -> (i32, i32) {
    %c0_i32 = arith.constant 0 : i32
    %c0_i32_0 = arith.constant 0 : i32
    %c0_i32_1 = arith.constant 0 : i32
    return %c0_i32, %c0_i32_0 : i32, i32
  }
  func.func @transform_2(%arg0: i32) -> (i32, i32) {
    %c0_i32 = arith.constant 0 : i32
    %c0_i32_0 = arith.constant 0 : i32
    %c0_i32_1 = arith.constant 0 : i32
    return %c0_i32, %c0_i32_0 : i32, i32
  }
  func.func @transform_3(%arg0: i32) -> (i32, i32) {
    %c0_i32 = arith.constant 0 : i32
    %c0_i32_0 = arith.constant 0 : i32
    %c0_i32_1 = arith.constant 0 : i32
    return %c0_i32, %c0_i32_0 : i32, i32
  }
  func.func @transform_4(%arg0: i32) -> (i32, i32) {
    %c0_i32 = arith.constant 0 : i32
    %c0_i32_0 = arith.constant 0 : i32
    %c0_i32_1 = arith.constant 0 : i32
    return %c0_i32, %c0_i32_0 : i32, i32
  }
  func.func @transform_5(%arg0: i32) -> (i32, i32) {
    %c0_i32 = arith.constant 0 : i32
    %c0_i32_0 = arith.constant 0 : i32
    %c0_i32_1 = arith.constant 0 : i32
    return %c0_i32, %c0_i32_0 : i32, i32
  }
  func.func @transform_6(%arg0: i32) -> (i32, i32) {
    %c0_i32 = arith.constant 0 : i32
    %c0_i32_0 = arith.constant 0 : i32
    return %arg0, %c0_i32 : i32, i32
  }
}

</mosaic_0001>

<llo_original>
// kernel: tpu_custom_call.1
$region0: #{tpu_custom_call.1}
  #allocation0 [shape = 'u32[]', space=smem, size = 0x4, offset = 0x4, fixed_abs, tag = 'smem constant byte address 0x4 - core index']
  #allocation1 [shape = 'u32[144,128]{1,0:T(1,128)}', space=vmem, size = 0x12000, scoped, tag = 'internal scratch']
  %s0 = inlined_call_operand.vmem [shape: s32[8,36], index: 0, kind: input, shape index: {}]
  %s1 = inlined_call_operand.vmem [shape: f32[128,8], index: 1, kind: input, shape index: {}]
  %s2 = inlined_call_operand.hbm [shape: f32[288,128], index: 2, kind: input, shape index: {}]
  %s3 = inlined_call_operand.vmem [shape: f32[1,128], index: 3, kind: input, shape index: {}]
  %s4 = inlined_call_operand.vmem [shape: f32[128,128], index: 4, kind: input, shape index: {}]
  %s5 = inlined_call_operand.vmem [shape: f32[1,128], index: 5, kind: input, shape index: {}]
  %s6 = inlined_call_operand.hbm [shape: f32[8,128], index: 6, kind: output, shape index: {}]
  %s7 = sld [smem:[#allocation0]]
  $region38: #{tpu_custom_call.1} parent=0
    _
  %s9 = ssub.s32 1, %s7
  %s10 = scalar_select 0, %s9, %s7
  $region1: #{tpu_custom_call.1} parent=0
    #allocation2 [shape = 'u8[147456]{0}', space=vmem, size = 0x24000, scoped, tag = 'input window, operand 2, single buffered']
    #allocation3 [shape = 's32[1]{0}', space=sflag, size = 0x4, scoped, tag = 'scoped memory for tpu_custom_call.1']
    #allocation4 [shape = 's32[1]{0}', space=sflag, size = 0x4, scoped, tag = 'scoped memory for tpu_custom_call.1']
    #allocation5 [shape = 'u8[4096]{0}', space=vmem, size = 0x1000, scoped, tag = 'output window, operand 0, single buffered']
    %11 = vsyncpa [#allocation3], 0
    %12 = vsyncpa [#allocation4], 0
    // Predicated region
    $region2: #{tpu_custom_call.1} parent=1 // pred_check
      _
    $region3: #{tpu_custom_call.1} parent=1 // pred_check_branch
      %14 = sbr.rel (0) target = $region5
    $region4: #{tpu_custom_call.1} parent=1 // pred_region
      _
    $region5: #{tpu_custom_call.1} parent=1 // pred_fallthru
      _
    // Predicated region
    $region6: #{tpu_custom_call.1} parent=1 // pred_check
      _
    $region7: #{tpu_custom_call.1} parent=1 // pred_check_branch
      %16 = sbr.rel (0) target = $region9
    $region8: #{tpu_custom_call.1} parent=1 // pred_region
      _
    $region9: #{tpu_custom_call.1} parent=1 // pred_fallthru
      _
    // Predicated region
    $region10: #{tpu_custom_call.1} parent=1 // pred_check
      _
    $region11: #{tpu_custom_call.1} parent=1 // pred_check_branch
      %18 = sbr.rel (0) target = $region13
    $region12: #{tpu_custom_call.1} parent=1 // pred_region
      %s20 = ssub.s32 4608, 4608
      %21 = vsyncadd [#allocation3], %s20
      %s22 = sshll.u32 [#allocation2], 4
      %s23 = int_to_ptr.vmem [resolvable:$true] %s22
      %28 = dma.hbm_to_vmem [thread:$0]  %s2, 4608, %s23, [#allocation3], 128, 128, 8
    $region13: #{tpu_custom_call.1} parent=1 // pred_fallthru
      _
    // Predicated region
    $region14: #{tpu_custom_call.1} parent=1 // pred_check
      _
    $region15: #{tpu_custom_call.1} parent=1 // pred_check_branch
      %30 = sbr.rel (0) target = $region17
    $region16: #{tpu_custom_call.1} parent=1 // pred_region
      _
    $region17: #{tpu_custom_call.1} parent=1 // pred_fallthru
      _
    // Predicated region
    $region18: #{tpu_custom_call.1} parent=1 // pred_check
      _
    $region19: #{tpu_custom_call.1} parent=1 // pred_check_branch
      %32 = sbr.rel (0) target = $region21
    $region20: #{tpu_custom_call.1} parent=1 // pred_region
      _
    $region21: #{tpu_custom_call.1} parent=1 // pred_fallthru
      _
    // Predicated region
    $region22: #{tpu_custom_call.1} parent=1 // pred_check
      _
    $region23: #{tpu_custom_call.1} parent=1 // pred_check_branch
      %34 = sbr.rel (0) target = $region25
    $region24: #{tpu_custom_call.1} parent=1 // pred_region
      _
    $region25: #{tpu_custom_call.1} parent=1 // pred_fallthru
      _
    // Predicated region
    $region26: #{tpu_custom_call.1} parent=1 // pred_check
      _
    $region27: #{tpu_custom_call.1} parent=1 // pred_check_branch
      %36 = sbr.rel (0) target = $region29
    $region28: #{tpu_custom_call.1} parent=1 // pred_region
      %37 = dma.done [#allocation3], 4608
    $region29: #{tpu_custom_call.1} parent=1 // pred_fallthru
      _
    %v39 = vld [vmem:[%s0] sm:$0xff]
    %v40 = vld [vmem:[%s1] sm:$0xff]
    %v41 = vld [vmem:[%s1 + $0x8] sm:$0xff]
    %v42 = vld [vmem:[%s1 + $0x10] sm:$0xff]
    %v43 = vld [vmem:[%s1 + $0x18] sm:$0xff]
    %v44 = vld [vmem:[%s1 + $0x20] sm:$0xff]
    %v45 = vld [vmem:[%s1 + $0x28] sm:$0xff]
    %v46 = vld [vmem:[%s1 + $0x30] sm:$0xff]
    %v47 = vld [vmem:[%s1 + $0x38] sm:$0xff]
    %v48 = vld [vmem:[%s1 + $0x40] sm:$0xff]
    %v49 = vld [vmem:[%s1 + $0x48] sm:$0xff]
    %v50 = vld [vmem:[%s1 + $0x50] sm:$0xff]
    %v51 = vld [vmem:[%s1 + $0x58] sm:$0xff]
    %v52 = vld [vmem:[%s1 + $0x60] sm:$0xff]
    %v53 = vld [vmem:[%s1 + $0x68] sm:$0xff]
    %v54 = vld [vmem:[%s1 + $0x70] sm:$0xff]
    %v55 = vld [vmem:[%s1 + $0x78] sm:$0xff]
    %v56 = vlaneseq
    %v57 = vand.u32 %v56, 127
    %58 = vset.pattern.permute.xlu0 0
    %59 = vperm.xlu0 %58, %v39
    %v60 = vpop.permute.xlu0 %59
    %vm61 = vcmp.eq.s32.totalorder %v60, %v57
    %v62 = vsel %vm61, 1, 0
    %v63 = vcvt.s32.f32 %v62
    %64 = vmatprep.subr.mxu0 0.0
    %65 = vmatpush1.msra.mxu0 %v40
    %66 = vmatprep.subr.mxu0 0.0
    %67 = vmatpush1.msra.mxu0 %v41
    %68 = vmatprep.subr.mxu0 0.0
    %69 = vmatpush1.msra.mxu0 %v42
    %70 = vmatprep.subr.mxu0 0.0
    %71 = vmatpush1.msra.mxu0 %v43
    %72 = vmatprep.subr.mxu0 0.0
    %73 = vmatpush1.msra.mxu0 %v44
    %74 = vmatprep.subr.mxu0 0.0
    %75 = vmatpush1.msra.mxu0 %v45
    %76 = vmatprep.subr.mxu0 0.0
    %77 = vmatpush1.msra.mxu0 %v46
    %78 = vmatprep.subr.mxu0 0.0
    %79 = vmatpush1.msra.mxu0 %v47
    %80 = vmatprep.subr.mxu0 0.0
    %81 = vmatpush1.msra.mxu0 %v48
    %82 = vmatprep.subr.mxu0 0.0
    %83 = vmatpush1.msra.mxu0 %v49
    %84 = vmatprep.subr.mxu0 0.0
    %85 = vmatpush1.msra.mxu0 %v50
    %86 = vmatprep.subr.mxu0 0.0
    %87 = vmatpush1.msra.mxu0 %v51
    %88 = vmatprep.subr.mxu0 0.0
    %89 = vmatpush1.msra.mxu0 %v52
    %90 = vmatprep.subr.mxu0 0.0
    %91 = vmatpush1.msra.mxu0 %v53
    %92 = vmatprep.subr.mxu0 0.0
    %93 = vmatpush1.msra.mxu0 %v54
    %94 = vmatprep.subr.mxu0 0.0
    %95 = vmatpush1.msra.mxu0 %v55
    %96 = vmatprep.subr.mxu0 0.0
    %97 = vmatpush1.msra.mxu0 0.0
    %98 = vmatprep.subr.mxu0 0.0
    %99 = vmatpush1.msra.mxu0 0.0
    %100 = vmatprep.subr.mxu0 0.0
    %101 = vmatpush1.msra.mxu0 0.0
    %102 = vmatprep.subr.mxu0 0.0
    %103 = vmatpush1.msra.mxu0 0.0
    %104 = vmatprep.subr.mxu0 0.0
    %105 = vmatpush1.msra.mxu0 0.0
    %106 = vmatprep.subr.mxu0 0.0
    %107 = vmatpush1.msra.mxu0 0.0
    %108 = vmatprep.subr.mxu0 0.0
    %109 = vmatpush1.msra.mxu0 0.0
    %110 = vmatprep.subr.mxu0 0.0
    %111 = vmatpush1.msra.mxu0 0.0
    %112 = vmatprep.subr.mxu0 0.0
    %113 = vmatpush1.msra.mxu0 0.0
    %114 = vmatprep.subr.mxu0 0.0
    %115 = vmatpush1.msra.mxu0 0.0
    %116 = vmatprep.subr.mxu0 0.0
    %117 = vmatpush1.msra.mxu0 0.0
    %118 = vmatprep.subr.mxu0 0.0
    %119 = vmatpush1.msra.mxu0 0.0
    %120 = vmatprep.subr.mxu0 0.0
    %121 = vmatpush1.msra.mxu0 0.0
    %122 = vmatprep.subr.mxu0 0.0
    %123 = vmatpush1.msra.mxu0 0.0
    %124 = vmatprep.subr.mxu0 0.0
    %125 = vmatpush1.msra.mxu0 0.0
    %126 = vmatprep.subr.mxu0 0.0
    %127 = vmatpush1.msra.mxu0 0.0
    %128 = vmatprep.mubr.f32.mxu0 0.0
    %129 = vmatmul.mubr.f32.gmra.mrb[0].mxu0 %v63
    %v130 = vpop.f32.mrb[0].mxu0
    %v131 = vadd.f32 0.0, %v130
    %v132 = vpop.f32.mrb[0].mxu0
    %133 = vdwg.mxu0
    %v134 = vld [vmem:[#allocation2] sm:$0xff]
    %v135 = vpack.c.bf16 %v131, %v131
    %v136 = vpack.c.bf16 %v134, %v134
    %137 = vset.pattern.permute.xlu0 1
    %138 = vperm.xlu0 %137, %v39
    %v139 = vpop.permute.xlu0 %138
    %vm140 = vcmp.eq.s32.totalorder %v139, %v57
    %v141 = vsel %vm140, 1, 0
    %v142 = vcvt.s32.f32 %v141
    %143 = vmatprep.subr.mxu0 0.0
    %144 = vmatpush1.msra.mxu0 %v40
    %145 = vmatprep.subr.mxu0 0.0
    %146 = vmatpush1.msra.mxu0 %v41
    %147 = vmatprep.subr.mxu0 0.0
    %148 = vmatpush1.msra.mxu0 %v42
    %149 = vmatprep.subr.mxu0 0.0
    %150 = vmatpush1.msra.mxu0 %v43
    %151 = vmatprep.subr.mxu0 0.0
    %152 = vmatpush1.msra.mxu0 %v44
    %153 = vmatprep.subr.mxu0 0.0
    %154 = vmatpush1.msra.mxu0 %v45
    %155 = vmatprep.subr.mxu0 0.0
    %156 = vmatpush1.msra.mxu0 %v46
    %157 = vmatprep.subr.mxu0 0.0
    %158 = vmatpush1.msra.mxu0 %v47
    %159 = vmatprep.subr.mxu0 0.0
    %160 = vmatpush1.msra.mxu0 %v48
    %161 = vmatprep.subr.mxu0 0.0
    %162 = vmatpush1.msra.mxu0 %v49
    %163 = vmatprep.subr.mxu0 0.0
    %164 = vmatpush1.msra.mxu0 %v50
    %165 = vmatprep.subr.mxu0 0.0
    %166 = vmatpush1.msra.mxu0 %v51
    %167 = vmatprep.subr.mxu0 0.0
    %168 = vmatpush1.msra.mxu0 %v52
    %169 = vmatprep.subr.mxu0 0.0
    %170 = vmatpush1.msra.mxu0 %v53
    %171 = vmatprep.subr.mxu0 0.0
    %172 = vmatpush1.msra.mxu0 %v54
    %173 = vmatprep.subr.mxu0 0.0
    %174 = vmatpush1.msra.mxu0 %v55
    %175 = vmatprep.subr.mxu0 0.0
    %176 = vmatpush1.msra.mxu0 0.0
    %177 = vmatprep.subr.mxu0 0.0
    %178 = vmatpush1.msra.mxu0 0.0
    %179 = vmatprep.subr.mxu0 0.0
    %180 = vmatpush1.msra.mxu0 0.0
    %181 = vmatprep.subr.mxu0 0.0
    %182 = vmatpush1.msra.mxu0 0.0
    %183 = vmatprep.subr.mxu0 0.0
    %184 = vmatpush1.msra.mxu0 0.0
    %185 = vmatprep.subr.mxu0 0.0
    %186 = vmatpush1.msra.mxu0 0.0
    %187 = vmatprep.subr.mxu0 0.0
    %188 = vmatpush1.msra.mxu0 0.0
    %189 = vmatprep.subr.mxu0 0.0
    %190 = vmatpush1.msra.mxu0 0.0
    %191 = vmatprep.subr.mxu0 0.0
    %192 = vmatpush1.msra.mxu0 0.0
    %193 = vmatprep.subr.mxu0 0.0
    %194 = vmatpush1.msra.mxu0 0.0
    %195 = vmatprep.subr.mxu0 0.0
    %196 = vmatpush1.msra.mxu0 0.0
    %197 = vmatprep.subr.mxu0 0.0
    %198 = vmatpush1.msra.mxu0 0.0
    %199 = vmatprep.subr.mxu0 0.0
    %200 = vmatpush1.msra.mxu0 0.0
    %201 = vmatprep.subr.mxu0 0.0
    %202 = vmatpush1.msra.mxu0 0.0
    %203 = vmatprep.subr.mxu0 0.0
    %204 = vmatpush1.msra.mxu0 0.0
    %205 = vmatprep.subr.mxu0 0.0
    %206 = vmatpush1.msra.mxu0 0.0
    %207 = vmatprep.mubr.f32.mxu0 0.0
    %208 = vmatmul.mubr.f32.gmra.mrb[0].mxu0 %v142
    %v209 = vpop.f32.mrb[0].mxu0
    %v210 = vadd.f32 0.0, %v209
    %v211 = vpop.f32.mrb[0].mxu0
    %212 = vdwg.mxu0
    %v213 = vld [vmem:[#allocation2 + $0x8] sm:$0xff]
    %v214 = vpack.c.bf16 %v210, %v210
    %v215 = vpack.c.bf16 %v213, %v213
    %vm216 = vcmask 64512
    %v218 = vsel %vm216, %v214, 0
    %vm220 = vcmask 1043456
    %v222 = vsel %vm220, %v215, 0
    %224 = vmatprep.subr.bf16.mxu0 0
    %225 = vmatpush1.bf16.msra.mxu0 %v222
    %226 = vmatprep.subr.bf16.mxu0 0
    %227 = vmatpush1.bf16.msra.mxu0 0
    %228 = vmatprep.subr.bf16.mxu0 0
    %229 = vmatpush1.bf16.msra.mxu0 0
    %230 = vmatprep.subr.bf16.mxu0 0
    %231 = vmatpush1.bf16.msra.mxu0 0
    %232 = vmatprep.subr.bf16.mxu0 0
    %233 = vmatpush1.bf16.msra.mxu0 0
    %234 = vmatprep.subr.bf16.mxu0 0
    %235 = vmatpush1.bf16.msra.mxu0 0
    %236 = vmatprep.subr.bf16.mxu0 0
    %237 = vmatpush1.bf16.msra.mxu0 0
    %238 = vmatprep.subr.bf16.mxu0 0
    %239 = vmatpush1.bf16.msra.mxu0 0
    %240 = vmatprep.subr.bf16.mxu0 0
    %241 = vmatpush1.bf16.msra.mxu0 0
    %242 = vmatprep.subr.bf16.mxu0 0
    %243 = vmatpush1.bf16.msra.mxu0 0
    %244 = vmatprep.subr.bf16.mxu0 0
    %245 = vmatpush1.bf16.msra.mxu0 0
    %246 = vmatprep.subr.bf16.mxu0 0
    %247 = vmatpush1.bf16.msra.mxu0 0
    %248 = vmatprep.subr.bf16.mxu0 0
    %249 = vmatpush1.bf16.msra.mxu0 0
    %250 = vmatprep.subr.bf16.mxu0 0
    %251 = vmatpush1.bf16.msra.mxu0 0
    %252 = vmatprep.subr.bf16.mxu0 0
    %253 = vmatpush1.bf16.msra.mxu0 0
    %254 = vmatprep.subr.bf16.mxu0 0
    %255 = vmatpush1.bf16.msra.mxu0 0
    %256 = vmatprep.mubr.bf16.mxu0 0
    %257 = vmatmul.mubr.bf16.gmra.mrb[0].mxu0 %v218
    %v258 = vpop.f32.mrb[0].mxu0
    %v259 = vadd.f32 0.0, %v258
    %v260 = vpop.f32.mrb[0].mxu0
    %v261 = vpop.f32.mrb[0].mxu0
    %v262 = vpop.f32.mrb[0].mxu0
    %263 = vdwg.mxu0
    %v265 = vsel %vm216, %v135, 0
    %v268 = vsel %vm220, %v136, 0
    %270 = vmatprep.subr.bf16.mxu0 0
    %271 = vmatpush1.bf16.msra.mxu0 %v268
    %272 = vmatprep.subr.bf16.mxu0 0
    %273 = vmatpush1.bf16.msra.mxu0 0
    %274 = vmatprep.subr.bf16.mxu0 0
    %275 = vmatpush1.bf16.msra.mxu0 0
    %276 = vmatprep.subr.bf16.mxu0 0
    %277 = vmatpush1.bf16.msra.mxu0 0
    %278 = vmatprep.subr.bf16.mxu0 0
    %279 = vmatpush1.bf16.msra.mxu0 0
    %280 = vmatprep.subr.bf16.mxu0 0
    %281 = vmatpush1.bf16.msra.mxu0 0
    %282 = vmatprep.subr.bf16.mxu0 0
    %283 = vmatpush1.bf16.msra.mxu0 0
    %284 = vmatprep.subr.bf16.mxu0 0
    %285 = vmatpush1.bf16.msra.mxu0 0
    %286 = vmatprep.subr.bf16.mxu0 0
    %287 = vmatpush1.bf16.msra.mxu0 0
    %288 = vmatprep.subr.bf16.mxu0 0
    %289 = vmatpush1.bf16.msra.mxu0 0
    %290 = vmatprep.subr.bf16.mxu0 0
    %291 = vmatpush1.bf16.msra.mxu0 0
    %292 = vmatprep.subr.bf16.mxu0 0
    %293 = vmatpush1.bf16.msra.mxu0 0
    %294 = vmatprep.subr.bf16.mxu0 0
    %295 = vmatpush1.bf16.msra.mxu0 0
    %296 = vmatprep.subr.bf16.mxu0 0
    %297 = vmatpush1.bf16.msra.mxu0 0
    %298 = vmatprep.subr.bf16.mxu0 0
    %299 = vmatpush1.bf16.msra.mxu0 0
    %300 = vmatprep.subr.bf16.mxu0 0
    %301 = vmatpush1.bf16.msra.mxu0 0
    %302 = vmatprep.mubr.bf16.mxu0 0
    %303 = vmatmul.mubr.bf16.gmra.mrb[0].mxu0 %v265
    %v304 = vpop.f32.mrb[0].mxu0
    %v305 = vadd.f32 %v259, %v304
    %v306 = vpop.f32.mrb[0].mxu0
    %v307 = vpop.f32.mrb[0].mxu0
    %v308 = vpop.f32.mrb[0].mxu0
    %309 = vdwg.mxu0
    %310 = vset.pattern.permute.xlu0 2
    %311 = vperm.xlu0 %310, %v39
    %v312 = vpop.permute.xlu0 %311
    %vm313 = vcmp.eq.s32.totalorder %v312, %v57
    %v314 = vsel %vm313, 1, 0
    %v315 = vcvt.s32.f32 %v314
    %316 = vmatprep.subr.mxu0 0.0
    %317 = vmatpush1.msra.mxu0 %v40
    %318 = vmatprep.subr.mxu0 0.0
    %319 = vmatpush1.msra.mxu0 %v41
    %320 = vmatprep.subr.mxu0 0.0
    %321 = vmatpush1.msra.mxu0 %v42
    %322 = vmatprep.subr.mxu0 0.0
    %323 = vmatpush1.msra.mxu0 %v43
    %324 = vmatprep.subr.mxu0 0.0
    %325 = vmatpush1.msra.mxu0 %v44
    %326 = vmatprep.subr.mxu0 0.0
    %327 = vmatpush1.msra.mxu0 %v45
    %328 = vmatprep.subr.mxu0 0.0
    %329 = vmatpush1.msra.mxu0 %v46
    %330 = vmatprep.subr.mxu0 0.0
    %331 = vmatpush1.msra.mxu0 %v47
    %332 = vmatprep.subr.mxu0 0.0
    %333 = vmatpush1.msra.mxu0 %v48
    %334 = vmatprep.subr.mxu0 0.0
    %335 = vmatpush1.msra.mxu0 %v49
    %336 = vmatprep.subr.mxu0 0.0
    %337 = vmatpush1.msra.mxu0 %v50
    %338 = vmatprep.subr.mxu0 0.0
    %339 = vmatpush1.msra.mxu0 %v51
    %340 = vmatprep.subr.mxu0 0.0
    %341 = vmatpush1.msra.mxu0 %v52
    %342 = vmatprep.subr.mxu0 0.0
    %343 = vmatpush1.msra.mxu0 %v53
    %344 = vmatprep.subr.mxu0 0.0
    %345 = vmatpush1.msra.mxu0 %v54
    %346 = vmatprep.subr.mxu0 0.0
    %347 = vmatpush1.msra.mxu0 %v55
    %348 = vmatprep.subr.mxu0 0.0
    %349 = vmatpush1.msra.mxu0 0.0
    %350 = vmatprep.subr.mxu0 0.0
    %351 = vmatpush1.msra.mxu0 0.0
    %352 = vmatprep.subr.mxu0 0.0
    %353 = vmatpush1.msra.mxu0 0.0
    %354 = vmatprep.subr.mxu0 0.0
    %355 = vmatpush1.msra.mxu0 0.0
    %356 = vmatprep.subr.mxu0 0.0
    %357 = vmatpush1.msra.mxu0 0.0
    %358 = vmatprep.subr.mxu0 0.0
    %359 = vmatpush1.msra.mxu0 0.0
    %360 = vmatprep.subr.mxu0 0.0
    %361 = vmatpush1.msra.mxu0 0.0
    %362 = vmatprep.subr.mxu0 0.0
    %363 = vmatpush1.msra.mxu0 0.0
    %364 = vmatprep.subr.mxu0 0.0
    %365 = vmatpush1.msra.mxu0 0.0
    %366 = vmatprep.subr.mxu0 0.0
    %367 = vmatpush1.msra.mxu0 0.0
    %368 = vmatprep.subr.mxu0 0.0
    %369 = vmatpush1.msra.mxu0 0.0
    %370 = vmatprep.subr.mxu0 0.0
    %371 = vmatpush1.msra.mxu0 0.0
    %372 = vmatprep.subr.mxu0 0.0
    %373 = vmatpush1.msra.mxu0 0.0
    %374 = vmatprep.subr.mxu0 0.0
    %375 = vmatpush1.msra.mxu0 0.0
    %376 = vmatprep.subr.mxu0 0.0
    %377 = vmatpush1.msra.mxu0 0.0
    %378 = vmatprep.subr.mxu0 0.0
    %379 = vmatpush1.msra.mxu0 0.0
    %380 = vmatprep.mubr.f32.mxu0 0.0
    %381 = vmatmul.mubr.f32.gmra.mrb[0].mxu0 %v315
    %v382 = vpop.f32.mrb[0].mxu0
    %v383 = vadd.f32 0.0, %v382
    %v384 = vpop.f32.mrb[0].mxu0
    %385 = vdwg.mxu0
    %v386 = vld [vmem:[#allocation2 + $0x10] sm:$0xff]
    %v387 = vpack.c.bf16 %v383, %v383
    %v388 = vpack.c.bf16 %v386, %v386
    %v390 = vsel %vm216, %v387, 0
    %v393 = vsel %vm220, %v388, 0
    %395 = vmatprep.subr.bf16.mxu0 0
    %396 = vmatpush1.bf16.msra.mxu0 %v393
    %397 = vmatprep.subr.bf16.mxu0 0
    %398 = vmatpush1.bf16.msra.mxu0 0
    %399 = vmatprep.subr.bf16.mxu0 0
    %400 = vmatpush1.bf16.msra.mxu0 0
    %401 = vmatprep.subr.bf16.mxu0 0
    %402 = vmatpush1.bf16.msra.mxu0 0
    %403 = vmatprep.subr.bf16.mxu0 0
    %404 = vmatpush1.bf16.msra.mxu0 0
    %405 = vmatprep.subr.bf16.mxu0 0
    %406 = vmatpush1.bf16.msra.mxu0 0
    %407 = vmatprep.subr.bf16.mxu0 0
    %408 = vmatpush1.bf16.msra.mxu0 0
    %409 = vmatprep.subr.bf16.mxu0 0
    %410 = vmatpush1.bf16.msra.mxu0 0
    %411 = vmatprep.subr.bf16.mxu0 0
    %412 = vmatpush1.bf16.msra.mxu0 0
    %413 = vmatprep.subr.bf16.mxu0 0
    %414 = vmatpush1.bf16.msra.mxu0 0
    %415 = vmatprep.subr.bf16.mxu0 0
    %416 = vmatpush1.bf16.msra.mxu0 0
    %417 = vmatprep.subr.bf16.mxu0 0
    %418 = vmatpush1.bf16.msra.mxu0 0
    %419 = vmatprep.subr.bf16.mxu0 0
    %420 = vmatpush1.bf16.msra.mxu0 0
    %421 = vmatprep.subr.bf16.mxu0 0
    %422 = vmatpush1.bf16.msra.mxu0 0
    %423 = vmatprep.subr.bf16.mxu0 0
    %424 = vmatpush1.bf16.msra.mxu0 0
    %425 = vmatprep.subr.bf16.mxu0 0
    %426 = vmatpush1.bf16.msra.mxu0 0
    %427 = vmatprep.mubr.bf16.mxu0 0
    %428 = vmatmul.mubr.bf16.gmra.mrb[0].mxu0 %v390
    %v429 = vpop.f32.mrb[0].mxu0
    %v430 = vadd.f32 0.0, %v429
    %v431 = vpop.f32.mrb[0].mxu0
    %v432 = vpop.f32.mrb[0].mxu0
    %v433 = vpop.f32.mrb[0].mxu0
    %434 = vdwg.mxu0
    %v435 = vadd.f32 %v305, %v430
    %436 = vset.pattern.permute.xlu0 3
    %437 = vperm.xlu0 %436, %v39
    %v438 = vpop.permute.xlu0 %437
    %vm439 = vcmp.eq.s32.totalorder %v438, %v57
    %v440 = vsel %vm439, 1, 0
    %v441 = vcvt.s32.f32 %v440
    %442 = vmatprep.subr.mxu0 0.0
    %443 = vmatpush1.msra.mxu0 %v40
    %444 = vmatprep.subr.mxu0 0.0
    %445 = vmatpush1.msra.mxu0 %v41
    %446 = vmatprep.subr.mxu0 0.0
    %447 = vmatpush1.msra.mxu0 %v42
    %448 = vmatprep.subr.mxu0 0.0
    %449 = vmatpush1.msra.mxu0 %v43
    %450 = vmatprep.subr.mxu0 0.0
    %451 = vmatpush1.msra.mxu0 %v44
    %452 = vmatprep.subr.mxu0 0.0
    %453 = vmatpush1.msra.mxu0 %v45
    %454 = vmatprep.subr.mxu0 0.0
    %455 = vmatpush1.msra.mxu0 %v46
    %456 = vmatprep.subr.mxu0 0.0
    %457 = vmatpush1.msra.mxu0 %v47
    %458 = vmatprep.subr.mxu0 0.0
    %459 = vmatpush1.msra.mxu0 %v48
    %460 = vmatprep.subr.mxu0 0.0
    %461 = vmatpush1.msra.mxu0 %v49
    %462 = vmatprep.subr.mxu0 0.0
    %463 = vmatpush1.msra.mxu0 %v50
    %464 = vmatprep.subr.mxu0 0.0
    %465 = vmatpush1.msra.mxu0 %v51
    %466 = vmatprep.subr.mxu0 0.0
    %467 = vmatpush1.msra.mxu0 %v52
    %468 = vmatprep.subr.mxu0 0.0
    %469 = vmatpush1.msra.mxu0 %v53
    %470 = vmatprep.subr.mxu0 0.0
    %471 = vmatpush1.msra.mxu0 %v54
    %472 = vmatprep.subr.mxu0 0.0
    %473 = vmatpush1.msra.mxu0 %v55
    %474 = vmatprep.subr.mxu0 0.0
    %475 = vmatpush1.msra.mxu0 0.0
    %476 = vmatprep.subr.mxu0 0.0
    %477 = vmatpush1.msra.mxu0 0.0
    %478 = vmatprep.subr.mxu0 0.0
    %479 = vmatpush1.msra.mxu0 0.0
    %480 = vmatprep.subr.mxu0 0.0
    %481 = vmatpush1.msra.mxu0 0.0
    %482 = vmatprep.subr.mxu0 0.0
    %483 = vmatpush1.msra.mxu0 0.0
    %484 = vmatprep.subr.mxu0 0.0
    %485 = vmatpush1.msra.mxu0 0.0
    %486 = vmatprep.subr.mxu0 0.0
    %487 = vmatpush1.msra.mxu0 0.0
    %488 = vmatprep.subr.mxu0 0.0
    %489 = vmatpush1.msra.mxu0 0.0
    %490 = vmatprep.subr.mxu0 0.0
    %491 = vmatpush1.msra.mxu0 0.0
    %492 = vmatprep.subr.mxu0 0.0
    %493 = vmatpush1.msra.mxu0 0.0
    %494 = vmatprep.subr.mxu0 0.0
    %495 = vmatpush1.msra.mxu0 0.0
    %496 = vmatprep.subr.mxu0 0.0
    %497 = vmatpush1.msra.mxu0 0.0
    %498 = vmatprep.subr.mxu0 0.0
    %499 = vmatpush1.msra.mxu0 0.0
    %500 = vmatprep.subr.mxu0 0.0
    %501 = vmatpush1.msra.mxu0 0.0
    %502 = vmatprep.subr.mxu0 0.0
    %503 = vmatpush1.msra.mxu0 0.0
    %504 = vmatprep.subr.mxu0 0.0
    %505 = vmatpush1.msra.mxu0 0.0
    %506 = vmatprep.mubr.f32.mxu0 0.0
    %507 = vmatmul.mubr.f32.gmra.mrb[0].mxu0 %v441
    %v508 = vpop.f32.mrb[0].mxu0
    %v509 = vadd.f32 0.0, %v508
    %v510 = vpop.f32.mrb[0].mxu0
    %511 = vdwg.mxu0
    %v512 = vld [vmem:[#allocation2 + $0x18] sm:$0xff]
    %v513 = vpack.c.bf16 %v509, %v509
    %v514 = vpack.c.bf16 %v512, %v512
    %v516 = vsel %vm216, %v513, 0
    %v519 = vsel %vm220, %v514, 0
    %521 = vmatprep.subr.bf16.mxu0 0
    %522 = vmatpush1.bf16.msra.mxu0 %v519
    %523 = vmatprep.subr.bf16.mxu0 0
    %524 = vmatpush1.bf16.msra.mxu0 0
    %525 = vmatprep.subr.bf16.mxu0 0
    %526 = vmatpush1.bf16.msra.mxu0 0
    %527 = vmatprep.subr.bf16.mxu0 0
    %528 = vmatpush1.bf16.msra.mxu0 0
    %529 = vmatprep.subr.bf16.mxu0 0
    %530 = vmatpush1.bf16.msra.mxu0 0
    %531 = vmatprep.subr.bf16.mxu0 0
    %532 = vmatpush1.bf16.msra.mxu0 0
    %533 = vmatprep.subr.bf16.mxu0 0
    %534 = vmatpush1.bf16.msra.mxu0 0
    %535 = vmatprep.subr.bf16.mxu0 0
    %536 = vmatpush1.bf16.msra.mxu0 0
    %537 = vmatprep.subr.bf16.mxu0 0
    %538 = vmatpush1.bf16.msra.mxu0 0
    %539 = vmatprep.subr.bf16.mxu0 0
    %540 = vmatpush1.bf16.msra.mxu0 0
    %541 = vmatprep.subr.bf16.mxu0 0
    %542 = vmatpush1.bf16.msra.mxu0 0
    %543 = vmatprep.subr.bf16.mxu0 0
    %544 = vmatpush1.bf16.msra.mxu0 0
    %545 = vmatprep.subr.bf16.mxu0 0
    %546 = vmatpush1.bf16.msra.mxu0 0
    %547 = vmatprep.subr.bf16.mxu0 0
    %548 = vmatpush1.bf16.msra.mxu0 0
    %549 = vmatprep.subr.bf16.mxu0 0
    %550 = vmatpush1.bf16.msra.mxu0 0
    %551 = vmatprep.subr.bf16.mxu0 0
    %552 = vmatpush1.bf16.msra.mxu0 0
    %553 = vmatprep.mubr.bf16.mxu0 0
    %554 = vmatmul.mubr.bf16.gmra.mrb[0].mxu0 %v516
    %v555 = vpop.f32.mrb[0].mxu0
    %v556 = vadd.f32 0.0, %v555
    %v557 = vpop.f32.mrb[0].mxu0
    %v558 = vpop.f32.mrb[0].mxu0
    %v559 = vpop.f32.mrb[0].mxu0
    %560 = vdwg.mxu0
    %v561 = vadd.f32 %v435, %v556
    %562 = vset.pattern.permute.xlu0 4
    %563 = vperm.xlu0 %562, %v39
    %v564 = vpop.permute.xlu0 %563
    %vm565 = vcmp.eq.s32.totalorder %v564, %v57
    %v566 = vsel %vm565, 1, 0
    %v567 = vcvt.s32.f32 %v566
    %568 = vmatprep.subr.mxu0 0.0
    %569 = vmatpush1.msra.mxu0 %v40
    %570 = vmatprep.subr.mxu0 0.0
    %571 = vmatpush1.msra.mxu0 %v41
    %572 = vmatprep.subr.mxu0 0.0
    %573 = vmatpush1.msra.mxu0 %v42
    %574 = vmatprep.subr.mxu0 0.0
    %575 = vmatpush1.msra.mxu0 %v43
    %576 = vmatprep.subr.mxu0 0.0
    %577 = vmatpush1.msra.mxu0 %v44
    %578 = vmatprep.subr.mxu0 0.0
    %579 = vmatpush1.msra.mxu0 %v45
    %580 = vmatprep.subr.mxu0 0.0
    %581 = vmatpush1.msra.mxu0 %v46
    %582 = vmatprep.subr.mxu0 0.0
    %583 = vmatpush1.msra.mxu0 %v47
    %584 = vmatprep.subr.mxu0 0.0
    %585 = vmatpush1.msra.mxu0 %v48
    %586 = vmatprep.subr.mxu0 0.0
    %587 = vmatpush1.msra.mxu0 %v49
    %588 = vmatprep.subr.mxu0 0.0
    %589 = vmatpush1.msra.mxu0 %v50
    %590 = vmatprep.subr.mxu0 0.0
    %591 = vmatpush1.msra.mxu0 %v51
    %592 = vmatprep.subr.mxu0 0.0
    %593 = vmatpush1.msra.mxu0 %v52
    %594 = vmatprep.subr.mxu0 0.0
    %595 = vmatpush1.msra.mxu0 %v53
    %596 = vmatprep.subr.mxu0 0.0
    %597 = vmatpush1.msra.mxu0 %v54
    %598 = vmatprep.subr.mxu0 0.0
    %599 = vmatpush1.msra.mxu0 %v55
    %600 = vmatprep.subr.mxu0 0.0
    %601 = vmatpush1.msra.mxu0 0.0
    %602 = vmatprep.subr.mxu0 0.0
    %603 = vmatpush1.msra.mxu0 0.0
    %604 = vmatprep.subr.mxu0 0.0
    %605 = vmatpush1.msra.mxu0 0.0
    %606 = vmatprep.subr.mxu0 0.0
    %607 = vmatpush1.msra.mxu0 0.0
    %608 = vmatprep.subr.mxu0 0.0
    %609 = vmatpush1.msra.mxu0 0.0
    %610 = vmatprep.subr.mxu0 0.0
    %611 = vmatpush1.msra.mxu0 0.0
    %612 = vmatprep.subr.mxu0 0.0
    %613 = vmatpush1.msra.mxu0 0.0
    %614 = vmatprep.subr.mxu0 0.0
    %615 = vmatpush1.msra.mxu0 0.0
    %616 = vmatprep.subr.mxu0 0.0
    %617 = vmatpush1.msra.mxu0 0.0
    %618 = vmatprep.subr.mxu0 0.0
    %619 = vmatpush1.msra.mxu0 0.0
    %620 = vmatprep.subr.mxu0 0.0
    %621 = vmatpush1.msra.mxu0 0.0
    %622 = vmatprep.subr.mxu0 0.0
    %623 = vmatpush1.msra.mxu0 0.0
    %624 = vmatprep.subr.mxu0 0.0
    %625 = vmatpush1.msra.mxu0 0.0
    %626 = vmatprep.subr.mxu0 0.0
    %627 = vmatpush1.msra.mxu0 0.0
    %628 = vmatprep.subr.mxu0 0.0
    %629 = vmatpush1.msra.mxu0 0.0
    %630 = vmatprep.subr.mxu0 0.0
    %631 = vmatpush1.msra.mxu0 0.0
    %632 = vmatprep.mubr.f32.mxu0 0.0
    %633 = vmatmul.mubr.f32.gmra.mrb[0].mxu0 %v567
    %v634 = vpop.f32.mrb[0].mxu0
    %v635 = vadd.f32 0.0, %v634
    %v636 = vpop.f32.mrb[0].mxu0
    %637 = vdwg.mxu0
    %v638 = vld [vmem:[#allocation2 + $0x20] sm:$0xff]
    %v639 = vpack.c.bf16 %v635, %v635
    %v640 = vpack.c.bf16 %v638, %v638
    %v642 = vsel %vm216, %v639, 0
    %v645 = vsel %vm220, %v640, 0
    %647 = vmatprep.subr.bf16.mxu0 0
    %648 = vmatpush1.bf16.msra.mxu0 %v645
    %649 = vmatprep.subr.bf16.mxu0 0
    %650 = vmatpush1.bf16.msra.mxu0 0
    %651 = vmatprep.subr.bf16.mxu0 0
    %652 = vmatpush1.bf16.msra.mxu0 0
    %653 = vmatprep.subr.bf16.mxu0 0
    %654 = vmatpush1.bf16.msra.mxu0 0
    %655 = vmatprep.subr.bf16.mxu0 0
    %656 = vmatpush1.bf16.msra.mxu0 0
    %657 = vmatprep.subr.bf16.mxu0 0
    %658 = vmatpush1.bf16.msra.mxu0 0
    %659 = vmatprep.subr.bf16.mxu0 0
    %660 = vmatpush1.bf16.msra.mxu0 0
    %661 = vmatprep.subr.bf16.mxu0 0
    %662 = vmatpush1.bf16.msra.mxu0 0
    %663 = vmatprep.subr.bf16.mxu0 0
    %664 = vmatpush1.bf16.msra.mxu0 0
    %665 = vmatprep.subr.bf16.mxu0 0
    %666 = vmatpush1.bf16.msra.mxu0 0
    %667 = vmatprep.subr.bf16.mxu0 0
    %668 = vmatpush1.bf16.msra.mxu0 0
    %669 = vmatprep.subr.bf16.mxu0 0
    %670 = vmatpush1.bf16.msra.mxu0 0
    %671 = vmatprep.subr.bf16.mxu0 0
    %672 = vmatpush1.bf16.msra.mxu0 0
    %673 = vmatprep.subr.bf16.mxu0 0
    %674 = vmatpush1.bf16.msra.mxu0 0
    %675 = vmatprep.subr.bf16.mxu0 0
    %676 = vmatpush1.bf16.msra.mxu0 0
    %677 = vmatprep.subr.bf16.mxu0 0
    %678 = vmatpush1.bf16.msra.mxu0 0
    %679 = vmatprep.mubr.bf16.mxu0 0
    %680 = vmatmul.mubr.bf16.gmra.mrb[0].mxu0 %v642
    %v681 = vpop.f32.mrb[0].mxu0
    %v682 = vadd.f32 0.0, %v681
    %v683 = vpop.f32.mrb[0].mxu0
    %v684 = vpop.f32.mrb[0].mxu0
    %v685 = vpop.f32.mrb[0].mxu0
    %686 = vdwg.mxu0
    %v687 = vadd.f32 %v561, %v682
    %688 = vset.pattern.permute.xlu0 5
    %689 = vperm.xlu0 %688, %v39
    %v690 = vpop.permute.xlu0 %689
    %vm691 = vcmp.eq.s32.totalorder %v690, %v57
    %v692 = vsel %vm691, 1, 0
    %v693 = vcvt.s32.f32 %v692
    %694 = vmatprep.subr.mxu0 0.0
    %695 = vmatpush1.msra.mxu0 %v40
    %696 = vmatprep.subr.mxu0 0.0
    %697 = vmatpush1.msra.mxu0 %v41
    %698 = vmatprep.subr.mxu0 0.0
    %699 = vmatpush1.msra.mxu0 %v42
    %700 = vmatprep.subr.mxu0 0.0
    %701 = vmatpush1.msra.mxu0 %v43
    %702 = vmatprep.subr.mxu0 0.0
    %703 = vmatpush1.msra.mxu0 %v44
    %704 = vmatprep.subr.mxu0 0.0
    %705 = vmatpush1.msra.mxu0 %v45
    %706 = vmatprep.subr.mxu0 0.0
    %707 = vmatpush1.msra.mxu0 %v46
    %708 = vmatprep.subr.mxu0 0.0
    %709 = vmatpush1.msra.mxu0 %v47
    %710 = vmatprep.subr.mxu0 0.0
    %711 = vmatpush1.msra.mxu0 %v48
    %712 = vmatprep.subr.mxu0 0.0
    %713 = vmatpush1.msra.mxu0 %v49
    %714 = vmatprep.subr.mxu0 0.0
    %715 = vmatpush1.msra.mxu0 %v50
    %716 = vmatprep.subr.mxu0 0.0
    %717 = vmatpush1.msra.mxu0 %v51
    %718 = vmatprep.subr.mxu0 0.0
    %719 = vmatpush1.msra.mxu0 %v52
    %720 = vmatprep.subr.mxu0 0.0
    %721 = vmatpush1.msra.mxu0 %v53
    %722 = vmatprep.subr.mxu0 0.0
    %723 = vmatpush1.msra.mxu0 %v54
    %724 = vmatprep.subr.mxu0 0.0
    %725 = vmatpush1.msra.mxu0 %v55
    %726 = vmatprep.subr.mxu0 0.0
    %727 = vmatpush1.msra.mxu0 0.0
    %728 = vmatprep.subr.mxu0 0.0
    %729 = vmatpush1.msra.mxu0 0.0
    %730 = vmatprep.subr.mxu0 0.0
    %731 = vmatpush1.msra.mxu0 0.0
    %732 = vmatprep.subr.mxu0 0.0
    %733 = vmatpush1.msra.mxu0 0.0
    %734 = vmatprep.subr.mxu0 0.0
    %735 = vmatpush1.msra.mxu0 0.0
    %736 = vmatprep.subr.mxu0 0.0
    %737 = vmatpush1.msra.mxu0 0.0
    %738 = vmatprep.subr.mxu0 0.0
    %739 = vmatpush1.msra.mxu0 0.0
    %740 = vmatprep.subr.mxu0 0.0
    %741 = vmatpush1.msra.mxu0 0.0
    %742 = vmatprep.subr.mxu0 0.0
    %743 = vmatpush1.msra.mxu0 0.0
    %744 = vmatprep.subr.mxu0 0.0
    %745 = vmatpush1.msra.mxu0 0.0
    %746 = vmatprep.subr.mxu0 0.0
    %747 = vmatpush1.msra.mxu0 0.0
    %748 = vmatprep.subr.mxu0 0.0
    %749 = vmatpush1.msra.mxu0 0.0
    %750 = vmatprep.subr.mxu0 0.0
    %751 = vmatpush1.msra.mxu0 0.0
    %752 = vmatprep.subr.mxu0 0.0
    %753 = vmatpush1.msra.mxu0 0.0
    %754 = vmatprep.subr.mxu0 0.0
    %755 = vmatpush1.msra.mxu0 0.0
    %756 = vmatprep.subr.mxu0 0.0
    %757 = vmatpush1.msra.mxu0 0.0
    %758 = vmatprep.mubr.f32.mxu0 0.0
    %759 = vmatmul.mubr.f32.gmra.mrb[0].mxu0 %v693
    %v760 = vpop.f32.mrb[0].mxu0
    %v761 = vadd.f32 0.0, %v760
    %v762 = vpop.f32.mrb[0].mxu0
    %763 = vdwg.mxu0
    %v764 = vld [vmem:[#allocation2 + $0x28] sm:$0xff]
    %v765 = vpack.c.bf16 %v761, %v761
    %v766 = vpack.c.bf16 %v764, %v764
    %v768 = vsel %vm216, %v765, 0
    %v771 = vsel %vm220, %v766, 0
    %773 = vmatprep.subr.bf16.mxu0 0
    %774 = vmatpush1.bf16.msra.mxu0 %v771
    %775 = vmatprep.subr.bf16.mxu0 0
    %776 = vmatpush1.bf16.msra.mxu0 0
    %777 = vmatprep.subr.bf16.mxu0 0
    %778 = vmatpush1.bf16.msra.mxu0 0
    %779 = vmatprep.subr.bf16.mxu0 0
    %780 = vmatpush1.bf16.msra.mxu0 0
    %781 = vmatprep.subr.bf16.mxu0 0
    %782 = vmatpush1.bf16.msra.mxu0 0
    %783 = vmatprep.subr.bf16.mxu0 0
    %784 = vmatpush1.bf16.msra.mxu0 0
    %785 = vmatprep.subr.bf16.mxu0 0
    %786 = vmatpush1.bf16.msra.mxu0 0
    %787 = vmatprep.subr.bf16.mxu0 0
    %788 = vmatpush1.bf16.msra.mxu0 0
    %789 = vmatprep.subr.bf16.mxu0 0
    %790 = vmatpush1.bf16.msra.mxu0 0
    %791 = vmatprep.subr.bf16.mxu0 0
    %792 = vmatpush1.bf16.msra.mxu0 0
    %793 = vmatprep.subr.bf16.mxu0 0
    %794 = vmatpush1.bf16.msra.mxu0 0
    %795 = vmatprep.subr.bf16.mxu0 0
    %796 = vmatpush1.bf16.msra.mxu0 0
    %797 = vmatprep.subr.bf16.mxu0 0
    %798 = vmatpush1.bf16.msra.mxu0 0
    %799 = vmatprep.subr.bf16.mxu0 0
    %800 = vmatpush1.bf16.msra.mxu0 0
    %801 = vmatprep.subr.bf16.mxu0 0
    %802 = vmatpush1.bf16.msra.mxu0 0
    %803 = vmatprep.subr.bf16.mxu0 0
    %804 = vmatpush1.bf16.msra.mxu0 0
    %805 = vmatprep.mubr.bf16.mxu0 0
    %806 = vmatmul.mubr.bf16.gmra.mrb[0].mxu0 %v768
    %v807 = vpop.f32.mrb[0].mxu0
    %v808 = vadd.f32 0.0, %v807
    %v809 = vpop.f32.mrb[0].mxu0
    %v810 = vpop.f32.mrb[0].mxu0
    %v811 = vpop.f32.mrb[0].mxu0
    %812 = vdwg.mxu0
    %v813 = vadd.f32 %v687, %v808
    %814 = vset.pattern.permute.xlu0 6
    %815 = vperm.xlu0 %814, %v39
    %v816 = vpop.permute.xlu0 %815
    %vm817 = vcmp.eq.s32.totalorder %v816, %v57
    %v818 = vsel %vm817, 1, 0
    %v819 = vcvt.s32.f32 %v818
    %820 = vmatprep.subr.mxu0 0.0
    %821 = vmatpush1.msra.mxu0 %v40
    %822 = vmatprep.subr.mxu0 0.0
    %823 = vmatpush1.msra.mxu0 %v41
    %824 = vmatprep.subr.mxu0 0.0
    %825 = vmatpush1.msra.mxu0 %v42
    %826 = vmatprep.subr.mxu0 0.0
    %827 = vmatpush1.msra.mxu0 %v43
    %828 = vmatprep.subr.mxu0 0.0
    %829 = vmatpush1.msra.mxu0 %v44
    %830 = vmatprep.subr.mxu0 0.0
    %831 = vmatpush1.msra.mxu0 %v45
    %832 = vmatprep.subr.mxu0 0.0
    %833 = vmatpush1.msra.mxu0 %v46
    %834 = vmatprep.subr.mxu0 0.0
    %835 = vmatpush1.msra.mxu0 %v47
    %836 = vmatprep.subr.mxu0 0.0
    %837 = vmatpush1.msra.mxu0 %v48
    %838 = vmatprep.subr.mxu0 0.0
    %839 = vmatpush1.msra.mxu0 %v49
    %840 = vmatprep.subr.mxu0 0.0
    %841 = vmatpush1.msra.mxu0 %v50
    %842 = vmatprep.subr.mxu0 0.0
    %843 = vmatpush1.msra.mxu0 %v51
    %844 = vmatprep.subr.mxu0 0.0
    %845 = vmatpush1.msra.mxu0 %v52
    %846 = vmatprep.subr.mxu0 0.0
    %847 = vmatpush1.msra.mxu0 %v53
    %848 = vmatprep.subr.mxu0 0.0
    %849 = vmatpush1.msra.mxu0 %v54
    %850 = vmatprep.subr.mxu0 0.0
    %851 = vmatpush1.msra.mxu0 %v55
    %852 = vmatprep.subr.mxu0 0.0
    %853 = vmatpush1.msra.mxu0 0.0
    %854 = vmatprep.subr.mxu0 0.0
    %855 = vmatpush1.msra.mxu0 0.0
    %856 = vmatprep.subr.mxu0 0.0
    %857 = vmatpush1.msra.mxu0 0.0
    %858 = vmatprep.subr.mxu0 0.0
    %859 = vmatpush1.msra.mxu0 0.0
    %860 = vmatprep.subr.mxu0 0.0
    %861 = vmatpush1.msra.mxu0 0.0
    %862 = vmatprep.subr.mxu0 0.0
    %863 = vmatpush1.msra.mxu0 0.0
    %864 = vmatprep.subr.mxu0 0.0
    %865 = vmatpush1.msra.mxu0 0.0
    %866 = vmatprep.subr.mxu0 0.0
    %867 = vmatpush1.msra.mxu0 0.0
    %868 = vmatprep.subr.mxu0 0.0
    %869 = vmatpush1.msra.mxu0 0.0
    %870 = vmatprep.subr.mxu0 0.0
    %871 = vmatpush1.msra.mxu0 0.0
    %872 = vmatprep.subr.mxu0 0.0
    %873 = vmatpush1.msra.mxu0 0.0
    %874 = vmatprep.subr.mxu0 0.0
    %875 = vmatpush1.msra.mxu0 0.0
    %876 = vmatprep.subr.mxu0 0.0
    %877 = vmatpush1.msra.mxu0 0.0
    %878 = vmatprep.subr.mxu0 0.0
    %879 = vmatpush1.msra.mxu0 0.0
    %880 = vmatprep.subr.mxu0 0.0
    %881 = vmatpush1.msra.mxu0 0.0
    %882 = vmatprep.subr.mxu0 0.0
    %883 = vmatpush1.msra.mxu0 0.0
    %884 = vmatprep.mubr.f32.mxu0 0.0
    %885 = vmatmul.mubr.f32.gmra.mrb[0].mxu0 %v819
    %v886 = vpop.f32.mrb[0].mxu0
    %v887 = vadd.f32 0.0, %v886
    %v888 = vpop.f32.mrb[0].mxu0
    %889 = vdwg.mxu0
    %v890 = vld [vmem:[#allocation2 + $0x30] sm:$0xff]
    %v891 = vpack.c.bf16 %v887, %v887
    %v892 = vpack.c.bf16 %v890, %v890
    %v894 = vsel %vm216, %v891, 0
    %v897 = vsel %vm220, %v892, 0
    %899 = vmatprep.subr.bf16.mxu0 0
    %900 = vmatpush1.bf16.msra.mxu0 %v897
    %901 = vmatprep.subr.bf16.mxu0 0
    %902 = vmatpush1.bf16.msra.mxu0 0
    %903 = vmatprep.subr.bf16.mxu0 0
    %904 = vmatpush1.bf16.msra.mxu0 0
    %905 = vmatprep.subr.bf16.mxu0 0
    %906 = vmatpush1.bf16.msra.mxu0 0
    %907 = vmatprep.subr.bf16.mxu0 0
    %908 = vmatpush1.bf16.msra.mxu0 0
    %909 = vmatprep.subr.bf16.mxu0 0
    %910 = vmatpush1.bf16.msra.mxu0 0
    %911 = vmatprep.subr.bf16.mxu0 0
    %912 = vmatpush1.bf16.msra.mxu0 0
    %913 = vmatprep.subr.bf16.mxu0 0
    %914 = vmatpush1.bf16.msra.mxu0 0
    %915 = vmatprep.subr.bf16.mxu0 0
    %916 = vmatpush1.bf16.msra.mxu0 0
    %917 = vmatprep.subr.bf16.mxu0 0
    %918 = vmatpush1.bf16.msra.mxu0 0
    %919 = vmatprep.subr.bf16.mxu0 0
    %920 = vmatpush1.bf16.msra.mxu0 0
    %921 = vmatprep.subr.bf16.mxu0 0
    %922 = vmatpush1.bf16.msra.mxu0 0
    %923 = vmatprep.subr.bf16.mxu0 0
    %924 = vmatpush1.bf16.msra.mxu0 0
    %925 = vmatprep.subr.bf16.mxu0 0
    %926 = vmatpush1.bf16.msra.mxu0 0
    %927 = vmatprep.subr.bf16.mxu0 0
    %928 = vmatpush1.bf16.msra.mxu0 0
    %929 = vmatprep.subr.bf16.mxu0 0
    %930 = vmatpush1.bf16.msra.mxu0 0
    %931 = vmatprep.mubr.bf16.mxu0 0
    %932 = vmatmul.mubr.bf16.gmra.mrb[0].mxu0 %v894
    %v933 = vpop.f32.mrb[0].mxu0
    %v934 = vadd.f32 0.0, %v933
    %v935 = vpop.f32.mrb[0].mxu0
    %v936 = vpop.f32.mrb[0].mxu0
    %v937 = vpop.f32.mrb[0].mxu0
    %938 = vdwg.mxu0
    %v939 = vadd.f32 %v813, %v934
    %940 = vset.pattern.permute.xlu0 7
    %941 = vperm.xlu0 %940, %v39
    %v942 = vpop.permute.xlu0 %941
    %vm943 = vcmp.eq.s32.totalorder %v942, %v57
    %v944 = vsel %vm943, 1, 0
    %v945 = vcvt.s32.f32 %v944
    %946 = vmatprep.subr.mxu0 0.0
    %947 = vmatpush1.msra.mxu0 %v40
    %948 = vmatprep.subr.mxu0 0.0
    %949 = vmatpush1.msra.mxu0 %v41
    %950 = vmatprep.subr.mxu0 0.0
    %951 = vmatpush1.msra.mxu0 %v42
    %952 = vmatprep.subr.mxu0 0.0
    %953 = vmatpush1.msra.mxu0 %v43
    %954 = vmatprep.subr.mxu0 0.0
    %955 = vmatpush1.msra.mxu0 %v44
    %956 = vmatprep.subr.mxu0 0.0
    %957 = vmatpush1.msra.mxu0 %v45
    %958 = vmatprep.subr.mxu0 0.0
    %959 = vmatpush1.msra.mxu0 %v46
    %960 = vmatprep.subr.mxu0 0.0
    %961 = vmatpush1.msra.mxu0 %v47
    %962 = vmatprep.subr.mxu0 0.0
    %963 = vmatpush1.msra.mxu0 %v48
    %964 = vmatprep.subr.mxu0 0.0
    %965 = vmatpush1.msra.mxu0 %v49
    %966 = vmatprep.subr.mxu0 0.0
    %967 = vmatpush1.msra.mxu0 %v50
    %968 = vmatprep.subr.mxu0 0.0
    %969 = vmatpush1.msra.mxu0 %v51
    %970 = vmatprep.subr.mxu0 0.0
    %971 = vmatpush1.msra.mxu0 %v52
    %972 = vmatprep.subr.mxu0 0.0
    %973 = vmatpush1.msra.mxu0 %v53
    %974 = vmatprep.subr.mxu0 0.0
    %975 = vmatpush1.msra.mxu0 %v54
    %976 = vmatprep.subr.mxu0 0.0
    %977 = vmatpush1.msra.mxu0 %v55
    %978 = vmatprep.subr.mxu0 0.0
    %979 = vmatpush1.msra.mxu0 0.0
    %980 = vmatprep.subr.mxu0 0.0
    %981 = vmatpush1.msra.mxu0 0.0
    %982 = vmatprep.subr.mxu0 0.0
    %983 = vmatpush1.msra.mxu0 0.0
    %984 = vmatprep.subr.mxu0 0.0
    %985 = vmatpush1.msra.mxu0 0.0
    %986 = vmatprep.subr.mxu0 0.0
    %987 = vmatpush1.msra.mxu0 0.0
    %988 = vmatprep.subr.mxu0 0.0
    %989 = vmatpush1.msra.mxu0 0.0
    %990 = vmatprep.subr.mxu0 0.0
    %991 = vmatpush1.msra.mxu0 0.0
    %992 = vmatprep.subr.mxu0 0.0
    %993 = vmatpush1.msra.mxu0 0.0
    %994 = vmatprep.subr.mxu0 0.0
    %995 = vmatpush1.msra.mxu0 0.0
    %996 = vmatprep.subr.mxu0 0.0
    %997 = vmatpush1.msra.mxu0 0.0
    %998 = vmatprep.subr.mxu0 0.0
    %999 = vmatpush1.msra.mxu0 0.0
    %1000 = vmatprep.subr.mxu0 0.0
    %1001 = vmatpush1.msra.mxu0 0.0
    %1002 = vmatprep.subr.mxu0 0.0
    %1003 = vmatpush1.msra.mxu0 0.0
    %1004 = vmatprep.subr.mxu0 0.0
    %1005 = vmatpush1.msra.mxu0 0.0
    %1006 = vmatprep.subr.mxu0 0.0
    %1007 = vmatpush1.msra.mxu0 0.0
    %1008 = vmatprep.subr.mxu0 0.0
    %1009 = vmatpush1.msra.mxu0 0.0
    %1010 = vmatprep.mubr.f32.mxu0 0.0
    %1011 = vmatmul.mubr.f32.gmra.mrb[0].mxu0 %v945
    %v1012 = vpop.f32.mrb[0].mxu0
    %v1013 = vadd.f32 0.0, %v1012
    %v1014 = vpop.f32.mrb[0].mxu0
    %1015 = vdwg.mxu0
    %v1016 = vld [vmem:[#allocation2 + $0x38] sm:$0xff]
    %v1017 = vpack.c.bf16 %v1013, %v1013
    %v1018 = vpack.c.bf16 %v1016, %v1016
    %v1020 = vsel %vm216, %v1017, 0
    %v1023 = vsel %vm220, %v1018, 0
    %1025 = vmatprep.subr.bf16.mxu0 0
    %1026 = vmatpush1.bf16.msra.mxu0 %v1023
    %1027 = vmatprep.subr.bf16.mxu0 0
    %1028 = vmatpush1.bf16.msra.mxu0 0
    %1029 = vmatprep.subr.bf16.mxu0 0
    %1030 = vmatpush1.bf16.msra.mxu0 0
    %1031 = vmatprep.subr.bf16.mxu0 0
    %1032 = vmatpush1.bf16.msra.mxu0 0
    %1033 = vmatprep.subr.bf16.mxu0 0
    %1034 = vmatpush1.bf16.msra.mxu0 0
    %1035 = vmatprep.subr.bf16.mxu0 0
    %1036 = vmatpush1.bf16.msra.mxu0 0
    %1037 = vmatprep.subr.bf16.mxu0 0
    %1038 = vmatpush1.bf16.msra.mxu0 0
    %1039 = vmatprep.subr.bf16.mxu0 0
    %1040 = vmatpush1.bf16.msra.mxu0 0
    %1041 = vmatprep.subr.bf16.mxu0 0
    %1042 = vmatpush1.bf16.msra.mxu0 0
    %1043 = vmatprep.subr.bf16.mxu0 0
    %1044 = vmatpush1.bf16.msra.mxu0 0
    %1045 = vmatprep.subr.bf16.mxu0 0
    %1046 = vmatpush1.bf16.msra.mxu0 0
    %1047 = vmatprep.subr.bf16.mxu0 0
    %1048 = vmatpush1.bf16.msra.mxu0 0
    %1049 = vmatprep.subr.bf16.mxu0 0
    %1050 = vmatpush1.bf16.msra.mxu0 0
    %1051 = vmatprep.subr.bf16.mxu0 0
    %1052 = vmatpush1.bf16.msra.mxu0 0
    %1053 = vmatprep.subr.bf16.mxu0 0
    %1054 = vmatpush1.bf16.msra.mxu0 0
    %1055 = vmatprep.subr.bf16.mxu0 0
    %1056 = vmatpush1.bf16.msra.mxu0 0
    %1057 = vmatprep.mubr.bf16.mxu0 0
    %1058 = vmatmul.mubr.bf16.gmra.mrb[0].mxu0 %v1020
    %v1059 = vpop.f32.mrb[0].mxu0
    %v1060 = vadd.f32 0.0, %v1059
    %v1061 = vpop.f32.mrb[0].mxu0
    %v1062 = vpop.f32.mrb[0].mxu0
    %v1063 = vpop.f32.mrb[0].mxu0
    %1064 = vdwg.mxu0
    %v1065 = vadd.f32 %v939, %v1060
    %1066 = vset.pattern.permute.xlu0 8
    %1067 = vperm.xlu0 %1066, %v39
    %v1068 = vpop.permute.xlu0 %1067
    %vm1069 = vcmp.eq.s32.totalorder %v1068, %v57
    %v1070 = vsel %vm1069, 1, 0
    %v1071 = vcvt.s32.f32 %v1070
    %1072 = vmatprep.subr.mxu0 0.0
    %1073 = vmatpush1.msra.mxu0 %v40
    %1074 = vmatprep.subr.mxu0 0.0
    %1075 = vmatpush1.msra.mxu0 %v41
    %1076 = vmatprep.subr.mxu0 0.0
    %1077 = vmatpush1.msra.mxu0 %v42
    %1078 = vmatprep.subr.mxu0 0.0
    %1079 = vmatpush1.msra.mxu0 %v43
    %1080 = vmatprep.subr.mxu0 0.0
    %1081 = vmatpush1.msra.mxu0 %v44
    %1082 = vmatprep.subr.mxu0 0.0
    %1083 = vmatpush1.msra.mxu0 %v45
    %1084 = vmatprep.subr.mxu0 0.0
    %1085 = vmatpush1.msra.mxu0 %v46
    %1086 = vmatprep.subr.mxu0 0.0
    %1087 = vmatpush1.msra.mxu0 %v47
    %1088 = vmatprep.subr.mxu0 0.0
    %1089 = vmatpush1.msra.mxu0 %v48
    %1090 = vmatprep.subr.mxu0 0.0
    %1091 = vmatpush1.msra.mxu0 %v49
    %1092 = vmatprep.subr.mxu0 0.0
    %1093 = vmatpush1.msra.mxu0 %v50
    %1094 = vmatprep.subr.mxu0 0.0
    %1095 = vmatpush1.msra.mxu0 %v51
    %1096 = vmatprep.subr.mxu0 0.0
    %1097 = vmatpush1.msra.mxu0 %v52
    %1098 = vmatprep.subr.mxu0 0.0
    %1099 = vmatpush1.msra.mxu0 %v53
    %1100 = vmatprep.subr.mxu0 0.0
    %1101 = vmatpush1.msra.mxu0 %v54
    %1102 = vmatprep.subr.mxu0 0.0
    %1103 = vmatpush1.msra.mxu0 %v55
    %1104 = vmatprep.subr.mxu0 0.0
    %1105 = vmatpush1.msra.mxu0 0.0
    %1106 = vmatprep.subr.mxu0 0.0
    %1107 = vmatpush1.msra.mxu0 0.0
    %1108 = vmatprep.subr.mxu0 0.0
    %1109 = vmatpush1.msra.mxu0 0.0
    %1110 = vmatprep.subr.mxu0 0.0
    %1111 = vmatpush1.msra.mxu0 0.0
    %1112 = vmatprep.subr.mxu0 0.0
    %1113 = vmatpush1.msra.mxu0 0.0
    %1114 = vmatprep.subr.mxu0 0.0
    %1115 = vmatpush1.msra.mxu0 0.0
    %1116 = vmatprep.subr.mxu0 0.0
    %1117 = vmatpush1.msra.mxu0 0.0
    %1118 = vmatprep.subr.mxu0 0.0
    %1119 = vmatpush1.msra.mxu0 0.0
    %1120 = vmatprep.subr.mxu0 0.0
    %1121 = vmatpush1.msra.mxu0 0.0
    %1122 = vmatprep.subr.mxu0 0.0
    %1123 = vmatpush1.msra.mxu0 0.0
    %1124 = vmatprep.subr.mxu0 0.0
    %1125 = vmatpush1.msra.mxu0 0.0
    %1126 = vmatprep.subr.mxu0 0.0
    %1127 = vmatpush1.msra.mxu0 0.0
    %1128 = vmatprep.subr.mxu0 0.0
    %1129 = vmatpush1.msra.mxu0 0.0
    %1130 = vmatprep.subr.mxu0 0.0
    %1131 = vmatpush1.msra.mxu0 0.0
    %1132 = vmatprep.subr.mxu0 0.0
    %1133 = vmatpush1.msra.mxu0 0.0
    %1134 = vmatprep.subr.mxu0 0.0
    %1135 = vmatpush1.msra.mxu0 0.0
    %1136 = vmatprep.mubr.f32.mxu0 0.0
    %1137 = vmatmul.mubr.f32.gmra.mrb[0].mxu0 %v1071
    %v1138 = vpop.f32.mrb[0].mxu0
    %v1139 = vadd.f32 0.0, %v1138
    %v1140 = vpop.f32.mrb[0].mxu0
    %1141 = vdwg.mxu0
    %v1142 = vld [vmem:[#allocation2 + $0x40] sm:$0xff]
    %v1143 = vpack.c.bf16 %v1139, %v1139
    %v1144 = vpack.c.bf16 %v1142, %v1142
    %v1146 = vsel %vm216, %v1143, 0
    %v1149 = vsel %vm220, %v1144, 0
    %1151 = vmatprep.subr.bf16.mxu0 0
    %1152 = vmatpush1.bf16.msra.mxu0 %v1149
    %1153 = vmatprep.subr.bf16.mxu0 0
    %1154 = vmatpush1.bf16.msra.mxu0 0
    %1155 = vmatprep.subr.bf16.mxu0 0
    %1156 = vmatpush1.bf16.msra.mxu0 0
    %1157 = vmatprep.subr.bf16.mxu0 0
    %1158 = vmatpush1.bf16.msra.mxu0 0
    %1159 = vmatprep.subr.bf16.mxu0 0
    %1160 = vmatpush1.bf16.msra.mxu0 0
    %1161 = vmatprep.subr.bf16.mxu0 0
    %1162 = vmatpush1.bf16.msra.mxu0 0
    %1163 = vmatprep.subr.bf16.mxu0 0
    %1164 = vmatpush1.bf16.msra.mxu0 0
    %1165 = vmatprep.subr.bf16.mxu0 0
    %1166 = vmatpush1.bf16.msra.mxu0 0
    %1167 = vmatprep.subr.bf16.mxu0 0
    %1168 = vmatpush1.bf16.msra.mxu0 0
    %1169 = vmatprep.subr.bf16.mxu0 0
    %1170 = vmatpush1.bf16.msra.mxu0 0
    %1171 = vmatprep.subr.bf16.mxu0 0
    %1172 = vmatpush1.bf16.msra.mxu0 0
    %1173 = vmatprep.subr.bf16.mxu0 0
    %1174 = vmatpush1.bf16.msra.mxu0 0
    %1175 = vmatprep.subr.bf16.mxu0 0
    %1176 = vmatpush1.bf16.msra.mxu0 0
    %1177 = vmatprep.subr.bf16.mxu0 0
    %1178 = vmatpush1.bf16.msra.mxu0 0
    %1179 = vmatprep.subr.bf16.mxu0 0
    %1180 = vmatpush1.bf16.msra.mxu0 0
    %1181 = vmatprep.subr.bf16.mxu0 0
    %1182 = vmatpush1.bf16.msra.mxu0 0
    %1183 = vmatprep.mubr.bf16.mxu0 0
    %1184 = vmatmul.mubr.bf16.gmra.mrb[0].mxu0 %v1146
    %v1185 = vpop.f32.mrb[0].mxu0
    %v1186 = vadd.f32 0.0, %v1185
    %v1187 = vpop.f32.mrb[0].mxu0
    %v1188 = vpop.f32.mrb[0].mxu0
    %v1189 = vpop.f32.mrb[0].mxu0
    %1190 = vdwg.mxu0
    %v1191 = vadd.f32 %v1065, %v1186
    %1192 = vset.pattern.permute.xlu0 9
    %1193 = vperm.xlu0 %1192, %v39
    %v1194 = vpop.permute.xlu0 %1193
    %vm1195 = vcmp.eq.s32.totalorder %v1194, %v57
    %v1196 = vsel %vm1195, 1, 0
    %v1197 = vcvt.s32.f32 %v1196
    %1198 = vmatprep.subr.mxu0 0.0
    %1199 = vmatpush1.msra.mxu0 %v40
    %1200 = vmatprep.subr.mxu0 0.0
    %1201 = vmatpush1.msra.mxu0 %v41
    %1202 = vmatprep.subr.mxu0 0.0
    %1203 = vmatpush1.msra.mxu0 %v42
    %1204 = vmatprep.subr.mxu0 0.0
    %1205 = vmatpush1.msra.mxu0 %v43
    %1206 = vmatprep.subr.mxu0 0.0
    %1207 = vmatpush1.msra.mxu0 %v44
    %1208 = vmatprep.subr.mxu0 0.0
    %1209 = vmatpush1.msra.mxu0 %v45
    %1210 = vmatprep.subr.mxu0 0.0
    %1211 = vmatpush1.msra.mxu0 %v46
    %1212 = vmatprep.subr.mxu0 0.0
    %1213 = vmatpush1.msra.mxu0 %v47
    %1214 = vmatprep.subr.mxu0 0.0
    %1215 = vmatpush1.msra.mxu0 %v48
    %1216 = vmatprep.subr.mxu0 0.0
    %1217 = vmatpush1.msra.mxu0 %v49
    %1218 = vmatprep.subr.mxu0 0.0
    %1219 = vmatpush1.msra.mxu0 %v50
    %1220 = vmatprep.subr.mxu0 0.0
    %1221 = vmatpush1.msra.mxu0 %v51
    %1222 = vmatprep.subr.mxu0 0.0
    %1223 = vmatpush1.msra.mxu0 %v52
    %1224 = vmatprep.subr.mxu0 0.0
    %1225 = vmatpush1.msra.mxu0 %v53
    %1226 = vmatprep.subr.mxu0 0.0
    %1227 = vmatpush1.msra.mxu0 %v54
    %1228 = vmatprep.subr.mxu0 0.0
    %1229 = vmatpush1.msra.mxu0 %v55
    %1230 = vmatprep.subr.mxu0 0.0
    %1231 = vmatpush1.msra.mxu0 0.0
    %1232 = vmatprep.subr.mxu0 0.0
    %1233 = vmatpush1.msra.mxu0 0.0
    %1234 = vmatprep.subr.mxu0 0.0
    %1235 = vmatpush1.msra.mxu0 0.0
    %1236 = vmatprep.subr.mxu0 0.0
    %1237 = vmatpush1.msra.mxu0 0.0
    %1238 = vmatprep.subr.mxu0 0.0
    %1239 = vmatpush1.msra.mxu0 0.0
    %1240 = vmatprep.subr.mxu0 0.0
    %1241 = vmatpush1.msra.mxu0 0.0
    %1242 = vmatprep.subr.mxu0 0.0
    %1243 = vmatpush1.msra.mxu0 0.0
    %1244 = vmatprep.subr.mxu0 0.0
    %1245 = vmatpush1.msra.mxu0 0.0
    %1246 = vmatprep.subr.mxu0 0.0
    %1247 = vmatpush1.msra.mxu0 0.0
    %1248 = vmatprep.subr.mxu0 0.0
    %1249 = vmatpush1.msra.mxu0 0.0
    %1250 = vmatprep.subr.mxu0 0.0
    %1251 = vmatpush1.msra.mxu0 0.0
    %1252 = vmatprep.subr.mxu0 0.0
    %1253 = vmatpush1.msra.mxu0 0.0
    %1254 = vmatprep.subr.mxu0 0.0
    %1255 = vmatpush1.msra.mxu0 0.0
    %1256 = vmatprep.subr.mxu0 0.0
    %1257 = vmatpush1.msra.mxu0 0.0
    %1258 = vmatprep.subr.mxu0 0.0
    %1259 = vmatpush1.msra.mxu0 0.0
    %1260 = vmatprep.subr.mxu0 0.0
    %1261 = vmatpush1.msra.mxu0 0.0
    %1262 = vmatprep.mubr.f32.mxu0 0.0
    %1263 = vmatmul.mubr.f32.gmra.mrb[0].mxu0 %v1197
    %v1264 = vpop.f32.mrb[0].mxu0
    %v1265 = vadd.f32 0.0, %v1264
    %v1266 = vpop.f32.mrb[0].mxu0
    %1267 = vdwg.mxu0
    %v1268 = vld [vmem:[#allocation2 + $0x48] sm:$0xff]
    %v1269 = vpack.c.bf16 %v1265, %v1265
    %v1270 = vpack.c.bf16 %v1268, %v1268
    %v1272 = vsel %vm216, %v1269, 0
    %v1275 = vsel %vm220, %v1270, 0
    %1277 = vmatprep.subr.bf16.mxu0 0
    %1278 = vmatpush1.bf16.msra.mxu0 %v1275
    %1279 = vmatprep.subr.bf16.mxu0 0
    %1280 = vmatpush1.bf16.msra.mxu0 0
    %1281 = vmatprep.subr.bf16.mxu0 0
    %1282 = vmatpush1.bf16.msra.mxu0 0
    %1283 = vmatprep.subr.bf16.mxu0 0
    %1284 = vmatpush1.bf16.msra.mxu0 0
    %1285 = vmatprep.subr.bf16.mxu0 0
    %1286 = vmatpush1.bf16.msra.mxu0 0
    %1287 = vmatprep.subr.bf16.mxu0 0
    %1288 = vmatpush1.bf16.msra.mxu0 0
    %1289 = vmatprep.subr.bf16.mxu0 0
    %1290 = vmatpush1.bf16.msra.mxu0 0
    %1291 = vmatprep.subr.bf16.mxu0 0
    %1292 = vmatpush1.bf16.msra.mxu0 0
    %1293 = vmatprep.subr.bf16.mxu0 0
    %1294 = vmatpush1.bf16.msra.mxu0 0
    %1295 = vmatprep.subr.bf16.mxu0 0
    %1296 = vmatpush1.bf16.msra.mxu0 0
    %1297 = vmatprep.subr.bf16.mxu0 0
    %1298 = vmatpush1.bf16.msra.mxu0 0
    %1299 = vmatprep.subr.bf16.mxu0 0
    %1300 = vmatpush1.bf16.msra.mxu0 0
    %1301 = vmatprep.subr.bf16.mxu0 0
    %1302 = vmatpush1.bf16.msra.mxu0 0
    %1303 = vmatprep.subr.bf16.mxu0 0
    %1304 = vmatpush1.bf16.msra.mxu0 0
    %1305 = vmatprep.subr.bf16.mxu0 0
    %1306 = vmatpush1.bf16.msra.mxu0 0
    %1307 = vmatprep.subr.bf16.mxu0 0
    %1308 = vmatpush1.bf16.msra.mxu0 0
    %1309 = vmatprep.mubr.bf16.mxu0 0
    %1310 = vmatmul.mubr.bf16.gmra.mrb[0].mxu0 %v1272
    %v1311 = vpop.f32.mrb[0].mxu0
    %v1312 = vadd.f32 0.0, %v1311
    %v1313 = vpop.f32.mrb[0].mxu0
    %v1314 = vpop.f32.mrb[0].mxu0
    %v1315 = vpop.f32.mrb[0].mxu0
    %1316 = vdwg.mxu0
    %v1317 = vadd.f32 %v1191, %v1312
    %1318 = vset.pattern.permute.xlu0 10
    %1319 = vperm.xlu0 %1318, %v39
    %v1320 = vpop.permute.xlu0 %1319
    %vm1321 = vcmp.eq.s32.totalorder %v1320, %v57
    %v1322 = vsel %vm1321, 1, 0
    %v1323 = vcvt.s32.f32 %v1322
    %1324 = vmatprep.subr.mxu0 0.0
    %1325 = vmatpush1.msra.mxu0 %v40
    %1326 = vmatprep.subr.mxu0 0.0
    %1327 = vmatpush1.msra.mxu0 %v41
    %1328 = vmatprep.subr.mxu0 0.0
    %1329 = vmatpush1.msra.mxu0 %v42
    %1330 = vmatprep.subr.mxu0 0.0
    %1331 = vmatpush1.msra.mxu0 %v43
    %1332 = vmatprep.subr.mxu0 0.0
    %1333 = vmatpush1.msra.mxu0 %v44
    %1334 = vmatprep.subr.mxu0 0.0
    %1335 = vmatpush1.msra.mxu0 %v45
    %1336 = vmatprep.subr.mxu0 0.0
    %1337 = vmatpush1.msra.mxu0 %v46
    %1338 = vmatprep.subr.mxu0 0.0
    %1339 = vmatpush1.msra.mxu0 %v47
    %1340 = vmatprep.subr.mxu0 0.0
    %1341 = vmatpush1.msra.mxu0 %v48
    %1342 = vmatprep.subr.mxu0 0.0
    %1343 = vmatpush1.msra.mxu0 %v49
    %1344 = vmatprep.subr.mxu0 0.0
    %1345 = vmatpush1.msra.mxu0 %v50
    %1346 = vmatprep.subr.mxu0 0.0
    %1347 = vmatpush1.msra.mxu0 %v51
    %1348 = vmatprep.subr.mxu0 0.0
    %1349 = vmatpush1.msra.mxu0 %v52
    %1350 = vmatprep.subr.mxu0 0.0
    %1351 = vmatpush1.msra.mxu0 %v53
    %1352 = vmatprep.subr.mxu0 0.0
    %1353 = vmatpush1.msra.mxu0 %v54
    %1354 = vmatprep.subr.mxu0 0.0
    %1355 = vmatpush1.msra.mxu0 %v55
    %1356 = vmatprep.subr.mxu0 0.0
    %1357 = vmatpush1.msra.mxu0 0.0
    %1358 = vmatprep.subr.mxu0 0.0
    %1359 = vmatpush1.msra.mxu0 0.0
    %1360 = vmatprep.subr.mxu0 0.0
    %1361 = vmatpush1.msra.mxu0 0.0
    %1362 = vmatprep.subr.mxu0 0.0
    %1363 = vmatpush1.msra.mxu0 0.0
    %1364 = vmatprep.subr.mxu0 0.0
    %1365 = vmatpush1.msra.mxu0 0.0
    %1366 = vmatprep.subr.mxu0 0.0
    %1367 = vmatpush1.msra.mxu0 0.0
    %1368 = vmatprep.subr.mxu0 0.0
    %1369 = vmatpush1.msra.mxu0 0.0
    %1370 = vmatprep.subr.mxu0 0.0
    %1371 = vmatpush1.msra.mxu0 0.0
    %1372 = vmatprep.subr.mxu0 0.0
    %1373 = vmatpush1.msra.mxu0 0.0
    %1374 = vmatprep.subr.mxu0 0.0
    %1375 = vmatpush1.msra.mxu0 0.0
    %1376 = vmatprep.subr.mxu0 0.0
    %1377 = vmatpush1.msra.mxu0 0.0
    %1378 = vmatprep.subr.mxu0 0.0
    %1379 = vmatpush1.msra.mxu0 0.0
    %1380 = vmatprep.subr.mxu0 0.0
    %1381 = vmatpush1.msra.mxu0 0.0
    %1382 = vmatprep.subr.mxu0 0.0
    %1383 = vmatpush1.msra.mxu0 0.0
    %1384 = vmatprep.subr.mxu0 0.0
    %1385 = vmatpush1.msra.mxu0 0.0
    %1386 = vmatprep.subr.mxu0 0.0
    %1387 = vmatpush1.msra.mxu0 0.0
    %1388 = vmatprep.mubr.f32.mxu0 0.0
    %1389 = vmatmul.mubr.f32.gmra.mrb[0].mxu0 %v1323
    %v1390 = vpop.f32.mrb[0].mxu0
    %v1391 = vadd.f32 0.0, %v1390
    %v1392 = vpop.f32.mrb[0].mxu0
    %1393 = vdwg.mxu0
    %v1394 = vld [vmem:[#allocation2 + $0x50] sm:$0xff]
    %v1395 = vpack.c.bf16 %v1391, %v1391
    %v1396 = vpack.c.bf16 %v1394, %v1394
    %v1398 = vsel %vm216, %v1395, 0
    %v1401 = vsel %vm220, %v1396, 0
    %1403 = vmatprep.subr.bf16.mxu0 0
    %1404 = vmatpush1.bf16.msra.mxu0 %v1401
    %1405 = vmatprep.subr.bf16.mxu0 0
    %1406 = vmatpush1.bf16.msra.mxu0 0
    %1407 = vmatprep.subr.bf16.mxu0 0
    %1408 = vmatpush1.bf16.msra.mxu0 0
    %1409 = vmatprep.subr.bf16.mxu0 0
    %1410 = vmatpush1.bf16.msra.mxu0 0
    %1411 = vmatprep.subr.bf16.mxu0 0
    %1412 = vmatpush1.bf16.msra.mxu0 0
    %1413 = vmatprep.subr.bf16.mxu0 0
    %1414 = vmatpush1.bf16.msra.mxu0 0
    %1415 = vmatprep.subr.bf16.mxu0 0
    %1416 = vmatpush1.bf16.msra.mxu0 0
    %1417 = vmatprep.subr.bf16.mxu0 0
    %1418 = vmatpush1.bf16.msra.mxu0 0
    %1419 = vmatprep.subr.bf16.mxu0 0
    %1420 = vmatpush1.bf16.msra.mxu0 0
    %1421 = vmatprep.subr.bf16.mxu0 0
    %1422 = vmatpush1.bf16.msra.mxu0 0
    %1423 = vmatprep.subr.bf16.mxu0 0
    %1424 = vmatpush1.bf16.msra.mxu0 0
    %1425 = vmatprep.subr.bf16.mxu0 0
    %1426 = vmatpush1.bf16.msra.mxu0 0
    %1427 = vmatprep.subr.bf16.mxu0 0
    %1428 = vmatpush1.bf16.msra.mxu0 0
    %1429 = vmatprep.subr.bf16.mxu0 0
    %1430 = vmatpush1.bf16.msra.mxu0 0
    %1431 = vmatprep.subr.bf16.mxu0 0
    %1432 = vmatpush1.bf16.msra.mxu0 0
    %1433 = vmatprep.subr.bf16.mxu0 0
    %1434 = vmatpush1.bf16.msra.mxu0 0
    %1435 = vmatprep.mubr.bf16.mxu0 0
    %1436 = vmatmul.mubr.bf16.gmra.mrb[0].mxu0 %v1398
    %v1437 = vpop.f32.mrb[0].mxu0
    %v1438 = vadd.f32 0.0, %v1437
    %v1439 = vpop.f32.mrb[0].mxu0
    %v1440 = vpop.f32.mrb[0].mxu0
    %v1441 = vpop.f32.mrb[0].mxu0
    %1442 = vdwg.mxu0
    %v1443 = vadd.f32 %v1317, %v1438
    %1444 = vset.pattern.permute.xlu0 11
    %1445 = vperm.xlu0 %1444, %v39
    %v1446 = vpop.permute.xlu0 %1445
    %vm1447 = vcmp.eq.s32.totalorder %v1446, %v57
    %v1448 = vsel %vm1447, 1, 0
    %v1449 = vcvt.s32.f32 %v1448
    %1450 = vmatprep.subr.mxu0 0.0
    %1451 = vmatpush1.msra.mxu0 %v40
    %1452 = vmatprep.subr.mxu0 0.0
    %1453 = vmatpush1.msra.mxu0 %v41
    %1454 = vmatprep.subr.mxu0 0.0
    %1455 = vmatpush1.msra.mxu0 %v42
    %1456 = vmatprep.subr.mxu0 0.0
    %1457 = vmatpush1.msra.mxu0 %v43
    %1458 = vmatprep.subr.mxu0 0.0
    %1459 = vmatpush1.msra.mxu0 %v44
    %1460 = vmatprep.subr.mxu0 0.0
    %1461 = vmatpush1.msra.mxu0 %v45
    %1462 = vmatprep.subr.mxu0 0.0
    %1463 = vmatpush1.msra.mxu0 %v46
    %1464 = vmatprep.subr.mxu0 0.0
    %1465 = vmatpush1.msra.mxu0 %v47
    %1466 = vmatprep.subr.mxu0 0.0
    %1467 = vmatpush1.msra.mxu0 %v48
    %1468 = vmatprep.subr.mxu0 0.0
    %1469 = vmatpush1.msra.mxu0 %v49
    %1470 = vmatprep.subr.mxu0 0.0
    %1471 = vmatpush1.msra.mxu0 %v50
    %1472 = vmatprep.subr.mxu0 0.0
    %1473 = vmatpush1.msra.mxu0 %v51
    %1474 = vmatprep.subr.mxu0 0.0
    %1475 = vmatpush1.msra.mxu0 %v52
    %1476 = vmatprep.subr.mxu0 0.0
    %1477 = vmatpush1.msra.mxu0 %v53
    %1478 = vmatprep.subr.mxu0 0.0
    %1479 = vmatpush1.msra.mxu0 %v54
    %1480 = vmatprep.subr.mxu0 0.0
    %1481 = vmatpush1.msra.mxu0 %v55
    %1482 = vmatprep.subr.mxu0 0.0
    %1483 = vmatpush1.msra.mxu0 0.0
    %1484 = vmatprep.subr.mxu0 0.0
    %1485 = vmatpush1.msra.mxu0 0.0
    %1486 = vmatprep.subr.mxu0 0.0
    %1487 = vmatpush1.msra.mxu0 0.0
    %1488 = vmatprep.subr.mxu0 0.0
    %1489 = vmatpush1.msra.mxu0 0.0
    %1490 = vmatprep.subr.mxu0 0.0
    %1491 = vmatpush1.msra.mxu0 0.0
    %1492 = vmatprep.subr.mxu0 0.0
    %1493 = vmatpush1.msra.mxu0 0.0
    %1494 = vmatprep.subr.mxu0 0.0
    %1495 = vmatpush1.msra.mxu0 0.0
    %1496 = vmatprep.subr.mxu0 0.0
    %1497 = vmatpush1.msra.mxu0 0.0
    %1498 = vmatprep.subr.mxu0 0.0
    %1499 = vmatpush1.msra.mxu0 0.0
    %1500 = vmatprep.subr.mxu0 0.0
    %1501 = vmatpush1.msra.mxu0 0.0
    %1502 = vmatprep.subr.mxu0 0.0
    %1503 = vmatpush1.msra.mxu0 0.0
    %1504 = vmatprep.subr.mxu0 0.0
    %1505 = vmatpush1.msra.mxu0 0.0
    %1506 = vmatprep.subr.mxu0 0.0
    %1507 = vmatpush1.msra.mxu0 0.0
    %1508 = vmatprep.subr.mxu0 0.0
    %1509 = vmatpush1.msra.mxu0 0.0
    %1510 = vmatprep.subr.mxu0 0.0
    %1511 = vmatpush1.msra.mxu0 0.0
    %1512 = vmatprep.subr.mxu0 0.0
    %1513 = vmatpush1.msra.mxu0 0.0
    %1514 = vmatprep.mubr.f32.mxu0 0.0
    %1515 = vmatmul.mubr.f32.gmra.mrb[0].mxu0 %v1449
    %v1516 = vpop.f32.mrb[0].mxu0
    %v1517 = vadd.f32 0.0, %v1516
    %v1518 = vpop.f32.mrb[0].mxu0
    %1519 = vdwg.mxu0
    %v1520 = vld [vmem:[#allocation2 + $0x58] sm:$0xff]
    %v1521 = vpack.c.bf16 %v1517, %v1517
    %v1522 = vpack.c.bf16 %v1520, %v1520
    %v1524 = vsel %vm216, %v1521, 0
    %v1527 = vsel %vm220, %v1522, 0
    %1529 = vmatprep.subr.bf16.mxu0 0
    %1530 = vmatpush1.bf16.msra.mxu0 %v1527
    %1531 = vmatprep.subr.bf16.mxu0 0
    %1532 = vmatpush1.bf16.msra.mxu0 0
    %1533 = vmatprep.subr.bf16.mxu0 0
    %1534 = vmatpush1.bf16.msra.mxu0 0
    %1535 = vmatprep.subr.bf16.mxu0 0
    %1536 = vmatpush1.bf16.msra.mxu0 0
    %1537 = vmatprep.subr.bf16.mxu0 0
    %1538 = vmatpush1.bf16.msra.mxu0 0
    %1539 = vmatprep.subr.bf16.mxu0 0
    %1540 = vmatpush1.bf16.msra.mxu0 0
    %1541 = vmatprep.subr.bf16.mxu0 0
    %1542 = vmatpush1.bf16.msra.mxu0 0
    %1543 = vmatprep.subr.bf16.mxu0 0
    %1544 = vmatpush1.bf16.msra.mxu0 0
    %1545 = vmatprep.subr.bf16.mxu0 0
    %1546 = vmatpush1.bf16.msra.mxu0 0
    %1547 = vmatprep.subr.bf16.mxu0 0
    %1548 = vmatpush1.bf16.msra.mxu0 0
    %1549 = vmatprep.subr.bf16.mxu0 0
    %1550 = vmatpush1.bf16.msra.mxu0 0
    %1551 = vmatprep.subr.bf16.mxu0 0
    %1552 = vmatpush1.bf16.msra.mxu0 0
    %1553 = vmatprep.subr.bf16.mxu0 0
    %1554 = vmatpush1.bf16.msra.mxu0 0
    %1555 = vmatprep.subr.bf16.mxu0 0
    %1556 = vmatpush1.bf16.msra.mxu0 0
    %1557 = vmatprep.subr.bf16.mxu0 0
    %1558 = vmatpush1.bf16.msra.mxu0 0
    %1559 = vmatprep.subr.bf16.mxu0 0
    %1560 = vmatpush1.bf16.msra.mxu0 0
    %1561 = vmatprep.mubr.bf16.mxu0 0
    %1562 = vmatmul.mubr.bf16.gmra.mrb[0].mxu0 %v1524
    %v1563 = vpop.f32.mrb[0].mxu0
    %v1564 = vadd.f32 0.0, %v1563
    %v1565 = vpop.f32.mrb[0].mxu0
    %v1566 = vpop.f32.mrb[0].mxu0
    %v1567 = vpop.f32.mrb[0].mxu0
    %1568 = vdwg.mxu0
    %v1569 = vadd.f32 %v1443, %v1564
    %1570 = vset.pattern.permute.xlu0 12
    %1571 = vperm.xlu0 %1570, %v39
    %v1572 = vpop.permute.xlu0 %1571
    %vm1573 = vcmp.eq.s32.totalorder %v1572, %v57
    %v1574 = vsel %vm1573, 1, 0
    %v1575 = vcvt.s32.f32 %v1574
    %1576 = vmatprep.subr.mxu0 0.0
    %1577 = vmatpush1.msra.mxu0 %v40
    %1578 = vmatprep.subr.mxu0 0.0
    %1579 = vmatpush1.msra.mxu0 %v41
    %1580 = vmatprep.subr.mxu0 0.0
    %1581 = vmatpush1.msra.mxu0 %v42
    %1582 = vmatprep.subr.mxu0 0.0
    %1583 = vmatpush1.msra.mxu0 %v43
    %1584 = vmatprep.subr.mxu0 0.0
    %1585 = vmatpush1.msra.mxu0 %v44
    %1586 = vmatprep.subr.mxu0 0.0
    %1587 = vmatpush1.msra.mxu0 %v45
    %1588 = vmatprep.subr.mxu0 0.0
    %1589 = vmatpush1.msra.mxu0 %v46
    %1590 = vmatprep.subr.mxu0 0.0
    %1591 = vmatpush1.msra.mxu0 %v47
    %1592 = vmatprep.subr.mxu0 0.0
    %1593 = vmatpush1.msra.mxu0 %v48
    %1594 = vmatprep.subr.mxu0 0.0
    %1595 = vmatpush1.msra.mxu0 %v49
    %1596 = vmatprep.subr.mxu0 0.0
    %1597 = vmatpush1.msra.mxu0 %v50
    %1598 = vmatprep.subr.mxu0 0.0
    %1599 = vmatpush1.msra.mxu0 %v51
    %1600 = vmatprep.subr.mxu0 0.0
    %1601 = vmatpush1.msra.mxu0 %v52
    %1602 = vmatprep.subr.mxu0 0.0
    %1603 = vmatpush1.msra.mxu0 %v53
    %1604 = vmatprep.subr.mxu0 0.0
    %1605 = vmatpush1.msra.mxu0 %v54
    %1606 = vmatprep.subr.mxu0 0.0
    %1607 = vmatpush1.msra.mxu0 %v55
    %1608 = vmatprep.subr.mxu0 0.0
    %1609 = vmatpush1.msra.mxu0 0.0
    %1610 = vmatprep.subr.mxu0 0.0
    %1611 = vmatpush1.msra.mxu0 0.0
    %1612 = vmatprep.subr.mxu0 0.0
    %1613 = vmatpush1.msra.mxu0 0.0
    %1614 = vmatprep.subr.mxu0 0.0
    %1615 = vmatpush1.msra.mxu0 0.0
    %1616 = vmatprep.subr.mxu0 0.0
    %1617 = vmatpush1.msra.mxu0 0.0
    %1618 = vmatprep.subr.mxu0 0.0
    %1619 = vmatpush1.msra.mxu0 0.0
    %1620 = vmatprep.subr.mxu0 0.0
    %1621 = vmatpush1.msra.mxu0 0.0
    %1622 = vmatprep.subr.mxu0 0.0
    %1623 = vmatpush1.msra.mxu0 0.0
    %1624 = vmatprep.subr.mxu0 0.0
    %1625 = vmatpush1.msra.mxu0 0.0
    %1626 = vmatprep.subr.mxu0 0.0
    %1627 = vmatpush1.msra.mxu0 0.0
    %1628 = vmatprep.subr.mxu0 0.0
    %1629 = vmatpush1.msra.mxu0 0.0
    %1630 = vmatprep.subr.mxu0 0.0
    %1631 = vmatpush1.msra.mxu0 0.0
    %1632 = vmatprep.subr.mxu0 0.0
    %1633 = vmatpush1.msra.mxu0 0.0
    %1634 = vmatprep.subr.mxu0 0.0
    %1635 = vmatpush1.msra.mxu0 0.0
    %1636 = vmatprep.subr.mxu0 0.0
    %1637 = vmatpush1.msra.mxu0 0.0
    %1638 = vmatprep.subr.mxu0 0.0
    %1639 = vmatpush1.msra.mxu0 0.0
    %1640 = vmatprep.mubr.f32.mxu0 0.0
    %1641 = vmatmul.mubr.f32.gmra.mrb[0].mxu0 %v1575
    %v1642 = vpop.f32.mrb[0].mxu0
    %v1643 = vadd.f32 0.0, %v1642
    %v1644 = vpop.f32.mrb[0].mxu0
    %1645 = vdwg.mxu0
    %v1646 = vld [vmem:[#allocation2 + $0x60] sm:$0xff]
    %v1647 = vpack.c.bf16 %v1643, %v1643
    %v1648 = vpack.c.bf16 %v1646, %v1646
    %v1650 = vsel %vm216, %v1647, 0
    %v1653 = vsel %vm220, %v1648, 0
    %1655 = vmatprep.subr.bf16.mxu0 0
    %1656 = vmatpush1.bf16.msra.mxu0 %v1653
    %1657 = vmatprep.subr.bf16.mxu0 0
    %1658 = vmatpush1.bf16.msra.mxu0 0
    %1659 = vmatprep.subr.bf16.mxu0 0
    %1660 = vmatpush1.bf16.msra.mxu0 0
    %1661 = vmatprep.subr.bf16.mxu0 0
    %1662 = vmatpush1.bf16.msra.mxu0 0
    %1663 = vmatprep.subr.bf16.mxu0 0
    %1664 = vmatpush1.bf16.msra.mxu0 0
    %1665 = vmatprep.subr.bf16.mxu0 0
    %1666 = vmatpush1.bf16.msra.mxu0 0
    %1667 = vmatprep.subr.bf16.mxu0 0
    %1668 = vmatpush1.bf16.msra.mxu0 0
    %1669 = vmatprep.subr.bf16.mxu0 0
    %1670 = vmatpush1.bf16.msra.mxu0 0
    %1671 = vmatprep.subr.bf16.mxu0 0
    %1672 = vmatpush1.bf16.msra.mxu0 0
    %1673 = vmatprep.subr.bf16.mxu0 0
    %1674 = vmatpush1.bf16.msra.mxu0 0
    %1675 = vmatprep.subr.bf16.mxu0 0
    %1676 = vmatpush1.bf16.msra.mxu0 0
    %1677 = vmatprep.subr.bf16.mxu0 0
    %1678 = vmatpush1.bf16.msra.mxu0 0
    %1679 = vmatprep.subr.bf16.mxu0 0
    %1680 = vmatpush1.bf16.msra.mxu0 0
    %1681 = vmatprep.subr.bf16.mxu0 0
    %1682 = vmatpush1.bf16.msra.mxu0 0
    %1683 = vmatprep.subr.bf16.mxu0 0
    %1684 = vmatpush1.bf16.msra.mxu0 0
    %1685 = vmatprep.subr.bf16.mxu0 0
    %1686 = vmatpush1.bf16.msra.mxu0 0
    %1687 = vmatprep.mubr.bf16.mxu0 0
    %1688 = vmatmul.mubr.bf16.gmra.mrb[0].mxu0 %v1650
    %v1689 = vpop.f32.mrb[0].mxu0
    %v1690 = vadd.f32 0.0, %v1689
    %v1691 = vpop.f32.mrb[0].mxu0
    %v1692 = vpop.f32.mrb[0].mxu0
    %v1693 = vpop.f32.mrb[0].mxu0
    %1694 = vdwg.mxu0
    %v1695 = vadd.f32 %v1569, %v1690
    %1696 = vset.pattern.permute.xlu0 13
    %1697 = vperm.xlu0 %1696, %v39
    %v1698 = vpop.permute.xlu0 %1697
    %vm1699 = vcmp.eq.s32.totalorder %v1698, %v57
    %v1700 = vsel %vm1699, 1, 0
    %v1701 = vcvt.s32.f32 %v1700
    %1702 = vmatprep.subr.mxu0 0.0
    %1703 = vmatpush1.msra.mxu0 %v40
    %1704 = vmatprep.subr.mxu0 0.0
    %1705 = vmatpush1.msra.mxu0 %v41
    %1706 = vmatprep.subr.mxu0 0.0
    %1707 = vmatpush1.msra.mxu0 %v42
    %1708 = vmatprep.subr.mxu0 0.0
    %1709 = vmatpush1.msra.mxu0 %v43
    %1710 = vmatprep.subr.mxu0 0.0
    %1711 = vmatpush1.msra.mxu0 %v44
    %1712 = vmatprep.subr.mxu0 0.0
    %1713 = vmatpush1.msra.mxu0 %v45
    %1714 = vmatprep.subr.mxu0 0.0
    %1715 = vmatpush1.msra.mxu0 %v46
    %1716 = vmatprep.subr.mxu0 0.0
    %1717 = vmatpush1.msra.mxu0 %v47
    %1718 = vmatprep.subr.mxu0 0.0
    %1719 = vmatpush1.msra.mxu0 %v48
    %1720 = vmatprep.subr.mxu0 0.0
    %1721 = vmatpush1.msra.mxu0 %v49
    %1722 = vmatprep.subr.mxu0 0.0
    %1723 = vmatpush1.msra.mxu0 %v50
    %1724 = vmatprep.subr.mxu0 0.0
    %1725 = vmatpush1.msra.mxu0 %v51
    %1726 = vmatprep.subr.mxu0 0.0
    %1727 = vmatpush1.msra.mxu0 %v52
    %1728 = vmatprep.subr.mxu0 0.0
    %1729 = vmatpush1.msra.mxu0 %v53
    %1730 = vmatprep.subr.mxu0 0.0
    %1731 = vmatpush1.msra.mxu0 %v54
    %1732 = vmatprep.subr.mxu0 0.0
    %1733 = vmatpush1.msra.mxu0 %v55
    %1734 = vmatprep.subr.mxu0 0.0
    %1735 = vmatpush1.msra.mxu0 0.0
    %1736 = vmatprep.subr.mxu0 0.0
    %1737 = vmatpush1.msra.mxu0 0.0
    %1738 = vmatprep.subr.mxu0 0.0
    %1739 = vmatpush1.msra.mxu0 0.0
    %1740 = vmatprep.subr.mxu0 0.0
    %1741 = vmatpush1.msra.mxu0 0.0
    %1742 = vmatprep.subr.mxu0 0.0
    %1743 = vmatpush1.msra.mxu0 0.0
    %1744 = vmatprep.subr.mxu0 0.0
    %1745 = vmatpush1.msra.mxu0 0.0
    %1746 = vmatprep.subr.mxu0 0.0
    %1747 = vmatpush1.msra.mxu0 0.0
    %1748 = vmatprep.subr.mxu0 0.0
    %1749 = vmatpush1.msra.mxu0 0.0
    %1750 = vmatprep.subr.mxu0 0.0
    %1751 = vmatpush1.msra.mxu0 0.0
    %1752 = vmatprep.subr.mxu0 0.0
    %1753 = vmatpush1.msra.mxu0 0.0
    %1754 = vmatprep.subr.mxu0 0.0
    %1755 = vmatpush1.msra.mxu0 0.0
    %1756 = vmatprep.subr.mxu0 0.0
    %1757 = vmatpush1.msra.mxu0 0.0
    %1758 = vmatprep.subr.mxu0 0.0
    %1759 = vmatpush1.msra.mxu0 0.0
    %1760 = vmatprep.subr.mxu0 0.0
    %1761 = vmatpush1.msra.mxu0 0.0
    %1762 = vmatprep.subr.mxu0 0.0
    %1763 = vmatpush1.msra.mxu0 0.0
    %1764 = vmatprep.subr.mxu0 0.0
    %1765 = vmatpush1.msra.mxu0 0.0
    %1766 = vmatprep.mubr.f32.mxu0 0.0
    %1767 = vmatmul.mubr.f32.gmra.mrb[0].mxu0 %v1701
    %v1768 = vpop.f32.mrb[0].mxu0
    %v1769 = vadd.f32 0.0, %v1768
    %v1770 = vpop.f32.mrb[0].mxu0
    %1771 = vdwg.mxu0
    %v1772 = vld [vmem:[#allocation2 + $0x68] sm:$0xff]
    %v1773 = vpack.c.bf16 %v1769, %v1769
    %v1774 = vpack.c.bf16 %v1772, %v1772
    %v1776 = vsel %vm216, %v1773, 0
    %v1779 = vsel %vm220, %v1774, 0
    %1781 = vmatprep.subr.bf16.mxu0 0
    %1782 = vmatpush1.bf16.msra.mxu0 %v1779
    %1783 = vmatprep.subr.bf16.mxu0 0
    %1784 = vmatpush1.bf16.msra.mxu0 0
    %1785 = vmatprep.subr.bf16.mxu0 0
    %1786 = vmatpush1.bf16.msra.mxu0 0
    %1787 = vmatprep.subr.bf16.mxu0 0
    %1788 = vmatpush1.bf16.msra.mxu0 0
    %1789 = vmatprep.subr.bf16.mxu0 0
    %1790 = vmatpush1.bf16.msra.mxu0 0
    %1791 = vmatprep.subr.bf16.mxu0 0
    %1792 = vmatpush1.bf16.msra.mxu0 0
    %1793 = vmatprep.subr.bf16.mxu0 0
    %1794 = vmatpush1.bf16.msra.mxu0 0
    %1795 = vmatprep.subr.bf16.mxu0 0
    %1796 = vmatpush1.bf16.msra.mxu0 0
    %1797 = vmatprep.subr.bf16.mxu0 0
    %1798 = vmatpush1.bf16.msra.mxu0 0
    %1799 = vmatprep.subr.bf16.mxu0 0
    %1800 = vmatpush1.bf16.msra.mxu0 0
    %1801 = vmatprep.subr.bf16.mxu0 0
    %1802 = vmatpush1.bf16.msra.mxu0 0
    %1803 = vmatprep.subr.bf16.mxu0 0
    %1804 = vmatpush1.bf16.msra.mxu0 0
    %1805 = vmatprep.subr.bf16.mxu0 0
    %1806 = vmatpush1.bf16.msra.mxu0 0
    %1807 = vmatprep.subr.bf16.mxu0 0
    %1808 = vmatpush1.bf16.msra.mxu0 0
    %1809 = vmatprep.subr.bf16.mxu0 0
    %1810 = vmatpush1.bf16.msra.mxu0 0
    %1811 = vmatprep.subr.bf16.mxu0 0
    %1812 = vmatpush1.bf16.msra.mxu0 0
    %1813 = vmatprep.mubr.bf16.mxu0 0
    %1814 = vmatmul.mubr.bf16.gmra.mrb[0].mxu0 %v1776
    %v1815 = vpop.f32.mrb[0].mxu0
    %v1816 = vadd.f32 0.0, %v1815
    %v1817 = vpop.f32.mrb[0].mxu0
    %v1818 = vpop.f32.mrb[0].mxu0
    %v1819 = vpop.f32.mrb[0].mxu0
    %1820 = vdwg.mxu0
    %v1821 = vadd.f32 %v1695, %v1816
    %1822 = vset.pattern.permute.xlu0 14
    %1823 = vperm.xlu0 %1822, %v39
    %v1824 = vpop.permute.xlu0 %1823
    %vm1825 = vcmp.eq.s32.totalorder %v1824, %v57
    %v1826 = vsel %vm1825, 1, 0
    %v1827 = vcvt.s32.f32 %v1826
    %1828 = vmatprep.subr.mxu0 0.0
    %1829 = vmatpush1.msra.mxu0 %v40
    %1830 = vmatprep.subr.mxu0 0.0
    %1831 = vmatpush1.msra.mxu0 %v41
    %1832 = vmatprep.subr.mxu0 0.0
    %1833 = vmatpush1.msra.mxu0 %v42
    %1834 = vmatprep.subr.mxu0 0.0
    %1835 = vmatpush1.msra.mxu0 %v43
    %1836 = vmatprep.subr.mxu0 0.0
    %1837 = vmatpush1.msra.mxu0 %v44
    %1838 = vmatprep.subr.mxu0 0.0
    %1839 = vmatpush1.msra.mxu0 %v45
    %1840 = vmatprep.subr.mxu0 0.0
    %1841 = vmatpush1.msra.mxu0 %v46
    %1842 = vmatprep.subr.mxu0 0.0
    %1843 = vmatpush1.msra.mxu0 %v47
    %1844 = vmatprep.subr.mxu0 0.0
    %1845 = vmatpush1.msra.mxu0 %v48
    %1846 = vmatprep.subr.mxu0 0.0
    %1847 = vmatpush1.msra.mxu0 %v49
    %1848 = vmatprep.subr.mxu0 0.0
    %1849 = vmatpush1.msra.mxu0 %v50
    %1850 = vmatprep.subr.mxu0 0.0
    %1851 = vmatpush1.msra.mxu0 %v51
    %1852 = vmatprep.subr.mxu0 0.0
    %1853 = vmatpush1.msra.mxu0 %v52
    %1854 = vmatprep.subr.mxu0 0.0
    %1855 = vmatpush1.msra.mxu0 %v53
    %1856 = vmatprep.subr.mxu0 0.0
    %1857 = vmatpush1.msra.mxu0 %v54
    %1858 = vmatprep.subr.mxu0 0.0
    %1859 = vmatpush1.msra.mxu0 %v55
    %1860 = vmatprep.subr.mxu0 0.0
    %1861 = vmatpush1.msra.mxu0 0.0
    %1862 = vmatprep.subr.mxu0 0.0
    %1863 = vmatpush1.msra.mxu0 0.0
    %1864 = vmatprep.subr.mxu0 0.0
    %1865 = vmatpush1.msra.mxu0 0.0
    %1866 = vmatprep.subr.mxu0 0.0
    %1867 = vmatpush1.msra.mxu0 0.0
    %1868 = vmatprep.subr.mxu0 0.0
    %1869 = vmatpush1.msra.mxu0 0.0
    %1870 = vmatprep.subr.mxu0 0.0
    %1871 = vmatpush1.msra.mxu0 0.0
    %1872 = vmatprep.subr.mxu0 0.0
    %1873 = vmatpush1.msra.mxu0 0.0
    %1874 = vmatprep.subr.mxu0 0.0
    %1875 = vmatpush1.msra.mxu0 0.0
    %1876 = vmatprep.subr.mxu0 0.0
    %1877 = vmatpush1.msra.mxu0 0.0
    %1878 = vmatprep.subr.mxu0 0.0
    %1879 = vmatpush1.msra.mxu0 0.0
    %1880 = vmatprep.subr.mxu0 0.0
    %1881 = vmatpush1.msra.mxu0 0.0
    %1882 = vmatprep.subr.mxu0 0.0
    %1883 = vmatpush1.msra.mxu0 0.0
    %1884 = vmatprep.subr.mxu0 0.0
    %1885 = vmatpush1.msra.mxu0 0.0
    %1886 = vmatprep.subr.mxu0 0.0
    %1887 = vmatpush1.msra.mxu0 0.0
    %1888 = vmatprep.subr.mxu0 0.0
    %1889 = vmatpush1.msra.mxu0 0.0
    %1890 = vmatprep.subr.mxu0 0.0
    %1891 = vmatpush1.msra.mxu0 0.0
    %1892 = vmatprep.mubr.f32.mxu0 0.0
    %1893 = vmatmul.mubr.f32.gmra.mrb[0].mxu0 %v1827
    %v1894 = vpop.f32.mrb[0].mxu0
    %v1895 = vadd.f32 0.0, %v1894
    %v1896 = vpop.f32.mrb[0].mxu0
    %1897 = vdwg.mxu0
    %v1898 = vld [vmem:[#allocation2 + $0x70] sm:$0xff]
    %v1899 = vpack.c.bf16 %v1895, %v1895
    %v1900 = vpack.c.bf16 %v1898, %v1898
    %v1902 = vsel %vm216, %v1899, 0
    %v1905 = vsel %vm220, %v1900, 0
    %1907 = vmatprep.subr.bf16.mxu0 0
    %1908 = vmatpush1.bf16.msra.mxu0 %v1905
    %1909 = vmatprep.subr.bf16.mxu0 0
    %1910 = vmatpush1.bf16.msra.mxu0 0
    %1911 = vmatprep.subr.bf16.mxu0 0
    %1912 = vmatpush1.bf16.msra.mxu0 0
    %1913 = vmatprep.subr.bf16.mxu0 0
    %1914 = vmatpush1.bf16.msra.mxu0 0
    %1915 = vmatprep.subr.bf16.mxu0 0
    %1916 = vmatpush1.bf16.msra.mxu0 0
    %1917 = vmatprep.subr.bf16.mxu0 0
    %1918 = vmatpush1.bf16.msra.mxu0 0
    %1919 = vmatprep.subr.bf16.mxu0 0
    %1920 = vmatpush1.bf16.msra.mxu0 0
    %1921 = vmatprep.subr.bf16.mxu0 0
    %1922 = vmatpush1.bf16.msra.mxu0 0
    %1923 = vmatprep.subr.bf16.mxu0 0
    %1924 = vmatpush1.bf16.msra.mxu0 0
    %1925 = vmatprep.subr.bf16.mxu0 0
    %1926 = vmatpush1.bf16.msra.mxu0 0
    %1927 = vmatprep.subr.bf16.mxu0 0
    %1928 = vmatpush1.bf16.msra.mxu0 0
    %1929 = vmatprep.subr.bf16.mxu0 0
    %1930 = vmatpush1.bf16.msra.mxu0 0
    %1931 = vmatprep.subr.bf16.mxu0 0
    %1932 = vmatpush1.bf16.msra.mxu0 0
    %1933 = vmatprep.subr.bf16.mxu0 0
    %1934 = vmatpush1.bf16.msra.mxu0 0
    %1935 = vmatprep.subr.bf16.mxu0 0
    %1936 = vmatpush1.bf16.msra.mxu0 0
    %1937 = vmatprep.subr.bf16.mxu0 0
    %1938 = vmatpush1.bf16.msra.mxu0 0
    %1939 = vmatprep.mubr.bf16.mxu0 0
    %1940 = vmatmul.mubr.bf16.gmra.mrb[0].mxu0 %v1902
    %v1941 = vpop.f32.mrb[0].mxu0
    %v1942 = vadd.f32 0.0, %v1941
    %v1943 = vpop.f32.mrb[0].mxu0
    %v1944 = vpop.f32.mrb[0].mxu0
    %v1945 = vpop.f32.mrb[0].mxu0
    %1946 = vdwg.mxu0
    %v1947 = vadd.f32 %v1821, %v1942
    %1948 = vset.pattern.permute.xlu0 15
    %1949 = vperm.xlu0 %1948, %v39
    %v1950 = vpop.permute.xlu0 %1949
    %vm1951 = vcmp.eq.s32.totalorder %v1950, %v57
    %v1952 = vsel %vm1951, 1, 0
    %v1953 = vcvt.s32.f32 %v1952
    %1954 = vmatprep.subr.mxu0 0.0
    %1955 = vmatpush1.msra.mxu0 %v40
    %1956 = vmatprep.subr.mxu0 0.0
    %1957 = vmatpush1.msra.mxu0 %v41
    %1958 = vmatprep.subr.mxu0 0.0
    %1959 = vmatpush1.msra.mxu0 %v42
    %1960 = vmatprep.subr.mxu0 0.0
    %1961 = vmatpush1.msra.mxu0 %v43
    %1962 = vmatprep.subr.mxu0 0.0
    %1963 = vmatpush1.msra.mxu0 %v44
    %1964 = vmatprep.subr.mxu0 0.0
    %1965 = vmatpush1.msra.mxu0 %v45
    %1966 = vmatprep.subr.mxu0 0.0
    %1967 = vmatpush1.msra.mxu0 %v46
    %1968 = vmatprep.subr.mxu0 0.0
    %1969 = vmatpush1.msra.mxu0 %v47
    %1970 = vmatprep.subr.mxu0 0.0
    %1971 = vmatpush1.msra.mxu0 %v48
    %1972 = vmatprep.subr.mxu0 0.0
    %1973 = vmatpush1.msra.mxu0 %v49
    %1974 = vmatprep.subr.mxu0 0.0
    %1975 = vmatpush1.msra.mxu0 %v50
    %1976 = vmatprep.subr.mxu0 0.0
    %1977 = vmatpush1.msra.mxu0 %v51
    %1978 = vmatprep.subr.mxu0 0.0
    %1979 = vmatpush1.msra.mxu0 %v52
    %1980 = vmatprep.subr.mxu0 0.0
    %1981 = vmatpush1.msra.mxu0 %v53
    %1982 = vmatprep.subr.mxu0 0.0
    %1983 = vmatpush1.msra.mxu0 %v54
    %1984 = vmatprep.subr.mxu0 0.0
    %1985 = vmatpush1.msra.mxu0 %v55
    %1986 = vmatprep.subr.mxu0 0.0
    %1987 = vmatpush1.msra.mxu0 0.0
    %1988 = vmatprep.subr.mxu0 0.0
    %1989 = vmatpush1.msra.mxu0 0.0
    %1990 = vmatprep.subr.mxu0 0.0
    %1991 = vmatpush1.msra.mxu0 0.0
    %1992 = vmatprep.subr.mxu0 0.0
    %1993 = vmatpush1.msra.mxu0 0.0
    %1994 = vmatprep.subr.mxu0 0.0
    %1995 = vmatpush1.msra.mxu0 0.0
    %1996 = vmatprep.subr.mxu0 0.0
    %1997 = vmatpush1.msra.mxu0 0.0
    %1998 = vmatprep.subr.mxu0 0.0
    %1999 = vmatpush1.msra.mxu0 0.0
    %2000 = vmatprep.subr.mxu0 0.0
    %2001 = vmatpush1.msra.mxu0 0.0
    %2002 = vmatprep.subr.mxu0 0.0
    %2003 = vmatpush1.msra.mxu0 0.0
    %2004 = vmatprep.subr.mxu0 0.0
    %2005 = vmatpush1.msra.mxu0 0.0
    %2006 = vmatprep.subr.mxu0 0.0
    %2007 = vmatpush1.msra.mxu0 0.0
    %2008 = vmatprep.subr.mxu0 0.0
    %2009 = vmatpush1.msra.mxu0 0.0
    %2010 = vmatprep.subr.mxu0 0.0
    %2011 = vmatpush1.msra.mxu0 0.0
    %2012 = vmatprep.subr.mxu0 0.0
    %2013 = vmatpush1.msra.mxu0 0.0
    %2014 = vmatprep.subr.mxu0 0.0
    %2015 = vmatpush1.msra.mxu0 0.0
    %2016 = vmatprep.subr.mxu0 0.0
    %2017 = vmatpush1.msra.mxu0 0.0
    %2018 = vmatprep.mubr.f32.mxu0 0.0
    %2019 = vmatmul.mubr.f32.gmra.mrb[0].mxu0 %v1953
    %v2020 = vpop.f32.mrb[0].mxu0
    %v2021 = vadd.f32 0.0, %v2020
    %v2022 = vpop.f32.mrb[0].mxu0
    %2023 = vdwg.mxu0
    %v2024 = vld [vmem:[#allocation2 + $0x78] sm:$0xff]
    %v2025 = vpack.c.bf16 %v2021, %v2021
    %v2026 = vpack.c.bf16 %v2024, %v2024
    %v2028 = vsel %vm216, %v2025, 0
    %v2031 = vsel %vm220, %v2026, 0
    %2033 = vmatprep.subr.bf16.mxu0 0
    %2034 = vmatpush1.bf16.msra.mxu0 %v2031
    %2035 = vmatprep.subr.bf16.mxu0 0
    %2036 = vmatpush1.bf16.msra.mxu0 0
    %2037 = vmatprep.subr.bf16.mxu0 0
    %2038 = vmatpush1.bf16.msra.mxu0 0
    %2039 = vmatprep.subr.bf16.mxu0 0
    %2040 = vmatpush1.bf16.msra.mxu0 0
    %2041 = vmatprep.subr.bf16.mxu0 0
    %2042 = vmatpush1.bf16.msra.mxu0 0
    %2043 = vmatprep.subr.bf16.mxu0 0
    %2044 = vmatpush1.bf16.msra.mxu0 0
    %2045 = vmatprep.subr.bf16.mxu0 0
    %2046 = vmatpush1.bf16.msra.mxu0 0
    %2047 = vmatprep.subr.bf16.mxu0 0
    %2048 = vmatpush1.bf16.msra.mxu0 0
    %2049 = vmatprep.subr.bf16.mxu0 0
    %2050 = vmatpush1.bf16.msra.mxu0 0
    %2051 = vmatprep.subr.bf16.mxu0 0
    %2052 = vmatpush1.bf16.msra.mxu0 0
    %2053 = vmatprep.subr.bf16.mxu0 0
    %2054 = vmatpush1.bf16.msra.mxu0 0
    %2055 = vmatprep.subr.bf16.mxu0 0
    %2056 = vmatpush1.bf16.msra.mxu0 0
    %2057 = vmatprep.subr.bf16.mxu0 0
    %2058 = vmatpush1.bf16.msra.mxu0 0
    %2059 = vmatprep.subr.bf16.mxu0 0
    %2060 = vmatpush1.bf16.msra.mxu0 0
    %2061 = vmatprep.subr.bf16.mxu0 0
    %2062 = vmatpush1.bf16.msra.mxu0 0
    %2063 = vmatprep.subr.bf16.mxu0 0
    %2064 = vmatpush1.bf16.msra.mxu0 0
    %2065 = vmatprep.mubr.bf16.mxu0 0
    %2066 = vmatmul.mubr.bf16.gmra.mrb[0].mxu0 %v2028
    %v2067 = vpop.f32.mrb[0].mxu0
    %v2068 = vadd.f32 0.0, %v2067
    %v2069 = vpop.f32.mrb[0].mxu0
    %v2070 = vpop.f32.mrb[0].mxu0
    %v2071 = vpop.f32.mrb[0].mxu0
    %2072 = vdwg.mxu0
    %v2073 = vadd.f32 %v1947, %v2068
    %2074 = vset.pattern.permute.xlu0 16
    %2075 = vperm.xlu0 %2074, %v39
    %v2076 = vpop.permute.xlu0 %2075
    %vm2077 = vcmp.eq.s32.totalorder %v2076, %v57
    %v2078 = vsel %vm2077, 1, 0
    %v2079 = vcvt.s32.f32 %v2078
    %2080 = vmatprep.subr.mxu0 0.0
    %2081 = vmatpush1.msra.mxu0 %v40
    %2082 = vmatprep.subr.mxu0 0.0
    %2083 = vmatpush1.msra.mxu0 %v41
    %2084 = vmatprep.subr.mxu0 0.0
    %2085 = vmatpush1.msra.mxu0 %v42
    %2086 = vmatprep.subr.mxu0 0.0
    %2087 = vmatpush1.msra.mxu0 %v43
    %2088 = vmatprep.subr.mxu0 0.0
    %2089 = vmatpush1.msra.mxu0 %v44
    %2090 = vmatprep.subr.mxu0 0.0
    %2091 = vmatpush1.msra.mxu0 %v45
    %2092 = vmatprep.subr.mxu0 0.0
    %2093 = vmatpush1.msra.mxu0 %v46
    %2094 = vmatprep.subr.mxu0 0.0
    %2095 = vmatpush1.msra.mxu0 %v47
    %2096 = vmatprep.subr.mxu0 0.0
    %2097 = vmatpush1.msra.mxu0 %v48
    %2098 = vmatprep.subr.mxu0 0.0
    %2099 = vmatpush1.msra.mxu0 %v49
    %2100 = vmatprep.subr.mxu0 0.0
    %2101 = vmatpush1.msra.mxu0 %v50
    %2102 = vmatprep.subr.mxu0 0.0
    %2103 = vmatpush1.msra.mxu0 %v51
    %2104 = vmatprep.subr.mxu0 0.0
    %2105 = vmatpush1.msra.mxu0 %v52
    %2106 = vmatprep.subr.mxu0 0.0
    %2107 = vmatpush1.msra.mxu0 %v53
    %2108 = vmatprep.subr.mxu0 0.0
    %2109 = vmatpush1.msra.mxu0 %v54
    %2110 = vmatprep.subr.mxu0 0.0
    %2111 = vmatpush1.msra.mxu0 %v55
    %2112 = vmatprep.subr.mxu0 0.0
    %2113 = vmatpush1.msra.mxu0 0.0
    %2114 = vmatprep.subr.mxu0 0.0
    %2115 = vmatpush1.msra.mxu0 0.0
    %2116 = vmatprep.subr.mxu0 0.0
    %2117 = vmatpush1.msra.mxu0 0.0
    %2118 = vmatprep.subr.mxu0 0.0
    %2119 = vmatpush1.msra.mxu0 0.0
    %2120 = vmatprep.subr.mxu0 0.0
    %2121 = vmatpush1.msra.mxu0 0.0
    %2122 = vmatprep.subr.mxu0 0.0
    %2123 = vmatpush1.msra.mxu0 0.0
    %2124 = vmatprep.subr.mxu0 0.0
    %2125 = vmatpush1.msra.mxu0 0.0
    %2126 = vmatprep.subr.mxu0 0.0
    %2127 = vmatpush1.msra.mxu0 0.0
    %2128 = vmatprep.subr.mxu0 0.0
    %2129 = vmatpush1.msra.mxu0 0.0
    %2130 = vmatprep.subr.mxu0 0.0
    %2131 = vmatpush1.msra.mxu0 0.0
    %2132 = vmatprep.subr.mxu0 0.0
    %2133 = vmatpush1.msra.mxu0 0.0
    %2134 = vmatprep.subr.mxu0 0.0
    %2135 = vmatpush1.msra.mxu0 0.0
    %2136 = vmatprep.subr.mxu0 0.0
    %2137 = vmatpush1.msra.mxu0 0.0
    %2138 = vmatprep.subr.mxu0 0.0
    %2139 = vmatpush1.msra.mxu0 0.0
    %2140 = vmatprep.subr.mxu0 0.0
    %2141 = vmatpush1.msra.mxu0 0.0
    %2142 = vmatprep.subr.mxu0 0.0
    %2143 = vmatpush1.msra.mxu0 0.0
    %2144 = vmatprep.mubr.f32.mxu0 0.0
    %2145 = vmatmul.mubr.f32.gmra.mrb[0].mxu0 %v2079
    %v2146 = vpop.f32.mrb[0].mxu0
    %v2147 = vadd.f32 0.0, %v2146
    %v2148 = vpop.f32.mrb[0].mxu0
    %2149 = vdwg.mxu0
    %v2150 = vld [vmem:[#allocation2 + $0x80] sm:$0xff]
    %v2151 = vpack.c.bf16 %v2147, %v2147
    %v2152 = vpack.c.bf16 %v2150, %v2150
    %v2154 = vsel %vm216, %v2151, 0
    %v2157 = vsel %vm220, %v2152, 0
    %2159 = vmatprep.subr.bf16.mxu0 0
    %2160 = vmatpush1.bf16.msra.mxu0 %v2157
    %2161 = vmatprep.subr.bf16.mxu0 0
    %2162 = vmatpush1.bf16.msra.mxu0 0
    %2163 = vmatprep.subr.bf16.mxu0 0
    %2164 = vmatpush1.bf16.msra.mxu0 0
    %2165 = vmatprep.subr.bf16.mxu0 0
    %2166 = vmatpush1.bf16.msra.mxu0 0
    %2167 = vmatprep.subr.bf16.mxu0 0
    %2168 = vmatpush1.bf16.msra.mxu0 0
    %2169 = vmatprep.subr.bf16.mxu0 0
    %2170 = vmatpush1.bf16.msra.mxu0 0
    %2171 = vmatprep.subr.bf16.mxu0 0
    %2172 = vmatpush1.bf16.msra.mxu0 0
    %2173 = vmatprep.subr.bf16.mxu0 0
    %2174 = vmatpush1.bf16.msra.mxu0 0
    %2175 = vmatprep.subr.bf16.mxu0 0
    %2176 = vmatpush1.bf16.msra.mxu0 0
    %2177 = vmatprep.subr.bf16.mxu0 0
    %2178 = vmatpush1.bf16.msra.mxu0 0
    %2179 = vmatprep.subr.bf16.mxu0 0
    %2180 = vmatpush1.bf16.msra.mxu0 0
    %2181 = vmatprep.subr.bf16.mxu0 0
    %2182 = vmatpush1.bf16.msra.mxu0 0
    %2183 = vmatprep.subr.bf16.mxu0 0
    %2184 = vmatpush1.bf16.msra.mxu0 0
    %2185 = vmatprep.subr.bf16.mxu0 0
    %2186 = vmatpush1.bf16.msra.mxu0 0
    %2187 = vmatprep.subr.bf16.mxu0 0
    %2188 = vmatpush1.bf16.msra.mxu0 0
    %2189 = vmatprep.subr.bf16.mxu0 0
    %2190 = vmatpush1.bf16.msra.mxu0 0
    %2191 = vmatprep.mubr.bf16.mxu0 0
    %2192 = vmatmul.mubr.bf16.gmra.mrb[0].mxu0 %v2154
    %v2193 = vpop.f32.mrb[0].mxu0
    %v2194 = vadd.f32 0.0, %v2193
    %v2195 = vpop.f32.mrb[0].mxu0
    %v2196 = vpop.f32.mrb[0].mxu0
    %v2197 = vpop.f32.mrb[0].mxu0
    %2198 = vdwg.mxu0
    %v2199 = vadd.f32 %v2073, %v2194
    %2200 = vset.pattern.permute.xlu0 17
    %2201 = vperm.xlu0 %2200, %v39
    %v2202 = vpop.permute.xlu0 %2201
    %vm2203 = vcmp.eq.s32.totalorder %v2202, %v57
    %v2204 = vsel %vm2203, 1, 0
    %v2205 = vcvt.s32.f32 %v2204
    %2206 = vmatprep.subr.mxu0 0.0
    %2207 = vmatpush1.msra.mxu0 %v40
    %2208 = vmatprep.subr.mxu0 0.0
    %2209 = vmatpush1.msra.mxu0 %v41
    %2210 = vmatprep.subr.mxu0 0.0
    %2211 = vmatpush1.msra.mxu0 %v42
    %2212 = vmatprep.subr.mxu0 0.0
    %2213 = vmatpush1.msra.mxu0 %v43
    %2214 = vmatprep.subr.mxu0 0.0
    %2215 = vmatpush1.msra.mxu0 %v44
    %2216 = vmatprep.subr.mxu0 0.0
    %2217 = vmatpush1.msra.mxu0 %v45
    %2218 = vmatprep.subr.mxu0 0.0
    %2219 = vmatpush1.msra.mxu0 %v46
    %2220 = vmatprep.subr.mxu0 0.0
    %2221 = vmatpush1.msra.mxu0 %v47
    %2222 = vmatprep.subr.mxu0 0.0
    %2223 = vmatpush1.msra.mxu0 %v48
    %2224 = vmatprep.subr.mxu0 0.0
    %2225 = vmatpush1.msra.mxu0 %v49
    %2226 = vmatprep.subr.mxu0 0.0
    %2227 = vmatpush1.msra.mxu0 %v50
    %2228 = vmatprep.subr.mxu0 0.0
    %2229 = vmatpush1.msra.mxu0 %v51
    %2230 = vmatprep.subr.mxu0 0.0
    %2231 = vmatpush1.msra.mxu0 %v52
    %2232 = vmatprep.subr.mxu0 0.0
    %2233 = vmatpush1.msra.mxu0 %v53
    %2234 = vmatprep.subr.mxu0 0.0
    %2235 = vmatpush1.msra.mxu0 %v54
    %2236 = vmatprep.subr.mxu0 0.0
    %2237 = vmatpush1.msra.mxu0 %v55
    %2238 = vmatprep.subr.mxu0 0.0
    %2239 = vmatpush1.msra.mxu0 0.0
    %2240 = vmatprep.subr.mxu0 0.0
    %2241 = vmatpush1.msra.mxu0 0.0
    %2242 = vmatprep.subr.mxu0 0.0
    %2243 = vmatpush1.msra.mxu0 0.0
    %2244 = vmatprep.subr.mxu0 0.0
    %2245 = vmatpush1.msra.mxu0 0.0
    %2246 = vmatprep.subr.mxu0 0.0
    %2247 = vmatpush1.msra.mxu0 0.0
    %2248 = vmatprep.subr.mxu0 0.0
    %2249 = vmatpush1.msra.mxu0 0.0
    %2250 = vmatprep.subr.mxu0 0.0
    %2251 = vmatpush1.msra.mxu0 0.0
    %2252 = vmatprep.subr.mxu0 0.0
    %2253 = vmatpush1.msra.mxu0 0.0
    %2254 = vmatprep.subr.mxu0 0.0
    %2255 = vmatpush1.msra.mxu0 0.0
    %2256 = vmatprep.subr.mxu0 0.0
    %2257 = vmatpush1.msra.mxu0 0.0
    %2258 = vmatprep.subr.mxu0 0.0
    %2259 = vmatpush1.msra.mxu0 0.0
    %2260 = vmatprep.subr.mxu0 0.0
    %2261 = vmatpush1.msra.mxu0 0.0
    %2262 = vmatprep.subr.mxu0 0.0
    %2263 = vmatpush1.msra.mxu0 0.0
    %2264 = vmatprep.subr.mxu0 0.0
    %2265 = vmatpush1.msra.mxu0 0.0
    %2266 = vmatprep.subr.mxu0 0.0
    %2267 = vmatpush1.msra.mxu0 0.0
    %2268 = vmatprep.subr.mxu0 0.0
    %2269 = vmatpush1.msra.mxu0 0.0
    %2270 = vmatprep.mubr.f32.mxu0 0.0
    %2271 = vmatmul.mubr.f32.gmra.mrb[0].mxu0 %v2205
    %v2272 = vpop.f32.mrb[0].mxu0
    %v2273 = vadd.f32 0.0, %v2272
    %v2274 = vpop.f32.mrb[0].mxu0
    %2275 = vdwg.mxu0
    %v2276 = vld [vmem:[#allocation2 + $0x88] sm:$0xff]
    %v2277 = vpack.c.bf16 %v2273, %v2273
    %v2278 = vpack.c.bf16 %v2276, %v2276
    %v2280 = vsel %vm216, %v2277, 0
    %v2283 = vsel %vm220, %v2278, 0
    %2285 = vmatprep.subr.bf16.mxu0 0
    %2286 = vmatpush1.bf16.msra.mxu0 %v2283
    %2287 = vmatprep.subr.bf16.mxu0 0
    %2288 = vmatpush1.bf16.msra.mxu0 0
    %2289 = vmatprep.subr.bf16.mxu0 0
    %2290 = vmatpush1.bf16.msra.mxu0 0
    %2291 = vmatprep.subr.bf16.mxu0 0
    %2292 = vmatpush1.bf16.msra.mxu0 0
    %2293 = vmatprep.subr.bf16.mxu0 0
    %2294 = vmatpush1.bf16.msra.mxu0 0
    %2295 = vmatprep.subr.bf16.mxu0 0
    %2296 = vmatpush1.bf16.msra.mxu0 0
    %2297 = vmatprep.subr.bf16.mxu0 0
    %2298 = vmatpush1.bf16.msra.mxu0 0
    %2299 = vmatprep.subr.bf16.mxu0 0
    %2300 = vmatpush1.bf16.msra.mxu0 0
    %2301 = vmatprep.subr.bf16.mxu0 0
    %2302 = vmatpush1.bf16.msra.mxu0 0
    %2303 = vmatprep.subr.bf16.mxu0 0
    %2304 = vmatpush1.bf16.msra.mxu0 0
    %2305 = vmatprep.subr.bf16.mxu0 0
    %2306 = vmatpush1.bf16.msra.mxu0 0
    %2307 = vmatprep.subr.bf16.mxu0 0
    %2308 = vmatpush1.bf16.msra.mxu0 0
    %2309 = vmatprep.subr.bf16.mxu0 0
    %2310 = vmatpush1.bf16.msra.mxu0 0
    %2311 = vmatprep.subr.bf16.mxu0 0
    %2312 = vmatpush1.bf16.msra.mxu0 0
    %2313 = vmatprep.subr.bf16.mxu0 0
    %2314 = vmatpush1.bf16.msra.mxu0 0
    %2315 = vmatprep.subr.bf16.mxu0 0
    %2316 = vmatpush1.bf16.msra.mxu0 0
    %2317 = vmatprep.mubr.bf16.mxu0 0
    %2318 = vmatmul.mubr.bf16.gmra.mrb[0].mxu0 %v2280
    %v2319 = vpop.f32.mrb[0].mxu0
    %v2320 = vadd.f32 0.0, %v2319
    %v2321 = vpop.f32.mrb[0].mxu0
    %v2322 = vpop.f32.mrb[0].mxu0
    %v2323 = vpop.f32.mrb[0].mxu0
    %2324 = vdwg.mxu0
    %v2325 = vadd.f32 %v2199, %v2320
    %2326 = vset.pattern.permute.xlu0 18
    %2327 = vperm.xlu0 %2326, %v39
    %v2328 = vpop.permute.xlu0 %2327
    %vm2329 = vcmp.eq.s32.totalorder %v2328, %v57
    %v2330 = vsel %vm2329, 1, 0
    %v2331 = vcvt.s32.f32 %v2330
    %2332 = vmatprep.subr.mxu0 0.0
    %2333 = vmatpush1.msra.mxu0 %v40
    %2334 = vmatprep.subr.mxu0 0.0
    %2335 = vmatpush1.msra.mxu0 %v41
    %2336 = vmatprep.subr.mxu0 0.0
    %2337 = vmatpush1.msra.mxu0 %v42
    %2338 = vmatprep.subr.mxu0 0.0
    %2339 = vmatpush1.msra.mxu0 %v43
    %2340 = vmatprep.subr.mxu0 0.0
    %2341 = vmatpush1.msra.mxu0 %v44
    %2342 = vmatprep.subr.mxu0 0.0
    %2343 = vmatpush1.msra.mxu0 %v45
    %2344 = vmatprep.subr.mxu0 0.0
    %2345 = vmatpush1.msra.mxu0 %v46
    %2346 = vmatprep.subr.mxu0 0.0
    %2347 = vmatpush1.msra.mxu0 %v47
    %2348 = vmatprep.subr.mxu0 0.0
    %2349 = vmatpush1.msra.mxu0 %v48
    %2350 = vmatprep.subr.mxu0 0.0
    %2351 = vmatpush1.msra.mxu0 %v49
    %2352 = vmatprep.subr.mxu0 0.0
    %2353 = vmatpush1.msra.mxu0 %v50
    %2354 = vmatprep.subr.mxu0 0.0
    %2355 = vmatpush1.msra.mxu0 %v51
    %2356 = vmatprep.subr.mxu0 0.0
    %2357 = vmatpush1.msra.mxu0 %v52
    %2358 = vmatprep.subr.mxu0 0.0
    %2359 = vmatpush1.msra.mxu0 %v53
    %2360 = vmatprep.subr.mxu0 0.0
    %2361 = vmatpush1.msra.mxu0 %v54
    %2362 = vmatprep.subr.mxu0 0.0
    %2363 = vmatpush1.msra.mxu0 %v55
    %2364 = vmatprep.subr.mxu0 0.0
    %2365 = vmatpush1.msra.mxu0 0.0
    %2366 = vmatprep.subr.mxu0 0.0
    %2367 = vmatpush1.msra.mxu0 0.0
    %2368 = vmatprep.subr.mxu0 0.0
    %2369 = vmatpush1.msra.mxu0 0.0
    %2370 = vmatprep.subr.mxu0 0.0
    %2371 = vmatpush1.msra.mxu0 0.0
    %2372 = vmatprep.subr.mxu0 0.0
    %2373 = vmatpush1.msra.mxu0 0.0
    %2374 = vmatprep.subr.mxu0 0.0
    %2375 = vmatpush1.msra.mxu0 0.0
    %2376 = vmatprep.subr.mxu0 0.0
    %2377 = vmatpush1.msra.mxu0 0.0
    %2378 = vmatprep.subr.mxu0 0.0
    %2379 = vmatpush1.msra.mxu0 0.0
    %2380 = vmatprep.subr.mxu0 0.0
    %2381 = vmatpush1.msra.mxu0 0.0
    %2382 = vmatprep.subr.mxu0 0.0
    %2383 = vmatpush1.msra.mxu0 0.0
    %2384 = vmatprep.subr.mxu0 0.0
    %2385 = vmatpush1.msra.mxu0 0.0
    %2386 = vmatprep.subr.mxu0 0.0
    %2387 = vmatpush1.msra.mxu0 0.0
    %2388 = vmatprep.subr.mxu0 0.0
    %2389 = vmatpush1.msra.mxu0 0.0
    %2390 = vmatprep.subr.mxu0 0.0
    %2391 = vmatpush1.msra.mxu0 0.0
    %2392 = vmatprep.subr.mxu0 0.0
    %2393 = vmatpush1.msra.mxu0 0.0
    %2394 = vmatprep.subr.mxu0 0.0
    %2395 = vmatpush1.msra.mxu0 0.0
    %2396 = vmatprep.mubr.f32.mxu0 0.0
    %2397 = vmatmul.mubr.f32.gmra.mrb[0].mxu0 %v2331
    %v2398 = vpop.f32.mrb[0].mxu0
    %v2399 = vadd.f32 0.0, %v2398
    %v2400 = vpop.f32.mrb[0].mxu0
    %2401 = vdwg.mxu0
    %v2402 = vld [vmem:[#allocation2 + $0x90] sm:$0xff]
    %v2403 = vpack.c.bf16 %v2399, %v2399
    %v2404 = vpack.c.bf16 %v2402, %v2402
    %v2406 = vsel %vm216, %v2403, 0
    %v2409 = vsel %vm220, %v2404, 0
    %2411 = vmatprep.subr.bf16.mxu0 0
    %2412 = vmatpush1.bf16.msra.mxu0 %v2409
    %2413 = vmatprep.subr.bf16.mxu0 0
    %2414 = vmatpush1.bf16.msra.mxu0 0
    %2415 = vmatprep.subr.bf16.mxu0 0
    %2416 = vmatpush1.bf16.msra.mxu0 0
    %2417 = vmatprep.subr.bf16.mxu0 0
    %2418 = vmatpush1.bf16.msra.mxu0 0
    %2419 = vmatprep.subr.bf16.mxu0 0
    %2420 = vmatpush1.bf16.msra.mxu0 0
    %2421 = vmatprep.subr.bf16.mxu0 0
    %2422 = vmatpush1.bf16.msra.mxu0 0
    %2423 = vmatprep.subr.bf16.mxu0 0
    %2424 = vmatpush1.bf16.msra.mxu0 0
    %2425 = vmatprep.subr.bf16.mxu0 0
    %2426 = vmatpush1.bf16.msra.mxu0 0
    %2427 = vmatprep.subr.bf16.mxu0 0
    %2428 = vmatpush1.bf16.msra.mxu0 0
    %2429 = vmatprep.subr.bf16.mxu0 0
    %2430 = vmatpush1.bf16.msra.mxu0 0
    %2431 = vmatprep.subr.bf16.mxu0 0
    %2432 = vmatpush1.bf16.msra.mxu0 0
    %2433 = vmatprep.subr.bf16.mxu0 0
    %2434 = vmatpush1.bf16.msra.mxu0 0
    %2435 = vmatprep.subr.bf16.mxu0 0
    %2436 = vmatpush1.bf16.msra.mxu0 0
    %2437 = vmatprep.subr.bf16.mxu0 0
    %2438 = vmatpush1.bf16.msra.mxu0 0
    %2439 = vmatprep.subr.bf16.mxu0 0
    %2440 = vmatpush1.bf16.msra.mxu0 0
    %2441 = vmatprep.subr.bf16.mxu0 0
    %2442 = vmatpush1.bf16.msra.mxu0 0
    %2443 = vmatprep.mubr.bf16.mxu0 0
    %2444 = vmatmul.mubr.bf16.gmra.mrb[0].mxu0 %v2406
    %v2445 = vpop.f32.mrb[0].mxu0
    %v2446 = vadd.f32 0.0, %v2445
    %v2447 = vpop.f32.mrb[0].mxu0
    %v2448 = vpop.f32.mrb[0].mxu0
    %v2449 = vpop.f32.mrb[0].mxu0
    %2450 = vdwg.mxu0
    %v2451 = vadd.f32 %v2325, %v2446
    %2452 = vset.pattern.permute.xlu0 19
    %2453 = vperm.xlu0 %2452, %v39
    %v2454 = vpop.permute.xlu0 %2453
    %vm2455 = vcmp.eq.s32.totalorder %v2454, %v57
    %v2456 = vsel %vm2455, 1, 0
    %v2457 = vcvt.s32.f32 %v2456
    %2458 = vmatprep.subr.mxu0 0.0
    %2459 = vmatpush1.msra.mxu0 %v40
    %2460 = vmatprep.subr.mxu0 0.0
    %2461 = vmatpush1.msra.mxu0 %v41
    %2462 = vmatprep.subr.mxu0 0.0
    %2463 = vmatpush1.msra.mxu0 %v42
    %2464 = vmatprep.subr.mxu0 0.0
    %2465 = vmatpush1.msra.mxu0 %v43
    %2466 = vmatprep.subr.mxu0 0.0
    %2467 = vmatpush1.msra.mxu0 %v44
    %2468 = vmatprep.subr.mxu0 0.0
    %2469 = vmatpush1.msra.mxu0 %v45
    %2470 = vmatprep.subr.mxu0 0.0
    %2471 = vmatpush1.msra.mxu0 %v46
    %2472 = vmatprep.subr.mxu0 0.0
    %2473 = vmatpush1.msra.mxu0 %v47
    %2474 = vmatprep.subr.mxu0 0.0
    %2475 = vmatpush1.msra.mxu0 %v48
    %2476 = vmatprep.subr.mxu0 0.0
    %2477 = vmatpush1.msra.mxu0 %v49
    %2478 = vmatprep.subr.mxu0 0.0
    %2479 = vmatpush1.msra.mxu0 %v50
    %2480 = vmatprep.subr.mxu0 0.0
    %2481 = vmatpush1.msra.mxu0 %v51
    %2482 = vmatprep.subr.mxu0 0.0
    %2483 = vmatpush1.msra.mxu0 %v52
    %2484 = vmatprep.subr.mxu0 0.0
    %2485 = vmatpush1.msra.mxu0 %v53
    %2486 = vmatprep.subr.mxu0 0.0
    %2487 = vmatpush1.msra.mxu0 %v54
    %2488 = vmatprep.subr.mxu0 0.0
    %2489 = vmatpush1.msra.mxu0 %v55
    %2490 = vmatprep.subr.mxu0 0.0
    %2491 = vmatpush1.msra.mxu0 0.0
    %2492 = vmatprep.subr.mxu0 0.0
    %2493 = vmatpush1.msra.mxu0 0.0
    %2494 = vmatprep.subr.mxu0 0.0
    %2495 = vmatpush1.msra.mxu0 0.0
    %2496 = vmatprep.subr.mxu0 0.0
    %2497 = vmatpush1.msra.mxu0 0.0
    %2498 = vmatprep.subr.mxu0 0.0
    %2499 = vmatpush1.msra.mxu0 0.0
    %2500 = vmatprep.subr.mxu0 0.0
    %2501 = vmatpush1.msra.mxu0 0.0
    %2502 = vmatprep.subr.mxu0 0.0
    %2503 = vmatpush1.msra.mxu0 0.0
    %2504 = vmatprep.subr.mxu0 0.0
    %2505 = vmatpush1.msra.mxu0 0.0
    %2506 = vmatprep.subr.mxu0 0.0
    %2507 = vmatpush1.msra.mxu0 0.0
    %2508 = vmatprep.subr.mxu0 0.0
    %2509 = vmatpush1.msra.mxu0 0.0
    %2510 = vmatprep.subr.mxu0 0.0
    %2511 = vmatpush1.msra.mxu0 0.0
    %2512 = vmatprep.subr.mxu0 0.0
    %2513 = vmatpush1.msra.mxu0 0.0
    %2514 = vmatprep.subr.mxu0 0.0
    %2515 = vmatpush1.msra.mxu0 0.0
    %2516 = vmatprep.subr.mxu0 0.0
    %2517 = vmatpush1.msra.mxu0 0.0
    %2518 = vmatprep.subr.mxu0 0.0
    %2519 = vmatpush1.msra.mxu0 0.0
    %2520 = vmatprep.subr.mxu0 0.0
    %2521 = vmatpush1.msra.mxu0 0.0
    %2522 = vmatprep.mubr.f32.mxu0 0.0
    %2523 = vmatmul.mubr.f32.gmra.mrb[0].mxu0 %v2457
    %v2524 = vpop.f32.mrb[0].mxu0
    %v2525 = vadd.f32 0.0, %v2524
    %v2526 = vpop.f32.mrb[0].mxu0
    %2527 = vdwg.mxu0
    %v2528 = vld [vmem:[#allocation2 + $0x98] sm:$0xff]
    %v2529 = vpack.c.bf16 %v2525, %v2525
    %v2530 = vpack.c.bf16 %v2528, %v2528
    %v2532 = vsel %vm216, %v2529, 0
    %v2535 = vsel %vm220, %v2530, 0
    %2537 = vmatprep.subr.bf16.mxu0 0
    %2538 = vmatpush1.bf16.msra.mxu0 %v2535
    %2539 = vmatprep.subr.bf16.mxu0 0
    %2540 = vmatpush1.bf16.msra.mxu0 0
    %2541 = vmatprep.subr.bf16.mxu0 0
    %2542 = vmatpush1.bf16.msra.mxu0 0
    %2543 = vmatprep.subr.bf16.mxu0 0
    %2544 = vmatpush1.bf16.msra.mxu0 0
    %2545 = vmatprep.subr.bf16.mxu0 0
    %2546 = vmatpush1.bf16.msra.mxu0 0
    %2547 = vmatprep.subr.bf16.mxu0 0
    %2548 = vmatpush1.bf16.msra.mxu0 0
    %2549 = vmatprep.subr.bf16.mxu0 0
    %2550 = vmatpush1.bf16.msra.mxu0 0
    %2551 = vmatprep.subr.bf16.mxu0 0
    %2552 = vmatpush1.bf16.msra.mxu0 0
    %2553 = vmatprep.subr.bf16.mxu0 0
    %2554 = vmatpush1.bf16.msra.mxu0 0
    %2555 = vmatprep.subr.bf16.mxu0 0
    %2556 = vmatpush1.bf16.msra.mxu0 0
    %2557 = vmatprep.subr.bf16.mxu0 0
    %2558 = vmatpush1.bf16.msra.mxu0 0
    %2559 = vmatprep.subr.bf16.mxu0 0
    %2560 = vmatpush1.bf16.msra.mxu0 0
    %2561 = vmatprep.subr.bf16.mxu0 0
    %2562 = vmatpush1.bf16.msra.mxu0 0
    %2563 = vmatprep.subr.bf16.mxu0 0
    %2564 = vmatpush1.bf16.msra.mxu0 0
    %2565 = vmatprep.subr.bf16.mxu0 0
    %2566 = vmatpush1.bf16.msra.mxu0 0
    %2567 = vmatprep.subr.bf16.mxu0 0
    %2568 = vmatpush1.bf16.msra.mxu0 0
    %2569 = vmatprep.mubr.bf16.mxu0 0
    %2570 = vmatmul.mubr.bf16.gmra.mrb[0].mxu0 %v2532
    %v2571 = vpop.f32.mrb[0].mxu0
    %v2572 = vadd.f32 0.0, %v2571
    %v2573 = vpop.f32.mrb[0].mxu0
    %v2574 = vpop.f32.mrb[0].mxu0
    %v2575 = vpop.f32.mrb[0].mxu0
    %2576 = vdwg.mxu0
    %v2577 = vadd.f32 %v2451, %v2572
    %2578 = vset.pattern.permute.xlu0 20
    %2579 = vperm.xlu0 %2578, %v39
    %v2580 = vpop.permute.xlu0 %2579
    %vm2581 = vcmp.eq.s32.totalorder %v2580, %v57
    %v2582 = vsel %vm2581, 1, 0
    %v2583 = vcvt.s32.f32 %v2582
    %2584 = vmatprep.subr.mxu0 0.0
    %2585 = vmatpush1.msra.mxu0 %v40
    %2586 = vmatprep.subr.mxu0 0.0
    %2587 = vmatpush1.msra.mxu0 %v41
    %2588 = vmatprep.subr.mxu0 0.0
    %2589 = vmatpush1.msra.mxu0 %v42
    %2590 = vmatprep.subr.mxu0 0.0
    %2591 = vmatpush1.msra.mxu0 %v43
    %2592 = vmatprep.subr.mxu0 0.0
    %2593 = vmatpush1.msra.mxu0 %v44
    %2594 = vmatprep.subr.mxu0 0.0
    %2595 = vmatpush1.msra.mxu0 %v45
    %2596 = vmatprep.subr.mxu0 0.0
    %2597 = vmatpush1.msra.mxu0 %v46
    %2598 = vmatprep.subr.mxu0 0.0
    %2599 = vmatpush1.msra.mxu0 %v47
    %2600 = vmatprep.subr.mxu0 0.0
    %2601 = vmatpush1.msra.mxu0 %v48
    %2602 = vmatprep.subr.mxu0 0.0
    %2603 = vmatpush1.msra.mxu0 %v49
    %2604 = vmatprep.subr.mxu0 0.0
    %2605 = vmatpush1.msra.mxu0 %v50
    %2606 = vmatprep.subr.mxu0 0.0
    %2607 = vmatpush1.msra.mxu0 %v51
    %2608 = vmatprep.subr.mxu0 0.0
    %2609 = vmatpush1.msra.mxu0 %v52
    %2610 = vmatprep.subr.mxu0 0.0
    %2611 = vmatpush1.msra.mxu0 %v53
    %2612 = vmatprep.subr.mxu0 0.0
    %2613 = vmatpush1.msra.mxu0 %v54
    %2614 = vmatprep.subr.mxu0 0.0
    %2615 = vmatpush1.msra.mxu0 %v55
    %2616 = vmatprep.subr.mxu0 0.0
    %2617 = vmatpush1.msra.mxu0 0.0
    %2618 = vmatprep.subr.mxu0 0.0
    %2619 = vmatpush1.msra.mxu0 0.0
    %2620 = vmatprep.subr.mxu0 0.0
    %2621 = vmatpush1.msra.mxu0 0.0
    %2622 = vmatprep.subr.mxu0 0.0
    %2623 = vmatpush1.msra.mxu0 0.0
    %2624 = vmatprep.subr.mxu0 0.0
    %2625 = vmatpush1.msra.mxu0 0.0
    %2626 = vmatprep.subr.mxu0 0.0
    %2627 = vmatpush1.msra.mxu0 0.0
    %2628 = vmatprep.subr.mxu0 0.0
    %2629 = vmatpush1.msra.mxu0 0.0
    %2630 = vmatprep.subr.mxu0 0.0
    %2631 = vmatpush1.msra.mxu0 0.0
    %2632 = vmatprep.subr.mxu0 0.0
    %2633 = vmatpush1.msra.mxu0 0.0
    %2634 = vmatprep.subr.mxu0 0.0
    %2635 = vmatpush1.msra.mxu0 0.0
    %2636 = vmatprep.subr.mxu0 0.0
    %2637 = vmatpush1.msra.mxu0 0.0
    %2638 = vmatprep.subr.mxu0 0.0
    %2639 = vmatpush1.msra.mxu0 0.0
    %2640 = vmatprep.subr.mxu0 0.0
    %2641 = vmatpush1.msra.mxu0 0.0
    %2642 = vmatprep.subr.mxu0 0.0
    %2643 = vmatpush1.msra.mxu0 0.0
    %2644 = vmatprep.subr.mxu0 0.0
    %2645 = vmatpush1.msra.mxu0 0.0
    %2646 = vmatprep.subr.mxu0 0.0
    %2647 = vmatpush1.msra.mxu0 0.0
    %2648 = vmatprep.mubr.f32.mxu0 0.0
    %2649 = vmatmul.mubr.f32.gmra.mrb[0].mxu0 %v2583
    %v2650 = vpop.f32.mrb[0].mxu0
    %v2651 = vadd.f32 0.0, %v2650
    %v2652 = vpop.f32.mrb[0].mxu0
    %2653 = vdwg.mxu0
    %v2654 = vld [vmem:[#allocation2 + $0xa0] sm:$0xff]
    %v2655 = vpack.c.bf16 %v2651, %v2651
    %v2656 = vpack.c.bf16 %v2654, %v2654
    %v2658 = vsel %vm216, %v2655, 0
    %v2661 = vsel %vm220, %v2656, 0
    %2663 = vmatprep.subr.bf16.mxu0 0
    %2664 = vmatpush1.bf16.msra.mxu0 %v2661
    %2665 = vmatprep.subr.bf16.mxu0 0
    %2666 = vmatpush1.bf16.msra.mxu0 0
    %2667 = vmatprep.subr.bf16.mxu0 0
    %2668 = vmatpush1.bf16.msra.mxu0 0
    %2669 = vmatprep.subr.bf16.mxu0 0
    %2670 = vmatpush1.bf16.msra.mxu0 0
    %2671 = vmatprep.subr.bf16.mxu0 0
    %2672 = vmatpush1.bf16.msra.mxu0 0
    %2673 = vmatprep.subr.bf16.mxu0 0
    %2674 = vmatpush1.bf16.msra.mxu0 0
    %2675 = vmatprep.subr.bf16.mxu0 0
    %2676 = vmatpush1.bf16.msra.mxu0 0
    %2677 = vmatprep.subr.bf16.mxu0 0
    %2678 = vmatpush1.bf16.msra.mxu0 0
    %2679 = vmatprep.subr.bf16.mxu0 0
    %2680 = vmatpush1.bf16.msra.mxu0 0
    %2681 = vmatprep.subr.bf16.mxu0 0
    %2682 = vmatpush1.bf16.msra.mxu0 0
    %2683 = vmatprep.subr.bf16.mxu0 0
    %2684 = vmatpush1.bf16.msra.mxu0 0
    %2685 = vmatprep.subr.bf16.mxu0 0
    %2686 = vmatpush1.bf16.msra.mxu0 0
    %2687 = vmatprep.subr.bf16.mxu0 0
    %2688 = vmatpush1.bf16.msra.mxu0 0
    %2689 = vmatprep.subr.bf16.mxu0 0
    %2690 = vmatpush1.bf16.msra.mxu0 0
    %2691 = vmatprep.subr.bf16.mxu0 0
    %2692 = vmatpush1.bf16.msra.mxu0 0
    %2693 = vmatprep.subr.bf16.mxu0 0
    %2694 = vmatpush1.bf16.msra.mxu0 0
    %2695 = vmatprep.mubr.bf16.mxu0 0
    %2696 = vmatmul.mubr.bf16.gmra.mrb[0].mxu0 %v2658
    %v2697 = vpop.f32.mrb[0].mxu0
    %v2698 = vadd.f32 0.0, %v2697
    %v2699 = vpop.f32.mrb[0].mxu0
    %v2700 = vpop.f32.mrb[0].mxu0
    %v2701 = vpop.f32.mrb[0].mxu0
    %2702 = vdwg.mxu0
    %v2703 = vadd.f32 %v2577, %v2698
    %2704 = vset.pattern.permute.xlu0 21
    %2705 = vperm.xlu0 %2704, %v39
    %v2706 = vpop.permute.xlu0 %2705
    %vm2707 = vcmp.eq.s32.totalorder %v2706, %v57
    %v2708 = vsel %vm2707, 1, 0
    %v2709 = vcvt.s32.f32 %v2708
    %2710 = vmatprep.subr.mxu0 0.0
    %2711 = vmatpush1.msra.mxu0 %v40
    %2712 = vmatprep.subr.mxu0 0.0
    %2713 = vmatpush1.msra.mxu0 %v41
    %2714 = vmatprep.subr.mxu0 0.0
    %2715 = vmatpush1.msra.mxu0 %v42
    %2716 = vmatprep.subr.mxu0 0.0
    %2717 = vmatpush1.msra.mxu0 %v43
    %2718 = vmatprep.subr.mxu0 0.0
    %2719 = vmatpush1.msra.mxu0 %v44
    %2720 = vmatprep.subr.mxu0 0.0
    %2721 = vmatpush1.msra.mxu0 %v45
    %2722 = vmatprep.subr.mxu0 0.0
    %2723 = vmatpush1.msra.mxu0 %v46
    %2724 = vmatprep.subr.mxu0 0.0
    %2725 = vmatpush1.msra.mxu0 %v47
    %2726 = vmatprep.subr.mxu0 0.0
    %2727 = vmatpush1.msra.mxu0 %v48
    %2728 = vmatprep.subr.mxu0 0.0
    %2729 = vmatpush1.msra.mxu0 %v49
    %2730 = vmatprep.subr.mxu0 0.0
    %2731 = vmatpush1.msra.mxu0 %v50
    %2732 = vmatprep.subr.mxu0 0.0
    %2733 = vmatpush1.msra.mxu0 %v51
    %2734 = vmatprep.subr.mxu0 0.0
    %2735 = vmatpush1.msra.mxu0 %v52
    %2736 = vmatprep.subr.mxu0 0.0
    %2737 = vmatpush1.msra.mxu0 %v53
    %2738 = vmatprep.subr.mxu0 0.0
    %2739 = vmatpush1.msra.mxu0 %v54
    %2740 = vmatprep.subr.mxu0 0.0
    %2741 = vmatpush1.msra.mxu0 %v55
    %2742 = vmatprep.subr.mxu0 0.0
    %2743 = vmatpush1.msra.mxu0 0.0
    %2744 = vmatprep.subr.mxu0 0.0
    %2745 = vmatpush1.msra.mxu0 0.0
    %2746 = vmatprep.subr.mxu0 0.0
    %2747 = vmatpush1.msra.mxu0 0.0
    %2748 = vmatprep.subr.mxu0 0.0
    %2749 = vmatpush1.msra.mxu0 0.0
    %2750 = vmatprep.subr.mxu0 0.0
    %2751 = vmatpush1.msra.mxu0 0.0
    %2752 = vmatprep.subr.mxu0 0.0
    %2753 = vmatpush1.msra.mxu0 0.0
    %2754 = vmatprep.subr.mxu0 0.0
    %2755 = vmatpush1.msra.mxu0 0.0
    %2756 = vmatprep.subr.mxu0 0.0
    %2757 = vmatpush1.msra.mxu0 0.0
    %2758 = vmatprep.subr.mxu0 0.0
    %2759 = vmatpush1.msra.mxu0 0.0
    %2760 = vmatprep.subr.mxu0 0.0
    %2761 = vmatpush1.msra.mxu0 0.0
    %2762 = vmatprep.subr.mxu0 0.0
    %2763 = vmatpush1.msra.mxu0 0.0
    %2764 = vmatprep.subr.mxu0 0.0
    %2765 = vmatpush1.msra.mxu0 0.0
    %2766 = vmatprep.subr.mxu0 0.0
    %2767 = vmatpush1.msra.mxu0 0.0
    %2768 = vmatprep.subr.mxu0 0.0
    %2769 = vmatpush1.msra.mxu0 0.0
    %2770 = vmatprep.subr.mxu0 0.0
    %2771 = vmatpush1.msra.mxu0 0.0
    %2772 = vmatprep.subr.mxu0 0.0
    %2773 = vmatpush1.msra.mxu0 0.0
    %2774 = vmatprep.mubr.f32.mxu0 0.0
    %2775 = vmatmul.mubr.f32.gmra.mrb[0].mxu0 %v2709
    %v2776 = vpop.f32.mrb[0].mxu0
    %v2777 = vadd.f32 0.0, %v2776
    %v2778 = vpop.f32.mrb[0].mxu0
    %2779 = vdwg.mxu0
    %v2780 = vld [vmem:[#allocation2 + $0xa8] sm:$0xff]
    %v2781 = vpack.c.bf16 %v2777, %v2777
    %v2782 = vpack.c.bf16 %v2780, %v2780
    %v2784 = vsel %vm216, %v2781, 0
    %v2787 = vsel %vm220, %v2782, 0
    %2789 = vmatprep.subr.bf16.mxu0 0
    %2790 = vmatpush1.bf16.msra.mxu0 %v2787
    %2791 = vmatprep.subr.bf16.mxu0 0
    %2792 = vmatpush1.bf16.msra.mxu0 0
    %2793 = vmatprep.subr.bf16.mxu0 0
    %2794 = vmatpush1.bf16.msra.mxu0 0
    %2795 = vmatprep.subr.bf16.mxu0 0
    %2796 = vmatpush1.bf16.msra.mxu0 0
    %2797 = vmatprep.subr.bf16.mxu0 0
    %2798 = vmatpush1.bf16.msra.mxu0 0
    %2799 = vmatprep.subr.bf16.mxu0 0
    %2800 = vmatpush1.bf16.msra.mxu0 0
    %2801 = vmatprep.subr.bf16.mxu0 0
    %2802 = vmatpush1.bf16.msra.mxu0 0
    %2803 = vmatprep.subr.bf16.mxu0 0
    %2804 = vmatpush1.bf16.msra.mxu0 0
    %2805 = vmatprep.subr.bf16.mxu0 0
    %2806 = vmatpush1.bf16.msra.mxu0 0
    %2807 = vmatprep.subr.bf16.mxu0 0
    %2808 = vmatpush1.bf16.msra.mxu0 0
    %2809 = vmatprep.subr.bf16.mxu0 0
    %2810 = vmatpush1.bf16.msra.mxu0 0
    %2811 = vmatprep.subr.bf16.mxu0 0
    %2812 = vmatpush1.bf16.msra.mxu0 0
    %2813 = vmatprep.subr.bf16.mxu0 0
    %2814 = vmatpush1.bf16.msra.mxu0 0
    %2815 = vmatprep.subr.bf16.mxu0 0
    %2816 = vmatpush1.bf16.msra.mxu0 0
    %2817 = vmatprep.subr.bf16.mxu0 0
    %2818 = vmatpush1.bf16.msra.mxu0 0
    %2819 = vmatprep.subr.bf16.mxu0 0
    %2820 = vmatpush1.bf16.msra.mxu0 0
    %2821 = vmatprep.mubr.bf16.mxu0 0
    %2822 = vmatmul.mubr.bf16.gmra.mrb[0].mxu0 %v2784
    %v2823 = vpop.f32.mrb[0].mxu0
    %v2824 = vadd.f32 0.0, %v2823
    %v2825 = vpop.f32.mrb[0].mxu0
    %v2826 = vpop.f32.mrb[0].mxu0
    %v2827 = vpop.f32.mrb[0].mxu0
    %2828 = vdwg.mxu0
    %v2829 = vadd.f32 %v2703, %v2824
    %2830 = vset.pattern.permute.xlu0 22
    %2831 = vperm.xlu0 %2830, %v39
    %v2832 = vpop.permute.xlu0 %2831
    %vm2833 = vcmp.eq.s32.totalorder %v2832, %v57
    %v2834 = vsel %vm2833, 1, 0
    %v2835 = vcvt.s32.f32 %v2834
    %2836 = vmatprep.subr.mxu0 0.0
    %2837 = vmatpush1.msra.mxu0 %v40
    %2838 = vmatprep.subr.mxu0 0.0
    %2839 = vmatpush1.msra.mxu0 %v41
    %2840 = vmatprep.subr.mxu0 0.0
    %2841 = vmatpush1.msra.mxu0 %v42
    %2842 = vmatprep.subr.mxu0 0.0
    %2843 = vmatpush1.msra.mxu0 %v43
    %2844 = vmatprep.subr.mxu0 0.0
    %2845 = vmatpush1.msra.mxu0 %v44
    %2846 = vmatprep.subr.mxu0 0.0
    %2847 = vmatpush1.msra.mxu0 %v45
    %2848 = vmatprep.subr.mxu0 0.0
    %2849 = vmatpush1.msra.mxu0 %v46
    %2850 = vmatprep.subr.mxu0 0.0
    %2851 = vmatpush1.msra.mxu0 %v47
    %2852 = vmatprep.subr.mxu0 0.0
    %2853 = vmatpush1.msra.mxu0 %v48
    %2854 = vmatprep.subr.mxu0 0.0
    %2855 = vmatpush1.msra.mxu0 %v49
    %2856 = vmatprep.subr.mxu0 0.0
    %2857 = vmatpush1.msra.mxu0 %v50
    %2858 = vmatprep.subr.mxu0 0.0
    %2859 = vmatpush1.msra.mxu0 %v51
    %2860 = vmatprep.subr.mxu0 0.0
    %2861 = vmatpush1.msra.mxu0 %v52
    %2862 = vmatprep.subr.mxu0 0.0
    %2863 = vmatpush1.msra.mxu0 %v53
    %2864 = vmatprep.subr.mxu0 0.0
    %2865 = vmatpush1.msra.mxu0 %v54
    %2866 = vmatprep.subr.mxu0 0.0
    %2867 = vmatpush1.msra.mxu0 %v55
    %2868 = vmatprep.subr.mxu0 0.0
    %2869 = vmatpush1.msra.mxu0 0.0
    %2870 = vmatprep.subr.mxu0 0.0
    %2871 = vmatpush1.msra.mxu0 0.0
    %2872 = vmatprep.subr.mxu0 0.0
    %2873 = vmatpush1.msra.mxu0 0.0
    %2874 = vmatprep.subr.mxu0 0.0
    %2875 = vmatpush1.msra.mxu0 0.0
    %2876 = vmatprep.subr.mxu0 0.0
    %2877 = vmatpush1.msra.mxu0 0.0
    %2878 = vmatprep.subr.mxu0 0.0
    %2879 = vmatpush1.msra.mxu0 0.0
    %2880 = vmatprep.subr.mxu0 0.0
    %2881 = vmatpush1.msra.mxu0 0.0
    %2882 = vmatprep.subr.mxu0 0.0
    %2883 = vmatpush1.msra.mxu0 0.0
    %2884 = vmatprep.subr.mxu0 0.0
    %2885 = vmatpush1.msra.mxu0 0.0
    %2886 = vmatprep.subr.mxu0 0.0
    %2887 = vmatpush1.msra.mxu0 0.0
    %2888 = vmatprep.subr.mxu0 0.0
    %2889 = vmatpush1.msra.mxu0 0.0
    %2890 = vmatprep.subr.mxu0 0.0
    %2891 = vmatpush1.msra.mxu0 0.0
    %2892 = vmatprep.subr.mxu0 0.0
    %2893 = vmatpush1.msra.mxu0 0.0
    %2894 = vmatprep.subr.mxu0 0.0
    %2895 = vmatpush1.msra.mxu0 0.0
    %2896 = vmatprep.subr.mxu0 0.0
    %2897 = vmatpush1.msra.mxu0 0.0
    %2898 = vmatprep.subr.mxu0 0.0
    %2899 = vmatpush1.msra.mxu0 0.0
    %2900 = vmatprep.mubr.f32.mxu0 0.0
    %2901 = vmatmul.mubr.f32.gmra.mrb[0].mxu0 %v2835
    %v2902 = vpop.f32.mrb[0].mxu0
    %v2903 = vadd.f32 0.0, %v2902
    %v2904 = vpop.f32.mrb[0].mxu0
    %2905 = vdwg.mxu0
    %v2906 = vld [vmem:[#allocation2 + $0xb0] sm:$0xff]
    %v2907 = vpack.c.bf16 %v2903, %v2903
    %v2908 = vpack.c.bf16 %v2906, %v2906
    %v2910 = vsel %vm216, %v2907, 0
    %v2913 = vsel %vm220, %v2908, 0
    %2915 = vmatprep.subr.bf16.mxu0 0
    %2916 = vmatpush1.bf16.msra.mxu0 %v2913
    %2917 = vmatprep.subr.bf16.mxu0 0
    %2918 = vmatpush1.bf16.msra.mxu0 0
    %2919 = vmatprep.subr.bf16.mxu0 0
    %2920 = vmatpush1.bf16.msra.mxu0 0
    %2921 = vmatprep.subr.bf16.mxu0 0
    %2922 = vmatpush1.bf16.msra.mxu0 0
    %2923 = vmatprep.subr.bf16.mxu0 0
    %2924 = vmatpush1.bf16.msra.mxu0 0
    %2925 = vmatprep.subr.bf16.mxu0 0
    %2926 = vmatpush1.bf16.msra.mxu0 0
    %2927 = vmatprep.subr.bf16.mxu0 0
    %2928 = vmatpush1.bf16.msra.mxu0 0
    %2929 = vmatprep.subr.bf16.mxu0 0
    %2930 = vmatpush1.bf16.msra.mxu0 0
    %2931 = vmatprep.subr.bf16.mxu0 0
    %2932 = vmatpush1.bf16.msra.mxu0 0
    %2933 = vmatprep.subr.bf16.mxu0 0
    %2934 = vmatpush1.bf16.msra.mxu0 0
    %2935 = vmatprep.subr.bf16.mxu0 0
    %2936 = vmatpush1.bf16.msra.mxu0 0
    %2937 = vmatprep.subr.bf16.mxu0 0
    %2938 = vmatpush1.bf16.msra.mxu0 0
    %2939 = vmatprep.subr.bf16.mxu0 0
    %2940 = vmatpush1.bf16.msra.mxu0 0
    %2941 = vmatprep.subr.bf16.mxu0 0
    %2942 = vmatpush1.bf16.msra.mxu0 0
    %2943 = vmatprep.subr.bf16.mxu0 0
    %2944 = vmatpush1.bf16.msra.mxu0 0
    %2945 = vmatprep.subr.bf16.mxu0 0
    %2946 = vmatpush1.bf16.msra.mxu0 0
    %2947 = vmatprep.mubr.bf16.mxu0 0
    %2948 = vmatmul.mubr.bf16.gmra.mrb[0].mxu0 %v2910
    %v2949 = vpop.f32.mrb[0].mxu0
    %v2950 = vadd.f32 0.0, %v2949
    %v2951 = vpop.f32.mrb[0].mxu0
    %v2952 = vpop.f32.mrb[0].mxu0
    %v2953 = vpop.f32.mrb[0].mxu0
    %2954 = vdwg.mxu0
    %v2955 = vadd.f32 %v2829, %v2950
    %2956 = vset.pattern.permute.xlu0 23
    %2957 = vperm.xlu0 %2956, %v39
    %v2958 = vpop.permute.xlu0 %2957
    %vm2959 = vcmp.eq.s32.totalorder %v2958, %v57
    %v2960 = vsel %vm2959, 1, 0
    %v2961 = vcvt.s32.f32 %v2960
    %2962 = vmatprep.subr.mxu0 0.0
    %2963 = vmatpush1.msra.mxu0 %v40
    %2964 = vmatprep.subr.mxu0 0.0
    %2965 = vmatpush1.msra.mxu0 %v41
    %2966 = vmatprep.subr.mxu0 0.0
    %2967 = vmatpush1.msra.mxu0 %v42
    %2968 = vmatprep.subr.mxu0 0.0
    %2969 = vmatpush1.msra.mxu0 %v43
    %2970 = vmatprep.subr.mxu0 0.0
    %2971 = vmatpush1.msra.mxu0 %v44
    %2972 = vmatprep.subr.mxu0 0.0
    %2973 = vmatpush1.msra.mxu0 %v45
    %2974 = vmatprep.subr.mxu0 0.0
    %2975 = vmatpush1.msra.mxu0 %v46
    %2976 = vmatprep.subr.mxu0 0.0
    %2977 = vmatpush1.msra.mxu0 %v47
    %2978 = vmatprep.subr.mxu0 0.0
    %2979 = vmatpush1.msra.mxu0 %v48
    %2980 = vmatprep.subr.mxu0 0.0
    %2981 = vmatpush1.msra.mxu0 %v49
    %2982 = vmatprep.subr.mxu0 0.0
    %2983 = vmatpush1.msra.mxu0 %v50
    %2984 = vmatprep.subr.mxu0 0.0
    %2985 = vmatpush1.msra.mxu0 %v51
    %2986 = vmatprep.subr.mxu0 0.0
    %2987 = vmatpush1.msra.mxu0 %v52
    %2988 = vmatprep.subr.mxu0 0.0
    %2989 = vmatpush1.msra.mxu0 %v53
    %2990 = vmatprep.subr.mxu0 0.0
    %2991 = vmatpush1.msra.mxu0 %v54
    %2992 = vmatprep.subr.mxu0 0.0
    %2993 = vmatpush1.msra.mxu0 %v55
    %2994 = vmatprep.subr.mxu0 0.0
    %2995 = vmatpush1.msra.mxu0 0.0
    %2996 = vmatprep.subr.mxu0 0.0
    %2997 = vmatpush1.msra.mxu0 0.0
    %2998 = vmatprep.subr.mxu0 0.0
    %2999 = vmatpush1.msra.mxu0 0.0
    %3000 = vmatprep.subr.mxu0 0.0
    %3001 = vmatpush1.msra.mxu0 0.0
    %3002 = vmatprep.subr.mxu0 0.0
    %3003 = vmatpush1.msra.mxu0 0.0
    %3004 = vmatprep.subr.mxu0 0.0
    %3005 = vmatpush1.msra.mxu0 0.0
    %3006 = vmatprep.subr.mxu0 0.0
    %3007 = vmatpush1.msra.mxu0 0.0
    %3008 = vmatprep.subr.mxu0 0.0
    %3009 = vmatpush1.msra.mxu0 0.0
    %3010 = vmatprep.subr.mxu0 0.0
    %3011 = vmatpush1.msra.mxu0 0.0
    %3012 = vmatprep.subr.mxu0 0.0
    %3013 = vmatpush1.msra.mxu0 0.0
    %3014 = vmatprep.subr.mxu0 0.0
    %3015 = vmatpush1.msra.mxu0 0.0
    %3016 = vmatprep.subr.mxu0 0.0
    %3017 = vmatpush1.msra.mxu0 0.0
    %3018 = vmatprep.subr.mxu0 0.0
    %3019 = vmatpush1.msra.mxu0 0.0
    %3020 = vmatprep.subr.mxu0 0.0
    %3021 = vmatpush1.msra.mxu0 0.0
    %3022 = vmatprep.subr.mxu0 0.0
    %3023 = vmatpush1.msra.mxu0 0.0
    %3024 = vmatprep.subr.mxu0 0.0
    %3025 = vmatpush1.msra.mxu0 0.0
    %3026 = vmatprep.mubr.f32.mxu0 0.0
    %3027 = vmatmul.mubr.f32.gmra.mrb[0].mxu0 %v2961
    %v3028 = vpop.f32.mrb[0].mxu0
    %v3029 = vadd.f32 0.0, %v3028
    %v3030 = vpop.f32.mrb[0].mxu0
    %3031 = vdwg.mxu0
    %v3032 = vld [vmem:[#allocation2 + $0xb8] sm:$0xff]
    %v3033 = vpack.c.bf16 %v3029, %v3029
    %v3034 = vpack.c.bf16 %v3032, %v3032
    %v3036 = vsel %vm216, %v3033, 0
    %v3039 = vsel %vm220, %v3034, 0
    %3041 = vmatprep.subr.bf16.mxu0 0
    %3042 = vmatpush1.bf16.msra.mxu0 %v3039
    %3043 = vmatprep.subr.bf16.mxu0 0
    %3044 = vmatpush1.bf16.msra.mxu0 0
    %3045 = vmatprep.subr.bf16.mxu0 0
    %3046 = vmatpush1.bf16.msra.mxu0 0
    %3047 = vmatprep.subr.bf16.mxu0 0
    %3048 = vmatpush1.bf16.msra.mxu0 0
    %3049 = vmatprep.subr.bf16.mxu0 0
    %3050 = vmatpush1.bf16.msra.mxu0 0
    %3051 = vmatprep.subr.bf16.mxu0 0
    %3052 = vmatpush1.bf16.msra.mxu0 0
    %3053 = vmatprep.subr.bf16.mxu0 0
    %3054 = vmatpush1.bf16.msra.mxu0 0
    %3055 = vmatprep.subr.bf16.mxu0 0
    %3056 = vmatpush1.bf16.msra.mxu0 0
    %3057 = vmatprep.subr.bf16.mxu0 0
    %3058 = vmatpush1.bf16.msra.mxu0 0
    %3059 = vmatprep.subr.bf16.mxu0 0
    %3060 = vmatpush1.bf16.msra.mxu0 0
    %3061 = vmatprep.subr.bf16.mxu0 0
    %3062 = vmatpush1.bf16.msra.mxu0 0
    %3063 = vmatprep.subr.bf16.mxu0 0
    %3064 = vmatpush1.bf16.msra.mxu0 0
    %3065 = vmatprep.subr.bf16.mxu0 0
    %3066 = vmatpush1.bf16.msra.mxu0 0
    %3067 = vmatprep.subr.bf16.mxu0 0
    %3068 = vmatpush1.bf16.msra.mxu0 0
    %3069 = vmatprep.subr.bf16.mxu0 0
    %3070 = vmatpush1.bf16.msra.mxu0 0
    %3071 = vmatprep.subr.bf16.mxu0 0
    %3072 = vmatpush1.bf16.msra.mxu0 0
    %3073 = vmatprep.mubr.bf16.mxu0 0
    %3074 = vmatmul.mubr.bf16.gmra.mrb[0].mxu0 %v3036
    %v3075 = vpop.f32.mrb[0].mxu0
    %v3076 = vadd.f32 0.0, %v3075
    %v3077 = vpop.f32.mrb[0].mxu0
    %v3078 = vpop.f32.mrb[0].mxu0
    %v3079 = vpop.f32.mrb[0].mxu0
    %3080 = vdwg.mxu0
    %v3081 = vadd.f32 %v2955, %v3076
    %3082 = vset.pattern.permute.xlu0 24
    %3083 = vperm.xlu0 %3082, %v39
    %v3084 = vpop.permute.xlu0 %3083
    %vm3085 = vcmp.eq.s32.totalorder %v3084, %v57
    %v3086 = vsel %vm3085, 1, 0
    %v3087 = vcvt.s32.f32 %v3086
    %3088 = vmatprep.subr.mxu0 0.0
    %3089 = vmatpush1.msra.mxu0 %v40
    %3090 = vmatprep.subr.mxu0 0.0
    %3091 = vmatpush1.msra.mxu0 %v41
    %3092 = vmatprep.subr.mxu0 0.0
    %3093 = vmatpush1.msra.mxu0 %v42
    %3094 = vmatprep.subr.mxu0 0.0
    %3095 = vmatpush1.msra.mxu0 %v43
    %3096 = vmatprep.subr.mxu0 0.0
    %3097 = vmatpush1.msra.mxu0 %v44
    %3098 = vmatprep.subr.mxu0 0.0
    %3099 = vmatpush1.msra.mxu0 %v45
    %3100 = vmatprep.subr.mxu0 0.0
    %3101 = vmatpush1.msra.mxu0 %v46
    %3102 = vmatprep.subr.mxu0 0.0
    %3103 = vmatpush1.msra.mxu0 %v47
    %3104 = vmatprep.subr.mxu0 0.0
    %3105 = vmatpush1.msra.mxu0 %v48
    %3106 = vmatprep.subr.mxu0 0.0
    %3107 = vmatpush1.msra.mxu0 %v49
    %3108 = vmatprep.subr.mxu0 0.0
    %3109 = vmatpush1.msra.mxu0 %v50
    %3110 = vmatprep.subr.mxu0 0.0
    %3111 = vmatpush1.msra.mxu0 %v51
    %3112 = vmatprep.subr.mxu0 0.0
    %3113 = vmatpush1.msra.mxu0 %v52
    %3114 = vmatprep.subr.mxu0 0.0
    %3115 = vmatpush1.msra.mxu0 %v53
    %3116 = vmatprep.subr.mxu0 0.0
    %3117 = vmatpush1.msra.mxu0 %v54
    %3118 = vmatprep.subr.mxu0 0.0
    %3119 = vmatpush1.msra.mxu0 %v55
    %3120 = vmatprep.subr.mxu0 0.0
    %3121 = vmatpush1.msra.mxu0 0.0
    %3122 = vmatprep.subr.mxu0 0.0
    %3123 = vmatpush1.msra.mxu0 0.0
    %3124 = vmatprep.subr.mxu0 0.0
    %3125 = vmatpush1.msra.mxu0 0.0
    %3126 = vmatprep.subr.mxu0 0.0
    %3127 = vmatpush1.msra.mxu0 0.0
    %3128 = vmatprep.subr.mxu0 0.0
    %3129 = vmatpush1.msra.mxu0 0.0
    %3130 = vmatprep.subr.mxu0 0.0
    %3131 = vmatpush1.msra.mxu0 0.0
    %3132 = vmatprep.subr.mxu0 0.0
    %3133 = vmatpush1.msra.mxu0 0.0
    %3134 = vmatprep.subr.mxu0 0.0
    %3135 = vmatpush1.msra.mxu0 0.0
    %3136 = vmatprep.subr.mxu0 0.0
    %3137 = vmatpush1.msra.mxu0 0.0
    %3138 = vmatprep.subr.mxu0 0.0
    %3139 = vmatpush1.msra.mxu0 0.0
    %3140 = vmatprep.subr.mxu0 0.0
    %3141 = vmatpush1.msra.mxu0 0.0
    %3142 = vmatprep.subr.mxu0 0.0
    %3143 = vmatpush1.msra.mxu0 0.0
    %3144 = vmatprep.subr.mxu0 0.0
    %3145 = vmatpush1.msra.mxu0 0.0
    %3146 = vmatprep.subr.mxu0 0.0
    %3147 = vmatpush1.msra.mxu0 0.0
    %3148 = vmatprep.subr.mxu0 0.0
    %3149 = vmatpush1.msra.mxu0 0.0
    %3150 = vmatprep.subr.mxu0 0.0
    %3151 = vmatpush1.msra.mxu0 0.0
    %3152 = vmatprep.mubr.f32.mxu0 0.0
    %3153 = vmatmul.mubr.f32.gmra.mrb[0].mxu0 %v3087
    %v3154 = vpop.f32.mrb[0].mxu0
    %v3155 = vadd.f32 0.0, %v3154
    %v3156 = vpop.f32.mrb[0].mxu0
    %3157 = vdwg.mxu0
    %v3158 = vld [vmem:[#allocation2 + $0xc0] sm:$0xff]
    %v3159 = vpack.c.bf16 %v3155, %v3155
    %v3160 = vpack.c.bf16 %v3158, %v3158
    %v3162 = vsel %vm216, %v3159, 0
    %v3165 = vsel %vm220, %v3160, 0
    %3167 = vmatprep.subr.bf16.mxu0 0
    %3168 = vmatpush1.bf16.msra.mxu0 %v3165
    %3169 = vmatprep.subr.bf16.mxu0 0
    %3170 = vmatpush1.bf16.msra.mxu0 0
    %3171 = vmatprep.subr.bf16.mxu0 0
    %3172 = vmatpush1.bf16.msra.mxu0 0
    %3173 = vmatprep.subr.bf16.mxu0 0
    %3174 = vmatpush1.bf16.msra.mxu0 0
    %3175 = vmatprep.subr.bf16.mxu0 0
    %3176 = vmatpush1.bf16.msra.mxu0 0
    %3177 = vmatprep.subr.bf16.mxu0 0
    %3178 = vmatpush1.bf16.msra.mxu0 0
    %3179 = vmatprep.subr.bf16.mxu0 0
    %3180 = vmatpush1.bf16.msra.mxu0 0
    %3181 = vmatprep.subr.bf16.mxu0 0
    %3182 = vmatpush1.bf16.msra.mxu0 0
    %3183 = vmatprep.subr.bf16.mxu0 0
    %3184 = vmatpush1.bf16.msra.mxu0 0
    %3185 = vmatprep.subr.bf16.mxu0 0
    %3186 = vmatpush1.bf16.msra.mxu0 0
    %3187 = vmatprep.subr.bf16.mxu0 0
    %3188 = vmatpush1.bf16.msra.mxu0 0
    %3189 = vmatprep.subr.bf16.mxu0 0
    %3190 = vmatpush1.bf16.msra.mxu0 0
    %3191 = vmatprep.subr.bf16.mxu0 0
    %3192 = vmatpush1.bf16.msra.mxu0 0
    %3193 = vmatprep.subr.bf16.mxu0 0
    %3194 = vmatpush1.bf16.msra.mxu0 0
    %3195 = vmatprep.subr.bf16.mxu0 0
    %3196 = vmatpush1.bf16.msra.mxu0 0
    %3197 = vmatprep.subr.bf16.mxu0 0
    %3198 = vmatpush1.bf16.msra.mxu0 0
    %3199 = vmatprep.mubr.bf16.mxu0 0
    %3200 = vmatmul.mubr.bf16.gmra.mrb[0].mxu0 %v3162
    %v3201 = vpop.f32.mrb[0].mxu0
    %v3202 = vadd.f32 0.0, %v3201
    %v3203 = vpop.f32.mrb[0].mxu0
    %v3204 = vpop.f32.mrb[0].mxu0
    %v3205 = vpop.f32.mrb[0].mxu0
    %3206 = vdwg.mxu0
    %v3207 = vadd.f32 %v3081, %v3202
    %3208 = vset.pattern.permute.xlu0 25
    %3209 = vperm.xlu0 %3208, %v39
    %v3210 = vpop.permute.xlu0 %3209
    %vm3211 = vcmp.eq.s32.totalorder %v3210, %v57
    %v3212 = vsel %vm3211, 1, 0
    %v3213 = vcvt.s32.f32 %v3212
    %3214 = vmatprep.subr.mxu0 0.0
    %3215 = vmatpush1.msra.mxu0 %v40
    %3216 = vmatprep.subr.mxu0 0.0
    %3217 = vmatpush1.msra.mxu0 %v41
    %3218 = vmatprep.subr.mxu0 0.0
    %3219 = vmatpush1.msra.mxu0 %v42
    %3220 = vmatprep.subr.mxu0 0.0
    %3221 = vmatpush1.msra.mxu0 %v43
    %3222 = vmatprep.subr.mxu0 0.0
    %3223 = vmatpush1.msra.mxu0 %v44
    %3224 = vmatprep.subr.mxu0 0.0
    %3225 = vmatpush1.msra.mxu0 %v45
    %3226 = vmatprep.subr.mxu0 0.0
    %3227 = vmatpush1.msra.mxu0 %v46
    %3228 = vmatprep.subr.mxu0 0.0
    %3229 = vmatpush1.msra.mxu0 %v47
    %3230 = vmatprep.subr.mxu0 0.0
    %3231 = vmatpush1.msra.mxu0 %v48
    %3232 = vmatprep.subr.mxu0 0.0
    %3233 = vmatpush1.msra.mxu0 %v49
    %3234 = vmatprep.subr.mxu0 0.0
    %3235 = vmatpush1.msra.mxu0 %v50
    %3236 = vmatprep.subr.mxu0 0.0
    %3237 = vmatpush1.msra.mxu0 %v51
    %3238 = vmatprep.subr.mxu0 0.0
    %3239 = vmatpush1.msra.mxu0 %v52
    %3240 = vmatprep.subr.mxu0 0.0
    %3241 = vmatpush1.msra.mxu0 %v53
    %3242 = vmatprep.subr.mxu0 0.0
    %3243 = vmatpush1.msra.mxu0 %v54
    %3244 = vmatprep.subr.mxu0 0.0
    %3245 = vmatpush1.msra.mxu0 %v55
    %3246 = vmatprep.subr.mxu0 0.0
    %3247 = vmatpush1.msra.mxu0 0.0
    %3248 = vmatprep.subr.mxu0 0.0
    %3249 = vmatpush1.msra.mxu0 0.0
    %3250 = vmatprep.subr.mxu0 0.0
    %3251 = vmatpush1.msra.mxu0 0.0
    %3252 = vmatprep.subr.mxu0 0.0
    %3253 = vmatpush1.msra.mxu0 0.0
    %3254 = vmatprep.subr.mxu0 0.0
    %3255 = vmatpush1.msra.mxu0 0.0
    %3256 = vmatprep.subr.mxu0 0.0
    %3257 = vmatpush1.msra.mxu0 0.0
    %3258 = vmatprep.subr.mxu0 0.0
    %3259 = vmatpush1.msra.mxu0 0.0
    %3260 = vmatprep.subr.mxu0 0.0
    %3261 = vmatpush1.msra.mxu0 0.0
    %3262 = vmatprep.subr.mxu0 0.0
    %3263 = vmatpush1.msra.mxu0 0.0
    %3264 = vmatprep.subr.mxu0 0.0
    %3265 = vmatpush1.msra.mxu0 0.0
    %3266 = vmatprep.subr.mxu0 0.0
    %3267 = vmatpush1.msra.mxu0 0.0
    %3268 = vmatprep.subr.mxu0 0.0
    %3269 = vmatpush1.msra.mxu0 0.0
    %3270 = vmatprep.subr.mxu0 0.0
    %3271 = vmatpush1.msra.mxu0 0.0
    %3272 = vmatprep.subr.mxu0 0.0
    %3273 = vmatpush1.msra.mxu0 0.0
    %3274 = vmatprep.subr.mxu0 0.0
    %3275 = vmatpush1.msra.mxu0 0.0
    %3276 = vmatprep.subr.mxu0 0.0
    %3277 = vmatpush1.msra.mxu0 0.0
    %3278 = vmatprep.mubr.f32.mxu0 0.0
    %3279 = vmatmul.mubr.f32.gmra.mrb[0].mxu0 %v3213
    %v3280 = vpop.f32.mrb[0].mxu0
    %v3281 = vadd.f32 0.0, %v3280
    %v3282 = vpop.f32.mrb[0].mxu0
    %3283 = vdwg.mxu0
    %v3284 = vld [vmem:[#allocation2 + $0xc8] sm:$0xff]
    %v3285 = vpack.c.bf16 %v3281, %v3281
    %v3286 = vpack.c.bf16 %v3284, %v3284
    %v3288 = vsel %vm216, %v3285, 0
    %v3291 = vsel %vm220, %v3286, 0
    %3293 = vmatprep.subr.bf16.mxu0 0
    %3294 = vmatpush1.bf16.msra.mxu0 %v3291
    %3295 = vmatprep.subr.bf16.mxu0 0
    %3296 = vmatpush1.bf16.msra.mxu0 0
    %3297 = vmatprep.subr.bf16.mxu0 0
    %3298 = vmatpush1.bf16.msra.mxu0 0
    %3299 = vmatprep.subr.bf16.mxu0 0
    %3300 = vmatpush1.bf16.msra.mxu0 0
    %3301 = vmatprep.subr.bf16.mxu0 0
    %3302 = vmatpush1.bf16.msra.mxu0 0
    %3303 = vmatprep.subr.bf16.mxu0 0
    %3304 = vmatpush1.bf16.msra.mxu0 0
    %3305 = vmatprep.subr.bf16.mxu0 0
    %3306 = vmatpush1.bf16.msra.mxu0 0
    %3307 = vmatprep.subr.bf16.mxu0 0
    %3308 = vmatpush1.bf16.msra.mxu0 0
    %3309 = vmatprep.subr.bf16.mxu0 0
    %3310 = vmatpush1.bf16.msra.mxu0 0
    %3311 = vmatprep.subr.bf16.mxu0 0
    %3312 = vmatpush1.bf16.msra.mxu0 0
    %3313 = vmatprep.subr.bf16.mxu0 0
    %3314 = vmatpush1.bf16.msra.mxu0 0
    %3315 = vmatprep.subr.bf16.mxu0 0
    %3316 = vmatpush1.bf16.msra.mxu0 0
    %3317 = vmatprep.subr.bf16.mxu0 0
    %3318 = vmatpush1.bf16.msra.mxu0 0
    %3319 = vmatprep.subr.bf16.mxu0 0
    %3320 = vmatpush1.bf16.msra.mxu0 0
    %3321 = vmatprep.subr.bf16.mxu0 0
    %3322 = vmatpush1.bf16.msra.mxu0 0
    %3323 = vmatprep.subr.bf16.mxu0 0
    %3324 = vmatpush1.bf16.msra.mxu0 0
    %3325 = vmatprep.mubr.bf16.mxu0 0
    %3326 = vmatmul.mubr.bf16.gmra.mrb[0].mxu0 %v3288
    %v3327 = vpop.f32.mrb[0].mxu0
    %v3328 = vadd.f32 0.0, %v3327
    %v3329 = vpop.f32.mrb[0].mxu0
    %v3330 = vpop.f32.mrb[0].mxu0
    %v3331 = vpop.f32.mrb[0].mxu0
    %3332 = vdwg.mxu0
    %v3333 = vadd.f32 %v3207, %v3328
    %3334 = vset.pattern.permute.xlu0 26
    %3335 = vperm.xlu0 %3334, %v39
    %v3336 = vpop.permute.xlu0 %3335
    %vm3337 = vcmp.eq.s32.totalorder %v3336, %v57
    %v3338 = vsel %vm3337, 1, 0
    %v3339 = vcvt.s32.f32 %v3338
    %3340 = vmatprep.subr.mxu0 0.0
    %3341 = vmatpush1.msra.mxu0 %v40
    %3342 = vmatprep.subr.mxu0 0.0
    %3343 = vmatpush1.msra.mxu0 %v41
    %3344 = vmatprep.subr.mxu0 0.0
    %3345 = vmatpush1.msra.mxu0 %v42
    %3346 = vmatprep.subr.mxu0 0.0
    %3347 = vmatpush1.msra.mxu0 %v43
    %3348 = vmatprep.subr.mxu0 0.0
    %3349 = vmatpush1.msra.mxu0 %v44
    %3350 = vmatprep.subr.mxu0 0.0
    %3351 = vmatpush1.msra.mxu0 %v45
    %3352 = vmatprep.subr.mxu0 0.0
    %3353 = vmatpush1.msra.mxu0 %v46
    %3354 = vmatprep.subr.mxu0 0.0
    %3355 = vmatpush1.msra.mxu0 %v47
    %3356 = vmatprep.subr.mxu0 0.0
    %3357 = vmatpush1.msra.mxu0 %v48
    %3358 = vmatprep.subr.mxu0 0.0
    %3359 = vmatpush1.msra.mxu0 %v49
    %3360 = vmatprep.subr.mxu0 0.0
    %3361 = vmatpush1.msra.mxu0 %v50
    %3362 = vmatprep.subr.mxu0 0.0
    %3363 = vmatpush1.msra.mxu0 %v51
    %3364 = vmatprep.subr.mxu0 0.0
    %3365 = vmatpush1.msra.mxu0 %v52
    %3366 = vmatprep.subr.mxu0 0.0
    %3367 = vmatpush1.msra.mxu0 %v53
    %3368 = vmatprep.subr.mxu0 0.0
    %3369 = vmatpush1.msra.mxu0 %v54
    %3370 = vmatprep.subr.mxu0 0.0
    %3371 = vmatpush1.msra.mxu0 %v55
    %3372 = vmatprep.subr.mxu0 0.0
    %3373 = vmatpush1.msra.mxu0 0.0
    %3374 = vmatprep.subr.mxu0 0.0
    %3375 = vmatpush1.msra.mxu0 0.0
    %3376 = vmatprep.subr.mxu0 0.0
    %3377 = vmatpush1.msra.mxu0 0.0
    %3378 = vmatprep.subr.mxu0 0.0
    %3379 = vmatpush1.msra.mxu0 0.0
    %3380 = vmatprep.subr.mxu0 0.0
    %3381 = vmatpush1.msra.mxu0 0.0
    %3382 = vmatprep.subr.mxu0 0.0
    %3383 = vmatpush1.msra.mxu0 0.0
    %3384 = vmatprep.subr.mxu0 0.0
    %3385 = vmatpush1.msra.mxu0 0.0
    %3386 = vmatprep.subr.mxu0 0.0
    %3387 = vmatpush1.msra.mxu0 0.0
    %3388 = vmatprep.subr.mxu0 0.0
    %3389 = vmatpush1.msra.mxu0 0.0
    %3390 = vmatprep.subr.mxu0 0.0
    %3391 = vmatpush1.msra.mxu0 0.0
    %3392 = vmatprep.subr.mxu0 0.0
    %3393 = vmatpush1.msra.mxu0 0.0
    %3394 = vmatprep.subr.mxu0 0.0
    %3395 = vmatpush1.msra.mxu0 0.0
    %3396 = vmatprep.subr.mxu0 0.0
    %3397 = vmatpush1.msra.mxu0 0.0
    %3398 = vmatprep.subr.mxu0 0.0
    %3399 = vmatpush1.msra.mxu0 0.0
    %3400 = vmatprep.subr.mxu0 0.0
    %3401 = vmatpush1.msra.mxu0 0.0
    %3402 = vmatprep.subr.mxu0 0.0
    %3403 = vmatpush1.msra.mxu0 0.0
    %3404 = vmatprep.mubr.f32.mxu0 0.0
    %3405 = vmatmul.mubr.f32.gmra.mrb[0].mxu0 %v3339
    %v3406 = vpop.f32.mrb[0].mxu0
    %v3407 = vadd.f32 0.0, %v3406
    %v3408 = vpop.f32.mrb[0].mxu0
    %3409 = vdwg.mxu0
    %v3410 = vld [vmem:[#allocation2 + $0xd0] sm:$0xff]
    %v3411 = vpack.c.bf16 %v3407, %v3407
    %v3412 = vpack.c.bf16 %v3410, %v3410
    %v3414 = vsel %vm216, %v3411, 0
    %v3417 = vsel %vm220, %v3412, 0
    %3419 = vmatprep.subr.bf16.mxu0 0
    %3420 = vmatpush1.bf16.msra.mxu0 %v3417
    %3421 = vmatprep.subr.bf16.mxu0 0
    %3422 = vmatpush1.bf16.msra.mxu0 0
    %3423 = vmatprep.subr.bf16.mxu0 0
    %3424 = vmatpush1.bf16.msra.mxu0 0
    %3425 = vmatprep.subr.bf16.mxu0 0
    %3426 = vmatpush1.bf16.msra.mxu0 0
    %3427 = vmatprep.subr.bf16.mxu0 0
    %3428 = vmatpush1.bf16.msra.mxu0 0
    %3429 = vmatprep.subr.bf16.mxu0 0
    %3430 = vmatpush1.bf16.msra.mxu0 0
    %3431 = vmatprep.subr.bf16.mxu0 0
    %3432 = vmatpush1.bf16.msra.mxu0 0
    %3433 = vmatprep.subr.bf16.mxu0 0
    %3434 = vmatpush1.bf16.msra.mxu0 0
    %3435 = vmatprep.subr.bf16.mxu0 0
    %3436 = vmatpush1.bf16.msra.mxu0 0
    %3437 = vmatprep.subr.bf16.mxu0 0
    %3438 = vmatpush1.bf16.msra.mxu0 0
    %3439 = vmatprep.subr.bf16.mxu0 0
    %3440 = vmatpush1.bf16.msra.mxu0 0
    %3441 = vmatprep.subr.bf16.mxu0 0
    %3442 = vmatpush1.bf16.msra.mxu0 0
    %3443 = vmatprep.subr.bf16.mxu0 0
    %3444 = vmatpush1.bf16.msra.mxu0 0
    %3445 = vmatprep.subr.bf16.mxu0 0
    %3446 = vmatpush1.bf16.msra.mxu0 0
    %3447 = vmatprep.subr.bf16.mxu0 0
    %3448 = vmatpush1.bf16.msra.mxu0 0
    %3449 = vmatprep.subr.bf16.mxu0 0
    %3450 = vmatpush1.bf16.msra.mxu0 0
    %3451 = vmatprep.mubr.bf16.mxu0 0
    %3452 = vmatmul.mubr.bf16.gmra.mrb[0].mxu0 %v3414
    %v3453 = vpop.f32.mrb[0].mxu0
    %v3454 = vadd.f32 0.0, %v3453
    %v3455 = vpop.f32.mrb[0].mxu0
    %v3456 = vpop.f32.mrb[0].mxu0
    %v3457 = vpop.f32.mrb[0].mxu0
    %3458 = vdwg.mxu0
    %v3459 = vadd.f32 %v3333, %v3454
    %3460 = vset.pattern.permute.xlu0 27
    %3461 = vperm.xlu0 %3460, %v39
    %v3462 = vpop.permute.xlu0 %3461
    %vm3463 = vcmp.eq.s32.totalorder %v3462, %v57
    %v3464 = vsel %vm3463, 1, 0
    %v3465 = vcvt.s32.f32 %v3464
    %3466 = vmatprep.subr.mxu0 0.0
    %3467 = vmatpush1.msra.mxu0 %v40
    %3468 = vmatprep.subr.mxu0 0.0
    %3469 = vmatpush1.msra.mxu0 %v41
    %3470 = vmatprep.subr.mxu0 0.0
    %3471 = vmatpush1.msra.mxu0 %v42
    %3472 = vmatprep.subr.mxu0 0.0
    %3473 = vmatpush1.msra.mxu0 %v43
    %3474 = vmatprep.subr.mxu0 0.0
    %3475 = vmatpush1.msra.mxu0 %v44
    %3476 = vmatprep.subr.mxu0 0.0
    %3477 = vmatpush1.msra.mxu0 %v45
    %3478 = vmatprep.subr.mxu0 0.0
    %3479 = vmatpush1.msra.mxu0 %v46
    %3480 = vmatprep.subr.mxu0 0.0
    %3481 = vmatpush1.msra.mxu0 %v47
    %3482 = vmatprep.subr.mxu0 0.0
    %3483 = vmatpush1.msra.mxu0 %v48
    %3484 = vmatprep.subr.mxu0 0.0
    %3485 = vmatpush1.msra.mxu0 %v49
    %3486 = vmatprep.subr.mxu0 0.0
    %3487 = vmatpush1.msra.mxu0 %v50
    %3488 = vmatprep.subr.mxu0 0.0
    %3489 = vmatpush1.msra.mxu0 %v51
    %3490 = vmatprep.subr.mxu0 0.0
    %3491 = vmatpush1.msra.mxu0 %v52
    %3492 = vmatprep.subr.mxu0 0.0
    %3493 = vmatpush1.msra.mxu0 %v53
    %3494 = vmatprep.subr.mxu0 0.0
    %3495 = vmatpush1.msra.mxu0 %v54
    %3496 = vmatprep.subr.mxu0 0.0
    %3497 = vmatpush1.msra.mxu0 %v55
    %3498 = vmatprep.subr.mxu0 0.0
    %3499 = vmatpush1.msra.mxu0 0.0
    %3500 = vmatprep.subr.mxu0 0.0
    %3501 = vmatpush1.msra.mxu0 0.0
    %3502 = vmatprep.subr.mxu0 0.0
    %3503 = vmatpush1.msra.mxu0 0.0
    %3504 = vmatprep.subr.mxu0 0.0
    %3505 = vmatpush1.msra.mxu0 0.0
    %3506 = vmatprep.subr.mxu0 0.0
    %3507 = vmatpush1.msra.mxu0 0.0
    %3508 = vmatprep.subr.mxu0 0.0
    %3509 = vmatpush1.msra.mxu0 0.0
    %3510 = vmatprep.subr.mxu0 0.0
    %3511 = vmatpush1.msra.mxu0 0.0
    %3512 = vmatprep.subr.mxu0 0.0
    %3513 = vmatpush1.msra.mxu0 0.0
    %3514 = vmatprep.subr.mxu0 0.0
    %3515 = vmatpush1.msra.mxu0 0.0
    %3516 = vmatprep.subr.mxu0 0.0
    %3517 = vmatpush1.msra.mxu0 0.0
    %3518 = vmatprep.subr.mxu0 0.0
    %3519 = vmatpush1.msra.mxu0 0.0
    %3520 = vmatprep.subr.mxu0 0.0
    %3521 = vmatpush1.msra.mxu0 0.0
    %3522 = vmatprep.subr.mxu0 0.0
    %3523 = vmatpush1.msra.mxu0 0.0
    %3524 = vmatprep.subr.mxu0 0.0
    %3525 = vmatpush1.msra.mxu0 0.0
    %3526 = vmatprep.subr.mxu0 0.0
    %3527 = vmatpush1.msra.mxu0 0.0
    %3528 = vmatprep.subr.mxu0 0.0
    %3529 = vmatpush1.msra.mxu0 0.0
    %3530 = vmatprep.mubr.f32.mxu0 0.0
    %3531 = vmatmul.mubr.f32.gmra.mrb[0].mxu0 %v3465
    %v3532 = vpop.f32.mrb[0].mxu0
    %v3533 = vadd.f32 0.0, %v3532
    %v3534 = vpop.f32.mrb[0].mxu0
    %3535 = vdwg.mxu0
    %v3536 = vld [vmem:[#allocation2 + $0xd8] sm:$0xff]
    %v3537 = vpack.c.bf16 %v3533, %v3533
    %v3538 = vpack.c.bf16 %v3536, %v3536
    %v3540 = vsel %vm216, %v3537, 0
    %v3543 = vsel %vm220, %v3538, 0
    %3545 = vmatprep.subr.bf16.mxu0 0
    %3546 = vmatpush1.bf16.msra.mxu0 %v3543
    %3547 = vmatprep.subr.bf16.mxu0 0
    %3548 = vmatpush1.bf16.msra.mxu0 0
    %3549 = vmatprep.subr.bf16.mxu0 0
    %3550 = vmatpush1.bf16.msra.mxu0 0
    %3551 = vmatprep.subr.bf16.mxu0 0
    %3552 = vmatpush1.bf16.msra.mxu0 0
    %3553 = vmatprep.subr.bf16.mxu0 0
    %3554 = vmatpush1.bf16.msra.mxu0 0
    %3555 = vmatprep.subr.bf16.mxu0 0
    %3556 = vmatpush1.bf16.msra.mxu0 0
    %3557 = vmatprep.subr.bf16.mxu0 0
    %3558 = vmatpush1.bf16.msra.mxu0 0
    %3559 = vmatprep.subr.bf16.mxu0 0
    %3560 = vmatpush1.bf16.msra.mxu0 0
    %3561 = vmatprep.subr.bf16.mxu0 0
    %3562 = vmatpush1.bf16.msra.mxu0 0
    %3563 = vmatprep.subr.bf16.mxu0 0
    %3564 = vmatpush1.bf16.msra.mxu0 0
    %3565 = vmatprep.subr.bf16.mxu0 0
    %3566 = vmatpush1.bf16.msra.mxu0 0
    %3567 = vmatprep.subr.bf16.mxu0 0
    %3568 = vmatpush1.bf16.msra.mxu0 0
    %3569 = vmatprep.subr.bf16.mxu0 0
    %3570 = vmatpush1.bf16.msra.mxu0 0
    %3571 = vmatprep.subr.bf16.mxu0 0
    %3572 = vmatpush1.bf16.msra.mxu0 0
    %3573 = vmatprep.subr.bf16.mxu0 0
    %3574 = vmatpush1.bf16.msra.mxu0 0
    %3575 = vmatprep.subr.bf16.mxu0 0
    %3576 = vmatpush1.bf16.msra.mxu0 0
    %3577 = vmatprep.mubr.bf16.mxu0 0
    %3578 = vmatmul.mubr.bf16.gmra.mrb[0].mxu0 %v3540
    %v3579 = vpop.f32.mrb[0].mxu0
    %v3580 = vadd.f32 0.0, %v3579
    %v3581 = vpop.f32.mrb[0].mxu0
    %v3582 = vpop.f32.mrb[0].mxu0
    %v3583 = vpop.f32.mrb[0].mxu0
    %3584 = vdwg.mxu0
    %v3585 = vadd.f32 %v3459, %v3580
    %3586 = vset.pattern.permute.xlu0 28
    %3587 = vperm.xlu0 %3586, %v39
    %v3588 = vpop.permute.xlu0 %3587
    %vm3589 = vcmp.eq.s32.totalorder %v3588, %v57
    %v3590 = vsel %vm3589, 1, 0
    %v3591 = vcvt.s32.f32 %v3590
    %3592 = vmatprep.subr.mxu0 0.0
    %3593 = vmatpush1.msra.mxu0 %v40
    %3594 = vmatprep.subr.mxu0 0.0
    %3595 = vmatpush1.msra.mxu0 %v41
    %3596 = vmatprep.subr.mxu0 0.0
    %3597 = vmatpush1.msra.mxu0 %v42
    %3598 = vmatprep.subr.mxu0 0.0
    %3599 = vmatpush1.msra.mxu0 %v43
    %3600 = vmatprep.subr.mxu0 0.0
    %3601 = vmatpush1.msra.mxu0 %v44
    %3602 = vmatprep.subr.mxu0 0.0
    %3603 = vmatpush1.msra.mxu0 %v45
    %3604 = vmatprep.subr.mxu0 0.0
    %3605 = vmatpush1.msra.mxu0 %v46
    %3606 = vmatprep.subr.mxu0 0.0
    %3607 = vmatpush1.msra.mxu0 %v47
    %3608 = vmatprep.subr.mxu0 0.0
    %3609 = vmatpush1.msra.mxu0 %v48
    %3610 = vmatprep.subr.mxu0 0.0
    %3611 = vmatpush1.msra.mxu0 %v49
    %3612 = vmatprep.subr.mxu0 0.0
    %3613 = vmatpush1.msra.mxu0 %v50
    %3614 = vmatprep.subr.mxu0 0.0
    %3615 = vmatpush1.msra.mxu0 %v51
    %3616 = vmatprep.subr.mxu0 0.0
    %3617 = vmatpush1.msra.mxu0 %v52
    %3618 = vmatprep.subr.mxu0 0.0
    %3619 = vmatpush1.msra.mxu0 %v53
    %3620 = vmatprep.subr.mxu0 0.0
    %3621 = vmatpush1.msra.mxu0 %v54
    %3622 = vmatprep.subr.mxu0 0.0
    %3623 = vmatpush1.msra.mxu0 %v55
    %3624 = vmatprep.subr.mxu0 0.0
    %3625 = vmatpush1.msra.mxu0 0.0
    %3626 = vmatprep.subr.mxu0 0.0
    %3627 = vmatpush1.msra.mxu0 0.0
    %3628 = vmatprep.subr.mxu0 0.0
    %3629 = vmatpush1.msra.mxu0 0.0
    %3630 = vmatprep.subr.mxu0 0.0
    %3631 = vmatpush1.msra.mxu0 0.0
    %3632 = vmatprep.subr.mxu0 0.0
    %3633 = vmatpush1.msra.mxu0 0.0
    %3634 = vmatprep.subr.mxu0 0.0
    %3635 = vmatpush1.msra.mxu0 0.0
    %3636 = vmatprep.subr.mxu0 0.0
    %3637 = vmatpush1.msra.mxu0 0.0
    %3638 = vmatprep.subr.mxu0 0.0
    %3639 = vmatpush1.msra.mxu0 0.0
    %3640 = vmatprep.subr.mxu0 0.0
    %3641 = vmatpush1.msra.mxu0 0.0
    %3642 = vmatprep.subr.mxu0 0.0
    %3643 = vmatpush1.msra.mxu0 0.0
    %3644 = vmatprep.subr.mxu0 0.0
    %3645 = vmatpush1.msra.mxu0 0.0
    %3646 = vmatprep.subr.mxu0 0.0
    %3647 = vmatpush1.msra.mxu0 0.0
    %3648 = vmatprep.subr.mxu0 0.0
    %3649 = vmatpush1.msra.mxu0 0.0
    %3650 = vmatprep.subr.mxu0 0.0
    %3651 = vmatpush1.msra.mxu0 0.0
    %3652 = vmatprep.subr.mxu0 0.0
    %3653 = vmatpush1.msra.mxu0 0.0
    %3654 = vmatprep.subr.mxu0 0.0
    %3655 = vmatpush1.msra.mxu0 0.0
    %3656 = vmatprep.mubr.f32.mxu0 0.0
    %3657 = vmatmul.mubr.f32.gmra.mrb[0].mxu0 %v3591
    %v3658 = vpop.f32.mrb[0].mxu0
    %v3659 = vadd.f32 0.0, %v3658
    %v3660 = vpop.f32.mrb[0].mxu0
    %3661 = vdwg.mxu0
    %v3662 = vld [vmem:[#allocation2 + $0xe0] sm:$0xff]
    %v3663 = vpack.c.bf16 %v3659, %v3659
    %v3664 = vpack.c.bf16 %v3662, %v3662
    %v3666 = vsel %vm216, %v3663, 0
    %v3669 = vsel %vm220, %v3664, 0
    %3671 = vmatprep.subr.bf16.mxu0 0
    %3672 = vmatpush1.bf16.msra.mxu0 %v3669
    %3673 = vmatprep.subr.bf16.mxu0 0
    %3674 = vmatpush1.bf16.msra.mxu0 0
    %3675 = vmatprep.subr.bf16.mxu0 0
    %3676 = vmatpush1.bf16.msra.mxu0 0
    %3677 = vmatprep.subr.bf16.mxu0 0
    %3678 = vmatpush1.bf16.msra.mxu0 0
    %3679 = vmatprep.subr.bf16.mxu0 0
    %3680 = vmatpush1.bf16.msra.mxu0 0
    %3681 = vmatprep.subr.bf16.mxu0 0
    %3682 = vmatpush1.bf16.msra.mxu0 0
    %3683 = vmatprep.subr.bf16.mxu0 0
    %3684 = vmatpush1.bf16.msra.mxu0 0
    %3685 = vmatprep.subr.bf16.mxu0 0
    %3686 = vmatpush1.bf16.msra.mxu0 0
    %3687 = vmatprep.subr.bf16.mxu0 0
    %3688 = vmatpush1.bf16.msra.mxu0 0
    %3689 = vmatprep.subr.bf16.mxu0 0
    %3690 = vmatpush1.bf16.msra.mxu0 0
    %3691 = vmatprep.subr.bf16.mxu0 0
    %3692 = vmatpush1.bf16.msra.mxu0 0
    %3693 = vmatprep.subr.bf16.mxu0 0
    %3694 = vmatpush1.bf16.msra.mxu0 0
    %3695 = vmatprep.subr.bf16.mxu0 0
    %3696 = vmatpush1.bf16.msra.mxu0 0
    %3697 = vmatprep.subr.bf16.mxu0 0
    %3698 = vmatpush1.bf16.msra.mxu0 0
    %3699 = vmatprep.subr.bf16.mxu0 0
    %3700 = vmatpush1.bf16.msra.mxu0 0
    %3701 = vmatprep.subr.bf16.mxu0 0
    %3702 = vmatpush1.bf16.msra.mxu0 0
    %3703 = vmatprep.mubr.bf16.mxu0 0
    %3704 = vmatmul.mubr.bf16.gmra.mrb[0].mxu0 %v3666
    %v3705 = vpop.f32.mrb[0].mxu0
    %v3706 = vadd.f32 0.0, %v3705
    %v3707 = vpop.f32.mrb[0].mxu0
    %v3708 = vpop.f32.mrb[0].mxu0
    %v3709 = vpop.f32.mrb[0].mxu0
    %3710 = vdwg.mxu0
    %v3711 = vadd.f32 %v3585, %v3706
    %3712 = vset.pattern.permute.xlu0 29
    %3713 = vperm.xlu0 %3712, %v39
    %v3714 = vpop.permute.xlu0 %3713
    %vm3715 = vcmp.eq.s32.totalorder %v3714, %v57
    %v3716 = vsel %vm3715, 1, 0
    %v3717 = vcvt.s32.f32 %v3716
    %3718 = vmatprep.subr.mxu0 0.0
    %3719 = vmatpush1.msra.mxu0 %v40
    %3720 = vmatprep.subr.mxu0 0.0
    %3721 = vmatpush1.msra.mxu0 %v41
    %3722 = vmatprep.subr.mxu0 0.0
    %3723 = vmatpush1.msra.mxu0 %v42
    %3724 = vmatprep.subr.mxu0 0.0
    %3725 = vmatpush1.msra.mxu0 %v43
    %3726 = vmatprep.subr.mxu0 0.0
    %3727 = vmatpush1.msra.mxu0 %v44
    %3728 = vmatprep.subr.mxu0 0.0
    %3729 = vmatpush1.msra.mxu0 %v45
    %3730 = vmatprep.subr.mxu0 0.0
    %3731 = vmatpush1.msra.mxu0 %v46
    %3732 = vmatprep.subr.mxu0 0.0
    %3733 = vmatpush1.msra.mxu0 %v47
    %3734 = vmatprep.subr.mxu0 0.0
    %3735 = vmatpush1.msra.mxu0 %v48
    %3736 = vmatprep.subr.mxu0 0.0
    %3737 = vmatpush1.msra.mxu0 %v49
    %3738 = vmatprep.subr.mxu0 0.0
    %3739 = vmatpush1.msra.mxu0 %v50
    %3740 = vmatprep.subr.mxu0 0.0
    %3741 = vmatpush1.msra.mxu0 %v51
    %3742 = vmatprep.subr.mxu0 0.0
    %3743 = vmatpush1.msra.mxu0 %v52
    %3744 = vmatprep.subr.mxu0 0.0
    %3745 = vmatpush1.msra.mxu0 %v53
    %3746 = vmatprep.subr.mxu0 0.0
    %3747 = vmatpush1.msra.mxu0 %v54
    %3748 = vmatprep.subr.mxu0 0.0
    %3749 = vmatpush1.msra.mxu0 %v55
    %3750 = vmatprep.subr.mxu0 0.0
    %3751 = vmatpush1.msra.mxu0 0.0
    %3752 = vmatprep.subr.mxu0 0.0
    %3753 = vmatpush1.msra.mxu0 0.0
    %3754 = vmatprep.subr.mxu0 0.0
    %3755 = vmatpush1.msra.mxu0 0.0
    %3756 = vmatprep.subr.mxu0 0.0
    %3757 = vmatpush1.msra.mxu0 0.0
    %3758 = vmatprep.subr.mxu0 0.0
    %3759 = vmatpush1.msra.mxu0 0.0
    %3760 = vmatprep.subr.mxu0 0.0
    %3761 = vmatpush1.msra.mxu0 0.0
    %3762 = vmatprep.subr.mxu0 0.0
    %3763 = vmatpush1.msra.mxu0 0.0
    %3764 = vmatprep.subr.mxu0 0.0
    %3765 = vmatpush1.msra.mxu0 0.0
    %3766 = vmatprep.subr.mxu0 0.0
    %3767 = vmatpush1.msra.mxu0 0.0
    %3768 = vmatprep.subr.mxu0 0.0
    %3769 = vmatpush1.msra.mxu0 0.0
    %3770 = vmatprep.subr.mxu0 0.0
    %3771 = vmatpush1.msra.mxu0 0.0
    %3772 = vmatprep.subr.mxu0 0.0
    %3773 = vmatpush1.msra.mxu0 0.0
    %3774 = vmatprep.subr.mxu0 0.0
    %3775 = vmatpush1.msra.mxu0 0.0
    %3776 = vmatprep.subr.mxu0 0.0
    %3777 = vmatpush1.msra.mxu0 0.0
    %3778 = vmatprep.subr.mxu0 0.0
    %3779 = vmatpush1.msra.mxu0 0.0
    %3780 = vmatprep.subr.mxu0 0.0
    %3781 = vmatpush1.msra.mxu0 0.0
    %3782 = vmatprep.mubr.f32.mxu0 0.0
    %3783 = vmatmul.mubr.f32.gmra.mrb[0].mxu0 %v3717
    %v3784 = vpop.f32.mrb[0].mxu0
    %v3785 = vadd.f32 0.0, %v3784
    %v3786 = vpop.f32.mrb[0].mxu0
    %3787 = vdwg.mxu0
    %v3788 = vld [vmem:[#allocation2 + $0xe8] sm:$0xff]
    %v3789 = vpack.c.bf16 %v3785, %v3785
    %v3790 = vpack.c.bf16 %v3788, %v3788
    %v3792 = vsel %vm216, %v3789, 0
    %v3795 = vsel %vm220, %v3790, 0
    %3797 = vmatprep.subr.bf16.mxu0 0
    %3798 = vmatpush1.bf16.msra.mxu0 %v3795
    %3799 = vmatprep.subr.bf16.mxu0 0
    %3800 = vmatpush1.bf16.msra.mxu0 0
    %3801 = vmatprep.subr.bf16.mxu0 0
    %3802 = vmatpush1.bf16.msra.mxu0 0
    %3803 = vmatprep.subr.bf16.mxu0 0
    %3804 = vmatpush1.bf16.msra.mxu0 0
    %3805 = vmatprep.subr.bf16.mxu0 0
    %3806 = vmatpush1.bf16.msra.mxu0 0
    %3807 = vmatprep.subr.bf16.mxu0 0
    %3808 = vmatpush1.bf16.msra.mxu0 0
    %3809 = vmatprep.subr.bf16.mxu0 0
    %3810 = vmatpush1.bf16.msra.mxu0 0
    %3811 = vmatprep.subr.bf16.mxu0 0
    %3812 = vmatpush1.bf16.msra.mxu0 0
    %3813 = vmatprep.subr.bf16.mxu0 0
    %3814 = vmatpush1.bf16.msra.mxu0 0
    %3815 = vmatprep.subr.bf16.mxu0 0
    %3816 = vmatpush1.bf16.msra.mxu0 0
    %3817 = vmatprep.subr.bf16.mxu0 0
    %3818 = vmatpush1.bf16.msra.mxu0 0
    %3819 = vmatprep.subr.bf16.mxu0 0
    %3820 = vmatpush1.bf16.msra.mxu0 0
    %3821 = vmatprep.subr.bf16.mxu0 0
    %3822 = vmatpush1.bf16.msra.mxu0 0
    %3823 = vmatprep.subr.bf16.mxu0 0
    %3824 = vmatpush1.bf16.msra.mxu0 0
    %3825 = vmatprep.subr.bf16.mxu0 0
    %3826 = vmatpush1.bf16.msra.mxu0 0
    %3827 = vmatprep.subr.bf16.mxu0 0
    %3828 = vmatpush1.bf16.msra.mxu0 0
    %3829 = vmatprep.mubr.bf16.mxu0 0
    %3830 = vmatmul.mubr.bf16.gmra.mrb[0].mxu0 %v3792
    %v3831 = vpop.f32.mrb[0].mxu0
    %v3832 = vadd.f32 0.0, %v3831
    %v3833 = vpop.f32.mrb[0].mxu0
    %v3834 = vpop.f32.mrb[0].mxu0
    %v3835 = vpop.f32.mrb[0].mxu0
    %3836 = vdwg.mxu0
    %v3837 = vadd.f32 %v3711, %v3832
    %3838 = vset.pattern.permute.xlu0 30
    %3839 = vperm.xlu0 %3838, %v39
    %v3840 = vpop.permute.xlu0 %3839
    %vm3841 = vcmp.eq.s32.totalorder %v3840, %v57
    %v3842 = vsel %vm3841, 1, 0
    %v3843 = vcvt.s32.f32 %v3842
    %3844 = vmatprep.subr.mxu0 0.0
    %3845 = vmatpush1.msra.mxu0 %v40
    %3846 = vmatprep.subr.mxu0 0.0
    %3847 = vmatpush1.msra.mxu0 %v41
    %3848 = vmatprep.subr.mxu0 0.0
    %3849 = vmatpush1.msra.mxu0 %v42
    %3850 = vmatprep.subr.mxu0 0.0
    %3851 = vmatpush1.msra.mxu0 %v43
    %3852 = vmatprep.subr.mxu0 0.0
    %3853 = vmatpush1.msra.mxu0 %v44
    %3854 = vmatprep.subr.mxu0 0.0
    %3855 = vmatpush1.msra.mxu0 %v45
    %3856 = vmatprep.subr.mxu0 0.0
    %3857 = vmatpush1.msra.mxu0 %v46
    %3858 = vmatprep.subr.mxu0 0.0
    %3859 = vmatpush1.msra.mxu0 %v47
    %3860 = vmatprep.subr.mxu0 0.0
    %3861 = vmatpush1.msra.mxu0 %v48
    %3862 = vmatprep.subr.mxu0 0.0
    %3863 = vmatpush1.msra.mxu0 %v49
    %3864 = vmatprep.subr.mxu0 0.0
    %3865 = vmatpush1.msra.mxu0 %v50
    %3866 = vmatprep.subr.mxu0 0.0
    %3867 = vmatpush1.msra.mxu0 %v51
    %3868 = vmatprep.subr.mxu0 0.0
    %3869 = vmatpush1.msra.mxu0 %v52
    %3870 = vmatprep.subr.mxu0 0.0
    %3871 = vmatpush1.msra.mxu0 %v53
    %3872 = vmatprep.subr.mxu0 0.0
    %3873 = vmatpush1.msra.mxu0 %v54
    %3874 = vmatprep.subr.mxu0 0.0
    %3875 = vmatpush1.msra.mxu0 %v55
    %3876 = vmatprep.subr.mxu0 0.0
    %3877 = vmatpush1.msra.mxu0 0.0
    %3878 = vmatprep.subr.mxu0 0.0
    %3879 = vmatpush1.msra.mxu0 0.0
    %3880 = vmatprep.subr.mxu0 0.0
    %3881 = vmatpush1.msra.mxu0 0.0
    %3882 = vmatprep.subr.mxu0 0.0
    %3883 = vmatpush1.msra.mxu0 0.0
    %3884 = vmatprep.subr.mxu0 0.0
    %3885 = vmatpush1.msra.mxu0 0.0
    %3886 = vmatprep.subr.mxu0 0.0
    %3887 = vmatpush1.msra.mxu0 0.0
    %3888 = vmatprep.subr.mxu0 0.0
    %3889 = vmatpush1.msra.mxu0 0.0
    %3890 = vmatprep.subr.mxu0 0.0
    %3891 = vmatpush1.msra.mxu0 0.0
    %3892 = vmatprep.subr.mxu0 0.0
    %3893 = vmatpush1.msra.mxu0 0.0
    %3894 = vmatprep.subr.mxu0 0.0
    %3895 = vmatpush1.msra.mxu0 0.0
    %3896 = vmatprep.subr.mxu0 0.0
    %3897 = vmatpush1.msra.mxu0 0.0
    %3898 = vmatprep.subr.mxu0 0.0
    %3899 = vmatpush1.msra.mxu0 0.0
    %3900 = vmatprep.subr.mxu0 0.0
    %3901 = vmatpush1.msra.mxu0 0.0
    %3902 = vmatprep.subr.mxu0 0.0
    %3903 = vmatpush1.msra.mxu0 0.0
    %3904 = vmatprep.subr.mxu0 0.0
    %3905 = vmatpush1.msra.mxu0 0.0
    %3906 = vmatprep.subr.mxu0 0.0
    %3907 = vmatpush1.msra.mxu0 0.0
    %3908 = vmatprep.mubr.f32.mxu0 0.0
    %3909 = vmatmul.mubr.f32.gmra.mrb[0].mxu0 %v3843
    %v3910 = vpop.f32.mrb[0].mxu0
    %v3911 = vadd.f32 0.0, %v3910
    %v3912 = vpop.f32.mrb[0].mxu0
    %3913 = vdwg.mxu0
    %v3914 = vld [vmem:[#allocation2 + $0xf0] sm:$0xff]
    %v3915 = vpack.c.bf16 %v3911, %v3911
    %v3916 = vpack.c.bf16 %v3914, %v3914
    %v3918 = vsel %vm216, %v3915, 0
    %v3921 = vsel %vm220, %v3916, 0
    %3923 = vmatprep.subr.bf16.mxu0 0
    %3924 = vmatpush1.bf16.msra.mxu0 %v3921
    %3925 = vmatprep.subr.bf16.mxu0 0
    %3926 = vmatpush1.bf16.msra.mxu0 0
    %3927 = vmatprep.subr.bf16.mxu0 0
    %3928 = vmatpush1.bf16.msra.mxu0 0
    %3929 = vmatprep.subr.bf16.mxu0 0
    %3930 = vmatpush1.bf16.msra.mxu0 0
    %3931 = vmatprep.subr.bf16.mxu0 0
    %3932 = vmatpush1.bf16.msra.mxu0 0
    %3933 = vmatprep.subr.bf16.mxu0 0
    %3934 = vmatpush1.bf16.msra.mxu0 0
    %3935 = vmatprep.subr.bf16.mxu0 0
    %3936 = vmatpush1.bf16.msra.mxu0 0
    %3937 = vmatprep.subr.bf16.mxu0 0
    %3938 = vmatpush1.bf16.msra.mxu0 0
    %3939 = vmatprep.subr.bf16.mxu0 0
    %3940 = vmatpush1.bf16.msra.mxu0 0
    %3941 = vmatprep.subr.bf16.mxu0 0
    %3942 = vmatpush1.bf16.msra.mxu0 0
    %3943 = vmatprep.subr.bf16.mxu0 0
    %3944 = vmatpush1.bf16.msra.mxu0 0
    %3945 = vmatprep.subr.bf16.mxu0 0
    %3946 = vmatpush1.bf16.msra.mxu0 0
    %3947 = vmatprep.subr.bf16.mxu0 0
    %3948 = vmatpush1.bf16.msra.mxu0 0
    %3949 = vmatprep.subr.bf16.mxu0 0
    %3950 = vmatpush1.bf16.msra.mxu0 0
    %3951 = vmatprep.subr.bf16.mxu0 0
    %3952 = vmatpush1.bf16.msra.mxu0 0
    %3953 = vmatprep.subr.bf16.mxu0 0
    %3954 = vmatpush1.bf16.msra.mxu0 0
    %3955 = vmatprep.mubr.bf16.mxu0 0
    %3956 = vmatmul.mubr.bf16.gmra.mrb[0].mxu0 %v3918
    %v3957 = vpop.f32.mrb[0].mxu0
    %v3958 = vadd.f32 0.0, %v3957
    %v3959 = vpop.f32.mrb[0].mxu0
    %v3960 = vpop.f32.mrb[0].mxu0
    %v3961 = vpop.f32.mrb[0].mxu0
    %3962 = vdwg.mxu0
    %v3963 = vadd.f32 %v3837, %v3958
    %3964 = vset.pattern.permute.xlu0 31
    %3965 = vperm.xlu0 %3964, %v39
    %v3966 = vpop.permute.xlu0 %3965
    %vm3967 = vcmp.eq.s32.totalorder %v3966, %v57
    %v3968 = vsel %vm3967, 1, 0
    %v3969 = vcvt.s32.f32 %v3968
    %3970 = vmatprep.subr.mxu0 0.0
    %3971 = vmatpush1.msra.mxu0 %v40
    %3972 = vmatprep.subr.mxu0 0.0
    %3973 = vmatpush1.msra.mxu0 %v41
    %3974 = vmatprep.subr.mxu0 0.0
    %3975 = vmatpush1.msra.mxu0 %v42
    %3976 = vmatprep.subr.mxu0 0.0
    %3977 = vmatpush1.msra.mxu0 %v43
    %3978 = vmatprep.subr.mxu0 0.0
    %3979 = vmatpush1.msra.mxu0 %v44
    %3980 = vmatprep.subr.mxu0 0.0
    %3981 = vmatpush1.msra.mxu0 %v45
    %3982 = vmatprep.subr.mxu0 0.0
    %3983 = vmatpush1.msra.mxu0 %v46
    %3984 = vmatprep.subr.mxu0 0.0
    %3985 = vmatpush1.msra.mxu0 %v47
    %3986 = vmatprep.subr.mxu0 0.0
    %3987 = vmatpush1.msra.mxu0 %v48
    %3988 = vmatprep.subr.mxu0 0.0
    %3989 = vmatpush1.msra.mxu0 %v49
    %3990 = vmatprep.subr.mxu0 0.0
    %3991 = vmatpush1.msra.mxu0 %v50
    %3992 = vmatprep.subr.mxu0 0.0
    %3993 = vmatpush1.msra.mxu0 %v51
    %3994 = vmatprep.subr.mxu0 0.0
    %3995 = vmatpush1.msra.mxu0 %v52
    %3996 = vmatprep.subr.mxu0 0.0
    %3997 = vmatpush1.msra.mxu0 %v53
    %3998 = vmatprep.subr.mxu0 0.0
    %3999 = vmatpush1.msra.mxu0 %v54
    %4000 = vmatprep.subr.mxu0 0.0
    %4001 = vmatpush1.msra.mxu0 %v55
    %4002 = vmatprep.subr.mxu0 0.0
    %4003 = vmatpush1.msra.mxu0 0.0
    %4004 = vmatprep.subr.mxu0 0.0
    %4005 = vmatpush1.msra.mxu0 0.0
    %4006 = vmatprep.subr.mxu0 0.0
    %4007 = vmatpush1.msra.mxu0 0.0
    %4008 = vmatprep.subr.mxu0 0.0
    %4009 = vmatpush1.msra.mxu0 0.0
    %4010 = vmatprep.subr.mxu0 0.0
    %4011 = vmatpush1.msra.mxu0 0.0
    %4012 = vmatprep.subr.mxu0 0.0
    %4013 = vmatpush1.msra.mxu0 0.0
    %4014 = vmatprep.subr.mxu0 0.0
    %4015 = vmatpush1.msra.mxu0 0.0
    %4016 = vmatprep.subr.mxu0 0.0
    %4017 = vmatpush1.msra.mxu0 0.0
    %4018 = vmatprep.subr.mxu0 0.0
    %4019 = vmatpush1.msra.mxu0 0.0
    %4020 = vmatprep.subr.mxu0 0.0
    %4021 = vmatpush1.msra.mxu0 0.0
    %4022 = vmatprep.subr.mxu0 0.0
    %4023 = vmatpush1.msra.mxu0 0.0
    %4024 = vmatprep.subr.mxu0 0.0
    %4025 = vmatpush1.msra.mxu0 0.0
    %4026 = vmatprep.subr.mxu0 0.0
    %4027 = vmatpush1.msra.mxu0 0.0
    %4028 = vmatprep.subr.mxu0 0.0
    %4029 = vmatpush1.msra.mxu0 0.0
    %4030 = vmatprep.subr.mxu0 0.0
    %4031 = vmatpush1.msra.mxu0 0.0
    %4032 = vmatprep.subr.mxu0 0.0
    %4033 = vmatpush1.msra.mxu0 0.0
    %4034 = vmatprep.mubr.f32.mxu0 0.0
    %4035 = vmatmul.mubr.f32.gmra.mrb[0].mxu0 %v3969
    %v4036 = vpop.f32.mrb[0].mxu0
    %v4037 = vadd.f32 0.0, %v4036
    %v4038 = vpop.f32.mrb[0].mxu0
    %4039 = vdwg.mxu0
    %v4040 = vld [vmem:[#allocation2 + $0xf8] sm:$0xff]
    %v4041 = vpack.c.bf16 %v4037, %v4037
    %v4042 = vpack.c.bf16 %v4040, %v4040
    %v4044 = vsel %vm216, %v4041, 0
    %v4047 = vsel %vm220, %v4042, 0
    %4049 = vmatprep.subr.bf16.mxu0 0
    %4050 = vmatpush1.bf16.msra.mxu0 %v4047
    %4051 = vmatprep.subr.bf16.mxu0 0
    %4052 = vmatpush1.bf16.msra.mxu0 0
    %4053 = vmatprep.subr.bf16.mxu0 0
    %4054 = vmatpush1.bf16.msra.mxu0 0
    %4055 = vmatprep.subr.bf16.mxu0 0
    %4056 = vmatpush1.bf16.msra.mxu0 0
    %4057 = vmatprep.subr.bf16.mxu0 0
    %4058 = vmatpush1.bf16.msra.mxu0 0
    %4059 = vmatprep.subr.bf16.mxu0 0
    %4060 = vmatpush1.bf16.msra.mxu0 0
    %4061 = vmatprep.subr.bf16.mxu0 0
    %4062 = vmatpush1.bf16.msra.mxu0 0
    %4063 = vmatprep.subr.bf16.mxu0 0
    %4064 = vmatpush1.bf16.msra.mxu0 0
    %4065 = vmatprep.subr.bf16.mxu0 0
    %4066 = vmatpush1.bf16.msra.mxu0 0
    %4067 = vmatprep.subr.bf16.mxu0 0
    %4068 = vmatpush1.bf16.msra.mxu0 0
    %4069 = vmatprep.subr.bf16.mxu0 0
    %4070 = vmatpush1.bf16.msra.mxu0 0
    %4071 = vmatprep.subr.bf16.mxu0 0
    %4072 = vmatpush1.bf16.msra.mxu0 0
    %4073 = vmatprep.subr.bf16.mxu0 0
    %4074 = vmatpush1.bf16.msra.mxu0 0
    %4075 = vmatprep.subr.bf16.mxu0 0
    %4076 = vmatpush1.bf16.msra.mxu0 0
    %4077 = vmatprep.subr.bf16.mxu0 0
    %4078 = vmatpush1.bf16.msra.mxu0 0
    %4079 = vmatprep.subr.bf16.mxu0 0
    %4080 = vmatpush1.bf16.msra.mxu0 0
    %4081 = vmatprep.mubr.bf16.mxu0 0
    %4082 = vmatmul.mubr.bf16.gmra.mrb[0].mxu0 %v4044
    %v4083 = vpop.f32.mrb[0].mxu0
    %v4084 = vadd.f32 0.0, %v4083
    %v4085 = vpop.f32.mrb[0].mxu0
    %v4086 = vpop.f32.mrb[0].mxu0
    %v4087 = vpop.f32.mrb[0].mxu0
    %4088 = vdwg.mxu0
    %v4089 = vadd.f32 %v3963, %v4084
    %4090 = vset.pattern.permute.xlu0 32
    %4091 = vperm.xlu0 %4090, %v39
    %v4092 = vpop.permute.xlu0 %4091
    %vm4093 = vcmp.eq.s32.totalorder %v4092, %v57
    %v4094 = vsel %vm4093, 1, 0
    %v4095 = vcvt.s32.f32 %v4094
    %4096 = vmatprep.subr.mxu0 0.0
    %4097 = vmatpush1.msra.mxu0 %v40
    %4098 = vmatprep.subr.mxu0 0.0
    %4099 = vmatpush1.msra.mxu0 %v41
    %4100 = vmatprep.subr.mxu0 0.0
    %4101 = vmatpush1.msra.mxu0 %v42
    %4102 = vmatprep.subr.mxu0 0.0
    %4103 = vmatpush1.msra.mxu0 %v43
    %4104 = vmatprep.subr.mxu0 0.0
    %4105 = vmatpush1.msra.mxu0 %v44
    %4106 = vmatprep.subr.mxu0 0.0
    %4107 = vmatpush1.msra.mxu0 %v45
    %4108 = vmatprep.subr.mxu0 0.0
    %4109 = vmatpush1.msra.mxu0 %v46
    %4110 = vmatprep.subr.mxu0 0.0
    %4111 = vmatpush1.msra.mxu0 %v47
    %4112 = vmatprep.subr.mxu0 0.0
    %4113 = vmatpush1.msra.mxu0 %v48
    %4114 = vmatprep.subr.mxu0 0.0
    %4115 = vmatpush1.msra.mxu0 %v49
    %4116 = vmatprep.subr.mxu0 0.0
    %4117 = vmatpush1.msra.mxu0 %v50
    %4118 = vmatprep.subr.mxu0 0.0
    %4119 = vmatpush1.msra.mxu0 %v51
    %4120 = vmatprep.subr.mxu0 0.0
    %4121 = vmatpush1.msra.mxu0 %v52
    %4122 = vmatprep.subr.mxu0 0.0
    %4123 = vmatpush1.msra.mxu0 %v53
    %4124 = vmatprep.subr.mxu0 0.0
    %4125 = vmatpush1.msra.mxu0 %v54
    %4126 = vmatprep.subr.mxu0 0.0
    %4127 = vmatpush1.msra.mxu0 %v55
    %4128 = vmatprep.subr.mxu0 0.0
    %4129 = vmatpush1.msra.mxu0 0.0
    %4130 = vmatprep.subr.mxu0 0.0
    %4131 = vmatpush1.msra.mxu0 0.0
    %4132 = vmatprep.subr.mxu0 0.0
    %4133 = vmatpush1.msra.mxu0 0.0
    %4134 = vmatprep.subr.mxu0 0.0
    %4135 = vmatpush1.msra.mxu0 0.0
    %4136 = vmatprep.subr.mxu0 0.0
    %4137 = vmatpush1.msra.mxu0 0.0
    %4138 = vmatprep.subr.mxu0 0.0
    %4139 = vmatpush1.msra.mxu0 0.0
    %4140 = vmatprep.subr.mxu0 0.0
    %4141 = vmatpush1.msra.mxu0 0.0
    %4142 = vmatprep.subr.mxu0 0.0
    %4143 = vmatpush1.msra.mxu0 0.0
    %4144 = vmatprep.subr.mxu0 0.0
    %4145 = vmatpush1.msra.mxu0 0.0
    %4146 = vmatprep.subr.mxu0 0.0
    %4147 = vmatpush1.msra.mxu0 0.0
    %4148 = vmatprep.subr.mxu0 0.0
    %4149 = vmatpush1.msra.mxu0 0.0
    %4150 = vmatprep.subr.mxu0 0.0
    %4151 = vmatpush1.msra.mxu0 0.0
    %4152 = vmatprep.subr.mxu0 0.0
    %4153 = vmatpush1.msra.mxu0 0.0
    %4154 = vmatprep.subr.mxu0 0.0
    %4155 = vmatpush1.msra.mxu0 0.0
    %4156 = vmatprep.subr.mxu0 0.0
    %4157 = vmatpush1.msra.mxu0 0.0
    %4158 = vmatprep.subr.mxu0 0.0
    %4159 = vmatpush1.msra.mxu0 0.0
    %4160 = vmatprep.mubr.f32.mxu0 0.0
    %4161 = vmatmul.mubr.f32.gmra.mrb[0].mxu0 %v4095
    %v4162 = vpop.f32.mrb[0].mxu0
    %v4163 = vadd.f32 0.0, %v4162
    %v4164 = vpop.f32.mrb[0].mxu0
    %4165 = vdwg.mxu0
    %v4166 = vld [vmem:[#allocation2 + $0x100] sm:$0xff]
    %v4167 = vpack.c.bf16 %v4163, %v4163
    %v4168 = vpack.c.bf16 %v4166, %v4166
    %v4170 = vsel %vm216, %v4167, 0
    %v4173 = vsel %vm220, %v4168, 0
    %4175 = vmatprep.subr.bf16.mxu0 0
    %4176 = vmatpush1.bf16.msra.mxu0 %v4173
    %4177 = vmatprep.subr.bf16.mxu0 0
    %4178 = vmatpush1.bf16.msra.mxu0 0
    %4179 = vmatprep.subr.bf16.mxu0 0
    %4180 = vmatpush1.bf16.msra.mxu0 0
    %4181 = vmatprep.subr.bf16.mxu0 0
    %4182 = vmatpush1.bf16.msra.mxu0 0
    %4183 = vmatprep.subr.bf16.mxu0 0
    %4184 = vmatpush1.bf16.msra.mxu0 0
    %4185 = vmatprep.subr.bf16.mxu0 0
    %4186 = vmatpush1.bf16.msra.mxu0 0
    %4187 = vmatprep.subr.bf16.mxu0 0
    %4188 = vmatpush1.bf16.msra.mxu0 0
    %4189 = vmatprep.subr.bf16.mxu0 0
    %4190 = vmatpush1.bf16.msra.mxu0 0
    %4191 = vmatprep.subr.bf16.mxu0 0
    %4192 = vmatpush1.bf16.msra.mxu0 0
    %4193 = vmatprep.subr.bf16.mxu0 0
    %4194 = vmatpush1.bf16.msra.mxu0 0
    %4195 = vmatprep.subr.bf16.mxu0 0
    %4196 = vmatpush1.bf16.msra.mxu0 0
    %4197 = vmatprep.subr.bf16.mxu0 0
    %4198 = vmatpush1.bf16.msra.mxu0 0
    %4199 = vmatprep.subr.bf16.mxu0 0
    %4200 = vmatpush1.bf16.msra.mxu0 0
    %4201 = vmatprep.subr.bf16.mxu0 0
    %4202 = vmatpush1.bf16.msra.mxu0 0
    %4203 = vmatprep.subr.bf16.mxu0 0
    %4204 = vmatpush1.bf16.msra.mxu0 0
    %4205 = vmatprep.subr.bf16.mxu0 0
    %4206 = vmatpush1.bf16.msra.mxu0 0
    %4207 = vmatprep.mubr.bf16.mxu0 0
    %4208 = vmatmul.mubr.bf16.gmra.mrb[0].mxu0 %v4170
    %v4209 = vpop.f32.mrb[0].mxu0
    %v4210 = vadd.f32 0.0, %v4209
    %v4211 = vpop.f32.mrb[0].mxu0
    %v4212 = vpop.f32.mrb[0].mxu0
    %v4213 = vpop.f32.mrb[0].mxu0
    %4214 = vdwg.mxu0
    %v4215 = vadd.f32 %v4089, %v4210
    %4216 = vset.pattern.permute.xlu0 33
    %4217 = vperm.xlu0 %4216, %v39
    %v4218 = vpop.permute.xlu0 %4217
    %vm4219 = vcmp.eq.s32.totalorder %v4218, %v57
    %v4220 = vsel %vm4219, 1, 0
    %v4221 = vcvt.s32.f32 %v4220
    %4222 = vmatprep.subr.mxu0 0.0
    %4223 = vmatpush1.msra.mxu0 %v40
    %4224 = vmatprep.subr.mxu0 0.0
    %4225 = vmatpush1.msra.mxu0 %v41
    %4226 = vmatprep.subr.mxu0 0.0
    %4227 = vmatpush1.msra.mxu0 %v42
    %4228 = vmatprep.subr.mxu0 0.0
    %4229 = vmatpush1.msra.mxu0 %v43
    %4230 = vmatprep.subr.mxu0 0.0
    %4231 = vmatpush1.msra.mxu0 %v44
    %4232 = vmatprep.subr.mxu0 0.0
    %4233 = vmatpush1.msra.mxu0 %v45
    %4234 = vmatprep.subr.mxu0 0.0
    %4235 = vmatpush1.msra.mxu0 %v46
    %4236 = vmatprep.subr.mxu0 0.0
    %4237 = vmatpush1.msra.mxu0 %v47
    %4238 = vmatprep.subr.mxu0 0.0
    %4239 = vmatpush1.msra.mxu0 %v48
    %4240 = vmatprep.subr.mxu0 0.0
    %4241 = vmatpush1.msra.mxu0 %v49
    %4242 = vmatprep.subr.mxu0 0.0
    %4243 = vmatpush1.msra.mxu0 %v50
    %4244 = vmatprep.subr.mxu0 0.0
    %4245 = vmatpush1.msra.mxu0 %v51
    %4246 = vmatprep.subr.mxu0 0.0
    %4247 = vmatpush1.msra.mxu0 %v52
    %4248 = vmatprep.subr.mxu0 0.0
    %4249 = vmatpush1.msra.mxu0 %v53
    %4250 = vmatprep.subr.mxu0 0.0
    %4251 = vmatpush1.msra.mxu0 %v54
    %4252 = vmatprep.subr.mxu0 0.0
    %4253 = vmatpush1.msra.mxu0 %v55
    %4254 = vmatprep.subr.mxu0 0.0
    %4255 = vmatpush1.msra.mxu0 0.0
    %4256 = vmatprep.subr.mxu0 0.0
    %4257 = vmatpush1.msra.mxu0 0.0
    %4258 = vmatprep.subr.mxu0 0.0
    %4259 = vmatpush1.msra.mxu0 0.0
    %4260 = vmatprep.subr.mxu0 0.0
    %4261 = vmatpush1.msra.mxu0 0.0
    %4262 = vmatprep.subr.mxu0 0.0
    %4263 = vmatpush1.msra.mxu0 0.0
    %4264 = vmatprep.subr.mxu0 0.0
    %4265 = vmatpush1.msra.mxu0 0.0
    %4266 = vmatprep.subr.mxu0 0.0
    %4267 = vmatpush1.msra.mxu0 0.0
    %4268 = vmatprep.subr.mxu0 0.0
    %4269 = vmatpush1.msra.mxu0 0.0
    %4270 = vmatprep.subr.mxu0 0.0
    %4271 = vmatpush1.msra.mxu0 0.0
    %4272 = vmatprep.subr.mxu0 0.0
    %4273 = vmatpush1.msra.mxu0 0.0
    %4274 = vmatprep.subr.mxu0 0.0
    %4275 = vmatpush1.msra.mxu0 0.0
    %4276 = vmatprep.subr.mxu0 0.0
    %4277 = vmatpush1.msra.mxu0 0.0
    %4278 = vmatprep.subr.mxu0 0.0
    %4279 = vmatpush1.msra.mxu0 0.0
    %4280 = vmatprep.subr.mxu0 0.0
    %4281 = vmatpush1.msra.mxu0 0.0
    %4282 = vmatprep.subr.mxu0 0.0
    %4283 = vmatpush1.msra.mxu0 0.0
    %4284 = vmatprep.subr.mxu0 0.0
    %4285 = vmatpush1.msra.mxu0 0.0
    %4286 = vmatprep.mubr.f32.mxu0 0.0
    %4287 = vmatmul.mubr.f32.gmra.mrb[0].mxu0 %v4221
    %v4288 = vpop.f32.mrb[0].mxu0
    %v4289 = vadd.f32 0.0, %v4288
    %v4290 = vpop.f32.mrb[0].mxu0
    %4291 = vdwg.mxu0
    %v4292 = vld [vmem:[#allocation2 + $0x108] sm:$0xff]
    %v4293 = vpack.c.bf16 %v4289, %v4289
    %v4294 = vpack.c.bf16 %v4292, %v4292
    %v4296 = vsel %vm216, %v4293, 0
    %v4299 = vsel %vm220, %v4294, 0
    %4301 = vmatprep.subr.bf16.mxu0 0
    %4302 = vmatpush1.bf16.msra.mxu0 %v4299
    %4303 = vmatprep.subr.bf16.mxu0 0
    %4304 = vmatpush1.bf16.msra.mxu0 0
    %4305 = vmatprep.subr.bf16.mxu0 0
    %4306 = vmatpush1.bf16.msra.mxu0 0
    %4307 = vmatprep.subr.bf16.mxu0 0
    %4308 = vmatpush1.bf16.msra.mxu0 0
    %4309 = vmatprep.subr.bf16.mxu0 0
    %4310 = vmatpush1.bf16.msra.mxu0 0
    %4311 = vmatprep.subr.bf16.mxu0 0
    %4312 = vmatpush1.bf16.msra.mxu0 0
    %4313 = vmatprep.subr.bf16.mxu0 0
    %4314 = vmatpush1.bf16.msra.mxu0 0
    %4315 = vmatprep.subr.bf16.mxu0 0
    %4316 = vmatpush1.bf16.msra.mxu0 0
    %4317 = vmatprep.subr.bf16.mxu0 0
    %4318 = vmatpush1.bf16.msra.mxu0 0
    %4319 = vmatprep.subr.bf16.mxu0 0
    %4320 = vmatpush1.bf16.msra.mxu0 0
    %4321 = vmatprep.subr.bf16.mxu0 0
    %4322 = vmatpush1.bf16.msra.mxu0 0
    %4323 = vmatprep.subr.bf16.mxu0 0
    %4324 = vmatpush1.bf16.msra.mxu0 0
    %4325 = vmatprep.subr.bf16.mxu0 0
    %4326 = vmatpush1.bf16.msra.mxu0 0
    %4327 = vmatprep.subr.bf16.mxu0 0
    %4328 = vmatpush1.bf16.msra.mxu0 0
    %4329 = vmatprep.subr.bf16.mxu0 0
    %4330 = vmatpush1.bf16.msra.mxu0 0
    %4331 = vmatprep.subr.bf16.mxu0 0
    %4332 = vmatpush1.bf16.msra.mxu0 0
    %4333 = vmatprep.mubr.bf16.mxu0 0
    %4334 = vmatmul.mubr.bf16.gmra.mrb[0].mxu0 %v4296
    %v4335 = vpop.f32.mrb[0].mxu0
    %v4336 = vadd.f32 0.0, %v4335
    %v4337 = vpop.f32.mrb[0].mxu0
    %v4338 = vpop.f32.mrb[0].mxu0
    %v4339 = vpop.f32.mrb[0].mxu0
    %4340 = vdwg.mxu0
    %v4341 = vadd.f32 %v4215, %v4336
    %4342 = vset.pattern.permute.xlu0 34
    %4343 = vperm.xlu0 %4342, %v39
    %v4344 = vpop.permute.xlu0 %4343
    %vm4345 = vcmp.eq.s32.totalorder %v4344, %v57
    %v4346 = vsel %vm4345, 1, 0
    %v4347 = vcvt.s32.f32 %v4346
    %4348 = vmatprep.subr.mxu0 0.0
    %4349 = vmatpush1.msra.mxu0 %v40
    %4350 = vmatprep.subr.mxu0 0.0
    %4351 = vmatpush1.msra.mxu0 %v41
    %4352 = vmatprep.subr.mxu0 0.0
    %4353 = vmatpush1.msra.mxu0 %v42
    %4354 = vmatprep.subr.mxu0 0.0
    %4355 = vmatpush1.msra.mxu0 %v43
    %4356 = vmatprep.subr.mxu0 0.0
    %4357 = vmatpush1.msra.mxu0 %v44
    %4358 = vmatprep.subr.mxu0 0.0
    %4359 = vmatpush1.msra.mxu0 %v45
    %4360 = vmatprep.subr.mxu0 0.0
    %4361 = vmatpush1.msra.mxu0 %v46
    %4362 = vmatprep.subr.mxu0 0.0
    %4363 = vmatpush1.msra.mxu0 %v47
    %4364 = vmatprep.subr.mxu0 0.0
    %4365 = vmatpush1.msra.mxu0 %v48
    %4366 = vmatprep.subr.mxu0 0.0
    %4367 = vmatpush1.msra.mxu0 %v49
    %4368 = vmatprep.subr.mxu0 0.0
    %4369 = vmatpush1.msra.mxu0 %v50
    %4370 = vmatprep.subr.mxu0 0.0
    %4371 = vmatpush1.msra.mxu0 %v51
    %4372 = vmatprep.subr.mxu0 0.0
    %4373 = vmatpush1.msra.mxu0 %v52
    %4374 = vmatprep.subr.mxu0 0.0
    %4375 = vmatpush1.msra.mxu0 %v53
    %4376 = vmatprep.subr.mxu0 0.0
    %4377 = vmatpush1.msra.mxu0 %v54
    %4378 = vmatprep.subr.mxu0 0.0
    %4379 = vmatpush1.msra.mxu0 %v55
    %4380 = vmatprep.subr.mxu0 0.0
    %4381 = vmatpush1.msra.mxu0 0.0
    %4382 = vmatprep.subr.mxu0 0.0
    %4383 = vmatpush1.msra.mxu0 0.0
    %4384 = vmatprep.subr.mxu0 0.0
    %4385 = vmatpush1.msra.mxu0 0.0
    %4386 = vmatprep.subr.mxu0 0.0
    %4387 = vmatpush1.msra.mxu0 0.0
    %4388 = vmatprep.subr.mxu0 0.0
    %4389 = vmatpush1.msra.mxu0 0.0
    %4390 = vmatprep.subr.mxu0 0.0
    %4391 = vmatpush1.msra.mxu0 0.0
    %4392 = vmatprep.subr.mxu0 0.0
    %4393 = vmatpush1.msra.mxu0 0.0
    %4394 = vmatprep.subr.mxu0 0.0
    %4395 = vmatpush1.msra.mxu0 0.0
    %4396 = vmatprep.subr.mxu0 0.0
    %4397 = vmatpush1.msra.mxu0 0.0
    %4398 = vmatprep.subr.mxu0 0.0
    %4399 = vmatpush1.msra.mxu0 0.0
    %4400 = vmatprep.subr.mxu0 0.0
    %4401 = vmatpush1.msra.mxu0 0.0
    %4402 = vmatprep.subr.mxu0 0.0
    %4403 = vmatpush1.msra.mxu0 0.0
    %4404 = vmatprep.subr.mxu0 0.0
    %4405 = vmatpush1.msra.mxu0 0.0
    %4406 = vmatprep.subr.mxu0 0.0
    %4407 = vmatpush1.msra.mxu0 0.0
    %4408 = vmatprep.subr.mxu0 0.0
    %4409 = vmatpush1.msra.mxu0 0.0
    %4410 = vmatprep.subr.mxu0 0.0
    %4411 = vmatpush1.msra.mxu0 0.0
    %4412 = vmatprep.mubr.f32.mxu0 0.0
    %4413 = vmatmul.mubr.f32.gmra.mrb[0].mxu0 %v4347
    %v4414 = vpop.f32.mrb[0].mxu0
    %v4415 = vadd.f32 0.0, %v4414
    %v4416 = vpop.f32.mrb[0].mxu0
    %4417 = vdwg.mxu0
    %v4418 = vld [vmem:[#allocation2 + $0x110] sm:$0xff]
    %v4419 = vpack.c.bf16 %v4415, %v4415
    %v4420 = vpack.c.bf16 %v4418, %v4418
    %v4422 = vsel %vm216, %v4419, 0
    %v4425 = vsel %vm220, %v4420, 0
    %4427 = vmatprep.subr.bf16.mxu0 0
    %4428 = vmatpush1.bf16.msra.mxu0 %v4425
    %4429 = vmatprep.subr.bf16.mxu0 0
    %4430 = vmatpush1.bf16.msra.mxu0 0
    %4431 = vmatprep.subr.bf16.mxu0 0
    %4432 = vmatpush1.bf16.msra.mxu0 0
    %4433 = vmatprep.subr.bf16.mxu0 0
    %4434 = vmatpush1.bf16.msra.mxu0 0
    %4435 = vmatprep.subr.bf16.mxu0 0
    %4436 = vmatpush1.bf16.msra.mxu0 0
    %4437 = vmatprep.subr.bf16.mxu0 0
    %4438 = vmatpush1.bf16.msra.mxu0 0
    %4439 = vmatprep.subr.bf16.mxu0 0
    %4440 = vmatpush1.bf16.msra.mxu0 0
    %4441 = vmatprep.subr.bf16.mxu0 0
    %4442 = vmatpush1.bf16.msra.mxu0 0
    %4443 = vmatprep.subr.bf16.mxu0 0
    %4444 = vmatpush1.bf16.msra.mxu0 0
    %4445 = vmatprep.subr.bf16.mxu0 0
    %4446 = vmatpush1.bf16.msra.mxu0 0
    %4447 = vmatprep.subr.bf16.mxu0 0
    %4448 = vmatpush1.bf16.msra.mxu0 0
    %4449 = vmatprep.subr.bf16.mxu0 0
    %4450 = vmatpush1.bf16.msra.mxu0 0
    %4451 = vmatprep.subr.bf16.mxu0 0
    %4452 = vmatpush1.bf16.msra.mxu0 0
    %4453 = vmatprep.subr.bf16.mxu0 0
    %4454 = vmatpush1.bf16.msra.mxu0 0
    %4455 = vmatprep.subr.bf16.mxu0 0
    %4456 = vmatpush1.bf16.msra.mxu0 0
    %4457 = vmatprep.subr.bf16.mxu0 0
    %4458 = vmatpush1.bf16.msra.mxu0 0
    %4459 = vmatprep.mubr.bf16.mxu0 0
    %4460 = vmatmul.mubr.bf16.gmra.mrb[0].mxu0 %v4422
    %v4461 = vpop.f32.mrb[0].mxu0
    %v4462 = vadd.f32 0.0, %v4461
    %v4463 = vpop.f32.mrb[0].mxu0
    %v4464 = vpop.f32.mrb[0].mxu0
    %v4465 = vpop.f32.mrb[0].mxu0
    %4466 = vdwg.mxu0
    %v4467 = vadd.f32 %v4341, %v4462
    %4468 = vset.pattern.permute.xlu0 35
    %4469 = vperm.xlu0 %4468, %v39
    %v4470 = vpop.permute.xlu0 %4469
    %vm4471 = vcmp.eq.s32.totalorder %v4470, %v57
    %v4472 = vsel %vm4471, 1, 0
    %v4473 = vcvt.s32.f32 %v4472
    %4474 = vmatprep.subr.mxu0 0.0
    %4475 = vmatpush1.msra.mxu0 %v40
    %4476 = vmatprep.subr.mxu0 0.0
    %4477 = vmatpush1.msra.mxu0 %v41
    %4478 = vmatprep.subr.mxu0 0.0
    %4479 = vmatpush1.msra.mxu0 %v42
    %4480 = vmatprep.subr.mxu0 0.0
    %4481 = vmatpush1.msra.mxu0 %v43
    %4482 = vmatprep.subr.mxu0 0.0
    %4483 = vmatpush1.msra.mxu0 %v44
    %4484 = vmatprep.subr.mxu0 0.0
    %4485 = vmatpush1.msra.mxu0 %v45
    %4486 = vmatprep.subr.mxu0 0.0
    %4487 = vmatpush1.msra.mxu0 %v46
    %4488 = vmatprep.subr.mxu0 0.0
    %4489 = vmatpush1.msra.mxu0 %v47
    %4490 = vmatprep.subr.mxu0 0.0
    %4491 = vmatpush1.msra.mxu0 %v48
    %4492 = vmatprep.subr.mxu0 0.0
    %4493 = vmatpush1.msra.mxu0 %v49
    %4494 = vmatprep.subr.mxu0 0.0
    %4495 = vmatpush1.msra.mxu0 %v50
    %4496 = vmatprep.subr.mxu0 0.0
    %4497 = vmatpush1.msra.mxu0 %v51
    %4498 = vmatprep.subr.mxu0 0.0
    %4499 = vmatpush1.msra.mxu0 %v52
    %4500 = vmatprep.subr.mxu0 0.0
    %4501 = vmatpush1.msra.mxu0 %v53
    %4502 = vmatprep.subr.mxu0 0.0
    %4503 = vmatpush1.msra.mxu0 %v54
    %4504 = vmatprep.subr.mxu0 0.0
    %4505 = vmatpush1.msra.mxu0 %v55
    %4506 = vmatprep.subr.mxu0 0.0
    %4507 = vmatpush1.msra.mxu0 0.0
    %4508 = vmatprep.subr.mxu0 0.0
    %4509 = vmatpush1.msra.mxu0 0.0
    %4510 = vmatprep.subr.mxu0 0.0
    %4511 = vmatpush1.msra.mxu0 0.0
    %4512 = vmatprep.subr.mxu0 0.0
    %4513 = vmatpush1.msra.mxu0 0.0
    %4514 = vmatprep.subr.mxu0 0.0
    %4515 = vmatpush1.msra.mxu0 0.0
    %4516 = vmatprep.subr.mxu0 0.0
    %4517 = vmatpush1.msra.mxu0 0.0
    %4518 = vmatprep.subr.mxu0 0.0
    %4519 = vmatpush1.msra.mxu0 0.0
    %4520 = vmatprep.subr.mxu0 0.0
    %4521 = vmatpush1.msra.mxu0 0.0
    %4522 = vmatprep.subr.mxu0 0.0
    %4523 = vmatpush1.msra.mxu0 0.0
    %4524 = vmatprep.subr.mxu0 0.0
    %4525 = vmatpush1.msra.mxu0 0.0
    %4526 = vmatprep.subr.mxu0 0.0
    %4527 = vmatpush1.msra.mxu0 0.0
    %4528 = vmatprep.subr.mxu0 0.0
    %4529 = vmatpush1.msra.mxu0 0.0
    %4530 = vmatprep.subr.mxu0 0.0
    %4531 = vmatpush1.msra.mxu0 0.0
    %4532 = vmatprep.subr.mxu0 0.0
    %4533 = vmatpush1.msra.mxu0 0.0
    %4534 = vmatprep.subr.mxu0 0.0
    %4535 = vmatpush1.msra.mxu0 0.0
    %4536 = vmatprep.subr.mxu0 0.0
    %4537 = vmatpush1.msra.mxu0 0.0
    %4538 = vmatprep.mubr.f32.mxu0 0.0
    %4539 = vmatmul.mubr.f32.gmra.mrb[0].mxu0 %v4473
    %v4540 = vpop.f32.mrb[0].mxu0
    %v4541 = vadd.f32 0.0, %v4540
    %v4542 = vpop.f32.mrb[0].mxu0
    %4543 = vdwg.mxu0
    %v4544 = vld [vmem:[#allocation2 + $0x118] sm:$0xff]
    %v4545 = vpack.c.bf16 %v4541, %v4541
    %v4546 = vpack.c.bf16 %v4544, %v4544
    %v4548 = vsel %vm216, %v4545, 0
    %v4551 = vsel %vm220, %v4546, 0
    %4553 = vmatprep.subr.bf16.mxu0 0
    %4554 = vmatpush1.bf16.msra.mxu0 %v4551
    %4555 = vmatprep.subr.bf16.mxu0 0
    %4556 = vmatpush1.bf16.msra.mxu0 0
    %4557 = vmatprep.subr.bf16.mxu0 0
    %4558 = vmatpush1.bf16.msra.mxu0 0
    %4559 = vmatprep.subr.bf16.mxu0 0
    %4560 = vmatpush1.bf16.msra.mxu0 0
    %4561 = vmatprep.subr.bf16.mxu0 0
    %4562 = vmatpush1.bf16.msra.mxu0 0
    %4563 = vmatprep.subr.bf16.mxu0 0
    %4564 = vmatpush1.bf16.msra.mxu0 0
    %4565 = vmatprep.subr.bf16.mxu0 0
    %4566 = vmatpush1.bf16.msra.mxu0 0
    %4567 = vmatprep.subr.bf16.mxu0 0
    %4568 = vmatpush1.bf16.msra.mxu0 0
    %4569 = vmatprep.subr.bf16.mxu0 0
    %4570 = vmatpush1.bf16.msra.mxu0 0
    %4571 = vmatprep.subr.bf16.mxu0 0
    %4572 = vmatpush1.bf16.msra.mxu0 0
    %4573 = vmatprep.subr.bf16.mxu0 0
    %4574 = vmatpush1.bf16.msra.mxu0 0
    %4575 = vmatprep.subr.bf16.mxu0 0
    %4576 = vmatpush1.bf16.msra.mxu0 0
    %4577 = vmatprep.subr.bf16.mxu0 0
    %4578 = vmatpush1.bf16.msra.mxu0 0
    %4579 = vmatprep.subr.bf16.mxu0 0
    %4580 = vmatpush1.bf16.msra.mxu0 0
    %4581 = vmatprep.subr.bf16.mxu0 0
    %4582 = vmatpush1.bf16.msra.mxu0 0
    %4583 = vmatprep.subr.bf16.mxu0 0
    %4584 = vmatpush1.bf16.msra.mxu0 0
    %4585 = vmatprep.mubr.bf16.mxu0 0
    %4586 = vmatmul.mubr.bf16.gmra.mrb[0].mxu0 %v4548
    %v4587 = vpop.f32.mrb[0].mxu0
    %v4588 = vadd.f32 0.0, %v4587
    %v4589 = vpop.f32.mrb[0].mxu0
    %v4590 = vpop.f32.mrb[0].mxu0
    %v4591 = vpop.f32.mrb[0].mxu0
    %4592 = vdwg.mxu0
    %v4593 = vadd.f32 %v4467, %v4588
    %v4594 = vld [vmem:[%s3] sm:$0x1]
    %v4596 = vlaneseq
    %v4597 = vshrl.u32 %v4596, 7
    %v4598 = vsub.s32 0, %v4597
    %v4599 = vrot.slane %v4594, %v4598
    %v4601 = vadd.f32 %v4593, %v4599
    %v4602 = vmax.f32 %v4601, 0.0
    %v4603 = vpack.c.bf16 %v4602, %v4602
    %v4604 = vld [vmem:[%s4] sm:$0xff]
    %v4605 = vld [vmem:[%s4 + $0x8] sm:$0xff]
    %v4606 = vld [vmem:[%s4 + $0x10] sm:$0xff]
    %v4607 = vld [vmem:[%s4 + $0x18] sm:$0xff]
    %v4608 = vld [vmem:[%s4 + $0x20] sm:$0xff]
    %v4609 = vld [vmem:[%s4 + $0x28] sm:$0xff]
    %v4610 = vld [vmem:[%s4 + $0x30] sm:$0xff]
    %v4611 = vld [vmem:[%s4 + $0x38] sm:$0xff]
    %v4612 = vld [vmem:[%s4 + $0x40] sm:$0xff]
    %v4613 = vld [vmem:[%s4 + $0x48] sm:$0xff]
    %v4614 = vld [vmem:[%s4 + $0x50] sm:$0xff]
    %v4615 = vld [vmem:[%s4 + $0x58] sm:$0xff]
    %v4616 = vld [vmem:[%s4 + $0x60] sm:$0xff]
    %v4617 = vld [vmem:[%s4 + $0x68] sm:$0xff]
    %v4618 = vld [vmem:[%s4 + $0x70] sm:$0xff]
    %v4619 = vld [vmem:[%s4 + $0x78] sm:$0xff]
    %v4620 = vpack.c.bf16 %v4605, %v4604
    %v4621 = vpack.c.bf16 %v4607, %v4606
    %v4622 = vpack.c.bf16 %v4609, %v4608
    %v4623 = vpack.c.bf16 %v4611, %v4610
    %v4624 = vpack.c.bf16 %v4613, %v4612
    %v4625 = vpack.c.bf16 %v4615, %v4614
    %v4626 = vpack.c.bf16 %v4617, %v4616
    %v4627 = vpack.c.bf16 %v4619, %v4618
    %v4628 = vld [vmem:[%s5] sm:$0x1]
    %v4630 = vlaneseq
    %v4631 = vshrl.u32 %v4630, 7
    %v4632 = vsub.s32 0, %v4631
    %v4633 = vrot.slane %v4628, %v4632
    %4635 = vmatprep.subr.bf16.mxu0 0
    %4636 = vmatpush1.bf16.msra.mxu0 %v4620
    %4637 = vmatprep.subr.bf16.mxu0 0
    %4638 = vmatpush1.bf16.msra.mxu0 %v4621
    %4639 = vmatprep.subr.bf16.mxu0 0
    %4640 = vmatpush1.bf16.msra.mxu0 %v4622
    %4641 = vmatprep.subr.bf16.mxu0 0
    %4642 = vmatpush1.bf16.msra.mxu0 %v4623
    %4643 = vmatprep.subr.bf16.mxu0 0
    %4644 = vmatpush1.bf16.msra.mxu0 %v4624
    %4645 = vmatprep.subr.bf16.mxu0 0
    %4646 = vmatpush1.bf16.msra.mxu0 %v4625
    %4647 = vmatprep.subr.bf16.mxu0 0
    %4648 = vmatpush1.bf16.msra.mxu0 %v4626
    %4649 = vmatprep.subr.bf16.mxu0 0
    %4650 = vmatpush1.bf16.msra.mxu0 %v4627
    %4651 = vmatprep.subr.bf16.mxu0 0
    %4652 = vmatpush1.bf16.msra.mxu0 0
    %4653 = vmatprep.subr.bf16.mxu0 0
    %4654 = vmatpush1.bf16.msra.mxu0 0
    %4655 = vmatprep.subr.bf16.mxu0 0
    %4656 = vmatpush1.bf16.msra.mxu0 0
    %4657 = vmatprep.subr.bf16.mxu0 0
    %4658 = vmatpush1.bf16.msra.mxu0 0
    %4659 = vmatprep.subr.bf16.mxu0 0
    %4660 = vmatpush1.bf16.msra.mxu0 0
    %4661 = vmatprep.subr.bf16.mxu0 0
    %4662 = vmatpush1.bf16.msra.mxu0 0
    %4663 = vmatprep.subr.bf16.mxu0 0
    %4664 = vmatpush1.bf16.msra.mxu0 0
    %4665 = vmatprep.subr.bf16.mxu0 0
    %4666 = vmatpush1.bf16.msra.mxu0 0
    %4667 = vmatprep.mubr.bf16.mxu0 0
    %4668 = vmatmul.mubr.bf16.gmra.mrb[0].mxu0 %v4603
    %v4669 = vpop.f32.mrb[0].mxu0
    %v4670 = vadd.f32 %v4633, %v4669
    %v4671 = vpop.f32.mrb[0].mxu0
    %v4672 = vpop.f32.mrb[0].mxu0
    %v4673 = vpop.f32.mrb[0].mxu0
    %4674 = vdwg.mxu0
    %4675 = vst [vmem:[#allocation5] sm:$0xff] %v4670
    // Predicated region
    $region30: #{tpu_custom_call.1} parent=1 // pred_check
      _
    $region31: #{tpu_custom_call.1} parent=1 // pred_check_branch
      %4677 = sbr.rel (0) target = $region33
    $region32: #{tpu_custom_call.1} parent=1 // pred_region
      %s4679 = ssub.s32 128, 128
      %4680 = vsyncadd [#allocation4], %s4679
      %s4682 = sshll.u32 [#allocation5], 4
      %s4683 = int_to_ptr.vmem [resolvable:$true] %s4682
      %4685 = dma.vmem_to_hbm [thread:$0]  %s4683, 128, %s6, [#allocation4]
    $region33: #{tpu_custom_call.1} parent=1 // pred_fallthru
      _
    // Predicated region
    $region34: #{tpu_custom_call.1} parent=1 // pred_check
      _
    $region35: #{tpu_custom_call.1} parent=1 // pred_check_branch
      %4687 = sbr.rel (0) target = $region37
    $region36: #{tpu_custom_call.1} parent=1 // pred_region
      %4688 = dma.done [#allocation4], 128
    $region37: #{tpu_custom_call.1} parent=1 // pred_fallthru
      _
    %4689 = vsyncpa [#allocation3], 1
    %4690 = vsyncpa [#allocation4], 1

</llo_original>
